<compile_context>
chip_gen: v7x
topology: tpu7x:2x2x1
jax: 0.10.0
libtpu: 0.0.40
codegen_flags: <defaults>
</compile_context>

<pallas_src>
import functools

import jax
import jax.numpy as jnp
from jax.experimental import pallas as pl
from jax.experimental.pallas import tpu as pltpu


# ---------------------------------------------------------------------------
# Pallas kernel: fused [previous-layer BN+ReLU] + 3x3 conv + partial BN stats
# ---------------------------------------------------------------------------
def conv3x3_bn_stats_kernel(xm_ref, xt_ref, xb_ref, sc_ref, sh_ref, w_ref,
                            y_ref, st_ref, *, th, width, apply_act):
    """One (batch image, row-tile) grid step.

    xm_ref : (1, th, width, Cin_p) f32  main input rows of this tile
    xt_ref : (1, 1,  width, Cin_p) f32  row just above the tile (halo)
    xb_ref : (1, 1,  width, Cin_p) f32  row just below the tile (halo)
    sc_ref : (1, Cin_p) f32  previous-layer BN scale (unused if not apply_act)
    sh_ref : (1, Cin_p) f32  previous-layer BN shift (unused if not apply_act)
    w_ref  : (9, Cin_p, Cout_p) bf16    conv weights, tap-major (dy*3+dx)
    y_ref  : (1, th, width, Cout_p) f32 raw (pre-BN) conv output
    st_ref : (1, 1, 8, Cout_p) f32      row0 = sum(y), row1 = sum(y*y) for tile
    """
    i = pl.program_id(1)
    nt = pl.num_programs(1)
    cin_p = xm_ref.shape[-1]
    cout_p = y_ref.shape[-1]

    def act(v):
        v = v.astype(jnp.float32)
        if apply_act:  # fused BatchNorm + ReLU of the *previous* layer
            v = jnp.maximum(v * sc_ref[0] + sh_ref[0], 0.0)
        return v

    # Assemble the spatially padded ("same" conv) input tile in VMEM:
    # zero halo rows at the image top/bottom, zero columns left/right.
    zero_row = jnp.zeros((1, width, cin_p), jnp.float32)
    top = jnp.where(i > 0, act(xt_ref[0]), zero_row)
    bot = jnp.where(i < nt - 1, act(xb_ref[0]), zero_row)
    rows = jnp.concatenate([top, act(xm_ref[0]), bot], axis=0)   # (th+2, W, C)
    zero_col = jnp.zeros((th + 2, 1, cin_p), jnp.float32)
    tile = jnp.concatenate([zero_col, rows, zero_col], axis=1)   # (th+2, W+2, C)
    tile = tile.astype(jnp.bfloat16)                             # MXU operand dtype

    # 3x3 conv = 9 shifted bf16 matmuls, f32 accumulation.
    acc = jnp.zeros((th * width, cout_p), jnp.float32)
    for t in range(9):
        dy, dx = t // 3, t % 3
        patch = tile[dy:dy + th, dx:dx + width, :].reshape(th * width, cin_p)
        acc = acc + jnp.dot(patch, w_ref[t], preferred_element_type=jnp.float32)

    y_ref[...] = acc.reshape(1, th, width, cout_p)

    # Per-tile partial BatchNorm statistics (reduced in tiny JAX glue).
    s_row = jnp.sum(acc, axis=0, keepdims=True)
    sq_row = jnp.sum(acc * acc, axis=0, keepdims=True)
    pad_rows = jnp.zeros((6, cout_p), jnp.float32)
    st_ref[...] = jnp.concatenate([s_row, sq_row, pad_rows],
                                  axis=0).reshape(1, 1, 8, cout_p)


# ---------------------------------------------------------------------------
# pallas_call wrapper for one conv layer
# ---------------------------------------------------------------------------
def _conv3x3_layer(x, w9, scale_in, shift_in, *, th, apply_act):
    """x: (N, H, W, Cin_p) f32 NHWC.  Returns (raw conv y, per-tile stats)."""
    N, H, W, Cin_p = x.shape
    Cout_p = w9.shape[-1]
    assert H % th == 0, "tile height must divide H"
    nt = H // th

    kernel = functools.partial(conv3x3_bn_stats_kernel,
                               th=th, width=W, apply_act=apply_act)

    flops = 2 * N * H * W * (9 * Cin_p) * Cout_p
    bytes_accessed = (x.size * 4 + w9.size * 2
                      + N * H * W * Cout_p * 4 + N * nt * 8 * Cout_p * 4)

    return pl.pallas_call(
        kernel,
        out_shape=(
            jax.ShapeDtypeStruct((N, H, W, Cout_p), jnp.float32),
            jax.ShapeDtypeStruct((N, nt, 8, Cout_p), jnp.float32),
        ),
        grid_spec=pltpu.PrefetchScalarGridSpec(
            num_scalar_prefetch=0,
            grid=(N, nt),
            in_specs=[
                # main rows of the tile
                pl.BlockSpec((1, th, W, Cin_p), lambda n, i: (n, i, 0, 0)),
                # 1-row halo above (clamped at the image top; masked in-kernel)
                pl.BlockSpec((1, 1, W, Cin_p),
                             lambda n, i: (n, jnp.maximum(i * th - 1, 0), 0, 0)),
                # 1-row halo below (clamped at the image bottom; masked in-kernel)
                pl.BlockSpec((1, 1, W, Cin_p),
                             lambda n, i: (n, jnp.minimum((i + 1) * th, H - 1), 0, 0)),
                pl.BlockSpec((1, Cin_p), lambda n, i: (0, 0)),     # prev-layer scale
                pl.BlockSpec((1, Cin_p), lambda n, i: (0, 0)),     # prev-layer shift
                pl.BlockSpec((9, Cin_p, Cout_p), lambda n, i: (0, 0, 0)),
            ],
            out_specs=[
                pl.BlockSpec((1, th, W, Cout_p), lambda n, i: (n, i, 0, 0)),
                pl.BlockSpec((1, 1, 8, Cout_p), lambda n, i: (n, i, 0, 0)),
            ],
        ),
        compiler_params=pltpu.CompilerParams(
            # per-tile partial stats -> no cross-step accumulator -> both axes
            # can be "parallel" (sharded across TensorCores on v7x megacore).
            dimension_semantics=("parallel", "parallel"),
            vmem_limit_bytes=48 * 1024 * 1024,
        ),
        cost_estimate=pl.CostEstimate(flops=flops, transcendentals=0,
                                      bytes_accessed=bytes_accessed),
    )(x, x, x, scale_in, shift_in, w9)


# ---------------------------------------------------------------------------
# JAX glue
# ---------------------------------------------------------------------------
def _round_up(v, m):
    return -(-v // m) * m


def _bn_scale_shift(stats, m, eps):
    """stats: (N, nt, 8, Cp); row 0 = sum, row 1 = sumsq per tile."""
    s = jnp.sum(stats[:, :, 0, :], axis=(0, 1))
    sq = jnp.sum(stats[:, :, 1, :], axis=(0, 1))
    mean = s / m
    # Single-pass variance in f32; clamp to guard against cancellation.
    var = jnp.maximum(sq / m - mean * mean, 0.0)
    # BatchNorm2d at PyTorch init: gamma = 1, beta = 0, training-mode stats.
    scale = jax.lax.rsqrt(var + eps)
    shift = -mean * scale
    return scale, shift  # each (Cp,)


@functools.partial(jax.jit, static_argnames=("th",))
def conv_block_forward(x_nchw, w1_hwio, w2_hwio, *, th=8, eps=1e-5):
    """ConvBlock forward.  x_nchw: (N, Cin, H, W); weights HWIO (3,3,Ci,Co).

    `th` is the row-tile height; tune it (together with W and the padded
    channel counts) toward the VMEM budget for realistic 512x512 inputs.
    """
    N, Cin, H, W = x_nchw.shape
    Cout = w1_hwio.shape[-1]
    M = N * H * W
    Cin_p = _round_up(Cin, 128)   # lane-dense channel padding
    Cout_p = _round_up(Cout, 128)

    # NCHW -> NHWC, zero-pad channels.
    x = jnp.transpose(x_nchw, (0, 2, 3, 1)).astype(jnp.float32)
    x = jnp.pad(x, ((0, 0), (0, 0), (0, 0), (0, Cin_p - Cin)))

    def prep_w(w_hwio, cin_p, cout_p):
        ci, co = w_hwio.shape[2], w_hwio.shape[3]
        wp = jnp.pad(w_hwio.astype(jnp.float32),
                     ((0, 0), (0, 0), (0, cin_p - ci), (0, cout_p - co)))
        return wp.reshape(9, cin_p, cout_p).astype(jnp.bfloat16)

    w1_9 = prep_w(w1_hwio, Cin_p, Cout_p)
    w2_9 = prep_w(w2_hwio, Cout_p, Cout_p)

    one = jnp.ones((1, Cin_p), jnp.float32)    # dummies; layer 1 has no fused act
    zero = jnp.zeros((1, Cin_p), jnp.float32)

    # Layer 1: y1 = conv(x, w1)  (+ per-tile BN statistics of y1).
    y1, st1 = _conv3x3_layer(x, w1_9, one, zero, th=th, apply_act=False)
    scale1, shift1 = _bn_scale_shift(st1, M, eps)

    # Layer 2: y2 = conv(relu(bn(y1)), w2); BN1+ReLU fused into the input load.
    y2, st2 = _conv3x3_layer(y1, w2_9, scale1.reshape(1, -1),
                             shift1.reshape(1, -1), th=th, apply_act=True)
    scale2, shift2 = _bn_scale_shift(st2, M, eps)

    # Final BN + ReLU fused with channel-unpad + NHWC -> NCHW writeback.
    out = jnp.maximum(y2 * scale2 + shift2, 0.0)[..., :Cout]
    return jnp.transpose(out, (0, 3, 1, 2))


# ---------------------------------------------------------------------------
# Pure-JAX reference (full f32) for a sanity check of the Pallas path
# ---------------------------------------------------------------------------
def conv_block_reference(x_nchw, w1_hwio, w2_hwio, eps=1e-5):
    def layer(h_nchw, w_hwio):
        y = jax.lax.conv_general_dilated(
            h_nchw, w_hwio, window_strides=(1, 1), padding="SAME",
            dimension_numbers=("NCHW", "HWIO", "NCHW"),
            precision=jax.lax.Precision.HIGHEST)
        mean = jnp.mean(y, axis=(0, 2, 3), keepdims=True)
        var = jnp.mean(jnp.square(y - mean), axis=(0, 2, 3), keepdims=True)
        y = (y - mean) * jax.lax.rsqrt(var + eps)
        return jnp.maximum(y, 0.0)

    return layer(layer(x_nchw, w1_hwio), w2_hwio)


# ---------------------------------------------------------------------------
if __name__ == "__main__":
    N, Cin, Cout, H, W = 2, 4, 8, 16, 16

    key = jax.random.PRNGKey(0)
    kx, k1, k2 = jax.random.split(key, 3)

    # xavier_normal_-style init; PyTorch conv weight (Cout,Cin,3,3) stored HWIO.
    std1 = (2.0 / ((Cin + Cout) * 9)) ** 0.5
    std2 = (2.0 / ((Cout + Cout) * 9)) ** 0.5
    w1 = jax.random.normal(k1, (3, 3, Cin, Cout), jnp.float32) * std1
    w2 = jax.random.normal(k2, (3, 3, Cout, Cout), jnp.float32) * std2

    x = jax.random.normal(kx, (N, Cin, H, W), jnp.float32)

    out = jax.block_until_ready(conv_block_forward(x, w1, w2, th=8))
    ref = jax.block_until_ready(conv_block_reference(x, w1, w2))

    assert out.shape == (N, Cout, H, W)
    # Tolerance accounts for bf16 MXU operands (stats / BN math are f32).
    max_err = float(jnp.max(jnp.abs(out - ref)))
    assert jnp.allclose(out, ref, atol=2e-2, rtol=2e-2), (
        f"mismatch vs reference (max abs err {max_err})")

    print("KERNEL_OK")
</pallas_src>

<mosaic_0001>
module attributes {stable_mosaic.version = 11 : i64} {
  func.func @conv3x3_bn_stats_kernel(%arg0: i32, %arg1: i32, %arg2: memref<1x8x16x128xf32, #tpu.memory_space<vmem>>, %arg3: memref<1x1x16x128xf32, #tpu.memory_space<vmem>>, %arg4: memref<1x1x16x128xf32, #tpu.memory_space<vmem>>, %arg5: memref<1x128xf32, #tpu.memory_space<vmem>>, %arg6: memref<1x128xf32, #tpu.memory_space<vmem>>, %arg7: memref<9x128x128xbf16, #tpu.memory_space<vmem>>, %arg8: memref<1x8x16x128xf32, #tpu.memory_space<vmem>>, %arg9: memref<1x1x8x128xf32, #tpu.memory_space<vmem>>) attributes {dimension_semantics = [#tpu.dimension_semantics<parallel>, #tpu.dimension_semantics<parallel>], iteration_bounds = array<i64: 2, 2>, scalar_prefetch = 0 : i64, scratch_operands = 0 : i64, tpu.core_type = #tpu.core_type<tc>, window_params = [{transform_indices = @transform_0, window_bounds = array<i64: 1, 8, 16, 128>}, {transform_indices = @transform_1, window_bounds = array<i64: 1, 1, 16, 128>}, {transform_indices = @transform_2, window_bounds = array<i64: 1, 1, 16, 128>}, {pipeline_mode = #tpu.pipeline_mode<synchronous>, transform_indices = @transform_3, window_bounds = array<i64: 1, 128>}, {pipeline_mode = #tpu.pipeline_mode<synchronous>, transform_indices = @transform_4, window_bounds = array<i64: 1, 128>}, {pipeline_mode = #tpu.pipeline_mode<synchronous>, transform_indices = @transform_5, window_bounds = array<i64: 9, 128, 128>}, {transform_indices = @transform_6, window_bounds = array<i64: 1, 8, 16, 128>}, {transform_indices = @transform_7, window_bounds = array<i64: 1, 1, 8, 128>}]} {
    %cst = arith.constant 0.000000e+00 : f32
    %0 = vector.broadcast %cst : f32 to vector<1x16x128xf32>
    %c0_i32 = arith.constant 0 : i32
    %1 = arith.cmpi sgt, %arg1, %c0_i32 : i32
    %c0 = arith.constant 0 : index
    %c0_0 = arith.constant 0 : index
    %c0_1 = arith.constant 0 : index
    %c0_2 = arith.constant 0 : index
    %2 = vector.load %arg3[%c0, %c0_0, %c0_1, %c0_2] : memref<1x1x16x128xf32, #tpu.memory_space<vmem>>, vector<1x1x16x128xf32>
    %3 = vector.shape_cast %2 : vector<1x1x16x128xf32> to vector<1x16x128xf32>
    %4 = arith.select %1, %3, %0 : vector<1x16x128xf32>
    %c1_i32 = arith.constant 1 : i32
    %5 = arith.cmpi slt, %arg1, %c1_i32 : i32
    %c0_3 = arith.constant 0 : index
    %c0_4 = arith.constant 0 : index
    %c0_5 = arith.constant 0 : index
    %c0_6 = arith.constant 0 : index
    %6 = vector.load %arg4[%c0_3, %c0_4, %c0_5, %c0_6] : memref<1x1x16x128xf32, #tpu.memory_space<vmem>>, vector<1x1x16x128xf32>
    %7 = vector.shape_cast %6 : vector<1x1x16x128xf32> to vector<1x16x128xf32>
    %8 = arith.select %5, %7, %0 : vector<1x16x128xf32>
    %c0_7 = arith.constant 0 : index
    %c0_8 = arith.constant 0 : index
    %c0_9 = arith.constant 0 : index
    %c0_10 = arith.constant 0 : index
    %9 = vector.load %arg2[%c0_7, %c0_8, %c0_9, %c0_10] : memref<1x8x16x128xf32, #tpu.memory_space<vmem>>, vector<1x8x16x128xf32>
    %10 = vector.shape_cast %9 : vector<1x8x16x128xf32> to vector<8x16x128xf32>
    %11 = tpu.concatenate %4, %10, %8 in 0 : vector<1x16x128xf32>, vector<8x16x128xf32>, vector<1x16x128xf32> -> vector<10x16x128xf32>
    %cst_11 = arith.constant 0.000000e+00 : f32
    %12 = vector.broadcast %cst_11 : f32 to vector<10x1x128xf32>
    %13 = tpu.concatenate %12, %11, %12 in 1 : vector<10x1x128xf32>, vector<10x16x128xf32>, vector<10x1x128xf32> -> vector<10x18x128xf32>
    %14 = arith.truncf %13 : vector<10x18x128xf32> to vector<10x18x128xbf16>
    %cst_12 = arith.constant 0.000000e+00 : f32
    %15 = vector.broadcast %cst_12 : f32 to vector<128x128xf32>
    %16 = vector.extract_strided_slice %14 {offsets = [0, 0, 0], sizes = [8, 16, 128], strides = [1, 1, 1]} : vector<10x18x128xbf16> to vector<8x16x128xbf16>
    %17 = vector.shape_cast %16 : vector<8x16x128xbf16> to vector<128x128xbf16>
    %c0_13 = arith.constant 0 : index
    %c0_14 = arith.constant 0 : index
    %c0_15 = arith.constant 0 : index
    %18 = vector.load %arg7[%c0_13, %c0_14, %c0_15] : memref<9x128x128xbf16, #tpu.memory_space<vmem>>, vector<1x128x128xbf16>
    %19 = vector.shape_cast %18 : vector<1x128x128xbf16> to vector<128x128xbf16>
    %cst_16 = arith.constant dense<0.000000e+00> : vector<128x128xf32>
    %20 = tpu.matmul %17, %19, %cst_16 {dimension_numbers = #tpu.dot_dimension_numbers<[1], [0], [0], [1], [0, 0, 1, 1], [], []>} : vector<128x128xbf16>, vector<128x128xbf16>, vector<128x128xf32> -> vector<128x128xf32>
    %21 = arith.addf %15, %20 : vector<128x128xf32>
    %22 = vector.extract_strided_slice %14 {offsets = [0, 1, 0], sizes = [8, 16, 128], strides = [1, 1, 1]} : vector<10x18x128xbf16> to vector<8x16x128xbf16>
    %23 = vector.shape_cast %22 : vector<8x16x128xbf16> to vector<128x128xbf16>
    %c1 = arith.constant 1 : index
    %c0_17 = arith.constant 0 : index
    %c0_18 = arith.constant 0 : index
    %24 = vector.load %arg7[%c1, %c0_17, %c0_18] : memref<9x128x128xbf16, #tpu.memory_space<vmem>>, vector<1x128x128xbf16>
    %25 = vector.shape_cast %24 : vector<1x128x128xbf16> to vector<128x128xbf16>
    %cst_19 = arith.constant dense<0.000000e+00> : vector<128x128xf32>
    %26 = tpu.matmul %23, %25, %cst_19 {dimension_numbers = #tpu.dot_dimension_numbers<[1], [0], [0], [1], [0, 0, 1, 1], [], []>} : vector<128x128xbf16>, vector<128x128xbf16>, vector<128x128xf32> -> vector<128x128xf32>
    %27 = arith.addf %21, %26 : vector<128x128xf32>
    %28 = vector.extract_strided_slice %14 {offsets = [0, 2, 0], sizes = [8, 16, 128], strides = [1, 1, 1]} : vector<10x18x128xbf16> to vector<8x16x128xbf16>
    %29 = vector.shape_cast %28 : vector<8x16x128xbf16> to vector<128x128xbf16>
    %c2 = arith.constant 2 : index
    %c0_20 = arith.constant 0 : index
    %c0_21 = arith.constant 0 : index
    %30 = vector.load %arg7[%c2, %c0_20, %c0_21] : memref<9x128x128xbf16, #tpu.memory_space<vmem>>, vector<1x128x128xbf16>
    %31 = vector.shape_cast %30 : vector<1x128x128xbf16> to vector<128x128xbf16>
    %cst_22 = arith.constant dense<0.000000e+00> : vector<128x128xf32>
    %32 = tpu.matmul %29, %31, %cst_22 {dimension_numbers = #tpu.dot_dimension_numbers<[1], [0], [0], [1], [0, 0, 1, 1], [], []>} : vector<128x128xbf16>, vector<128x128xbf16>, vector<128x128xf32> -> vector<128x128xf32>
    %33 = arith.addf %27, %32 : vector<128x128xf32>
    %34 = vector.extract_strided_slice %14 {offsets = [1, 0, 0], sizes = [8, 16, 128], strides = [1, 1, 1]} : vector<10x18x128xbf16> to vector<8x16x128xbf16>
    %35 = vector.shape_cast %34 : vector<8x16x128xbf16> to vector<128x128xbf16>
    %c3 = arith.constant 3 : index
    %c0_23 = arith.constant 0 : index
    %c0_24 = arith.constant 0 : index
    %36 = vector.load %arg7[%c3, %c0_23, %c0_24] : memref<9x128x128xbf16, #tpu.memory_space<vmem>>, vector<1x128x128xbf16>
    %37 = vector.shape_cast %36 : vector<1x128x128xbf16> to vector<128x128xbf16>
    %cst_25 = arith.constant dense<0.000000e+00> : vector<128x128xf32>
    %38 = tpu.matmul %35, %37, %cst_25 {dimension_numbers = #tpu.dot_dimension_numbers<[1], [0], [0], [1], [0, 0, 1, 1], [], []>} : vector<128x128xbf16>, vector<128x128xbf16>, vector<128x128xf32> -> vector<128x128xf32>
    %39 = arith.addf %33, %38 : vector<128x128xf32>
    %40 = vector.extract_strided_slice %14 {offsets = [1, 1, 0], sizes = [8, 16, 128], strides = [1, 1, 1]} : vector<10x18x128xbf16> to vector<8x16x128xbf16>
    %41 = vector.shape_cast %40 : vector<8x16x128xbf16> to vector<128x128xbf16>
    %c4 = arith.constant 4 : index
    %c0_26 = arith.constant 0 : index
    %c0_27 = arith.constant 0 : index
    %42 = vector.load %arg7[%c4, %c0_26, %c0_27] : memref<9x128x128xbf16, #tpu.memory_space<vmem>>, vector<1x128x128xbf16>
    %43 = vector.shape_cast %42 : vector<1x128x128xbf16> to vector<128x128xbf16>
    %cst_28 = arith.constant dense<0.000000e+00> : vector<128x128xf32>
    %44 = tpu.matmul %41, %43, %cst_28 {dimension_numbers = #tpu.dot_dimension_numbers<[1], [0], [0], [1], [0, 0, 1, 1], [], []>} : vector<128x128xbf16>, vector<128x128xbf16>, vector<128x128xf32> -> vector<128x128xf32>
    %45 = arith.addf %39, %44 : vector<128x128xf32>
    %46 = vector.extract_strided_slice %14 {offsets = [1, 2, 0], sizes = [8, 16, 128], strides = [1, 1, 1]} : vector<10x18x128xbf16> to vector<8x16x128xbf16>
    %47 = vector.shape_cast %46 : vector<8x16x128xbf16> to vector<128x128xbf16>
    %c5 = arith.constant 5 : index
    %c0_29 = arith.constant 0 : index
    %c0_30 = arith.constant 0 : index
    %48 = vector.load %arg7[%c5, %c0_29, %c0_30] : memref<9x128x128xbf16, #tpu.memory_space<vmem>>, vector<1x128x128xbf16>
    %49 = vector.shape_cast %48 : vector<1x128x128xbf16> to vector<128x128xbf16>
    %cst_31 = arith.constant dense<0.000000e+00> : vector<128x128xf32>
    %50 = tpu.matmul %47, %49, %cst_31 {dimension_numbers = #tpu.dot_dimension_numbers<[1], [0], [0], [1], [0, 0, 1, 1], [], []>} : vector<128x128xbf16>, vector<128x128xbf16>, vector<128x128xf32> -> vector<128x128xf32>
    %51 = arith.addf %45, %50 : vector<128x128xf32>
    %52 = vector.extract_strided_slice %14 {offsets = [2, 0, 0], sizes = [8, 16, 128], strides = [1, 1, 1]} : vector<10x18x128xbf16> to vector<8x16x128xbf16>
    %53 = vector.shape_cast %52 : vector<8x16x128xbf16> to vector<128x128xbf16>
    %c6 = arith.constant 6 : index
    %c0_32 = arith.constant 0 : index
    %c0_33 = arith.constant 0 : index
    %54 = vector.load %arg7[%c6, %c0_32, %c0_33] : memref<9x128x128xbf16, #tpu.memory_space<vmem>>, vector<1x128x128xbf16>
    %55 = vector.shape_cast %54 : vector<1x128x128xbf16> to vector<128x128xbf16>
    %cst_34 = arith.constant dense<0.000000e+00> : vector<128x128xf32>
    %56 = tpu.matmul %53, %55, %cst_34 {dimension_numbers = #tpu.dot_dimension_numbers<[1], [0], [0], [1], [0, 0, 1, 1], [], []>} : vector<128x128xbf16>, vector<128x128xbf16>, vector<128x128xf32> -> vector<128x128xf32>
    %57 = arith.addf %51, %56 : vector<128x128xf32>
    %58 = vector.extract_strided_slice %14 {offsets = [2, 1, 0], sizes = [8, 16, 128], strides = [1, 1, 1]} : vector<10x18x128xbf16> to vector<8x16x128xbf16>
    %59 = vector.shape_cast %58 : vector<8x16x128xbf16> to vector<128x128xbf16>
    %c7 = arith.constant 7 : index
    %c0_35 = arith.constant 0 : index
    %c0_36 = arith.constant 0 : index
    %60 = vector.load %arg7[%c7, %c0_35, %c0_36] : memref<9x128x128xbf16, #tpu.memory_space<vmem>>, vector<1x128x128xbf16>
    %61 = vector.shape_cast %60 : vector<1x128x128xbf16> to vector<128x128xbf16>
    %cst_37 = arith.constant dense<0.000000e+00> : vector<128x128xf32>
    %62 = tpu.matmul %59, %61, %cst_37 {dimension_numbers = #tpu.dot_dimension_numbers<[1], [0], [0], [1], [0, 0, 1, 1], [], []>} : vector<128x128xbf16>, vector<128x128xbf16>, vector<128x128xf32> -> vector<128x128xf32>
    %63 = arith.addf %57, %62 : vector<128x128xf32>
    %64 = vector.extract_strided_slice %14 {offsets = [2, 2, 0], sizes = [8, 16, 128], strides = [1, 1, 1]} : vector<10x18x128xbf16> to vector<8x16x128xbf16>
    %65 = vector.shape_cast %64 : vector<8x16x128xbf16> to vector<128x128xbf16>
    %c8 = arith.constant 8 : index
    %c0_38 = arith.constant 0 : index
    %c0_39 = arith.constant 0 : index
    %66 = vector.load %arg7[%c8, %c0_38, %c0_39] : memref<9x128x128xbf16, #tpu.memory_space<vmem>>, vector<1x128x128xbf16>
    %67 = vector.shape_cast %66 : vector<1x128x128xbf16> to vector<128x128xbf16>
    %cst_40 = arith.constant dense<0.000000e+00> : vector<128x128xf32>
    %68 = tpu.matmul %65, %67, %cst_40 {dimension_numbers = #tpu.dot_dimension_numbers<[1], [0], [0], [1], [0, 0, 1, 1], [], []>} : vector<128x128xbf16>, vector<128x128xbf16>, vector<128x128xf32> -> vector<128x128xf32>
    %69 = arith.addf %63, %68 : vector<128x128xf32>
    %70 = vector.shape_cast %69 : vector<128x128xf32> to vector<1x8x16x128xf32>
    %c0_41 = arith.constant 0 : index
    %c0_42 = arith.constant 0 : index
    %c0_43 = arith.constant 0 : index
    %c0_44 = arith.constant 0 : index
    %71 = vector.load %arg8[%c0_41, %c0_42, %c0_43, %c0_44] : memref<1x8x16x128xf32, #tpu.memory_space<vmem>>, vector<1x8x16x128xf32>
    tpu.vector_store %arg8[%c0_41, %c0_42, %c0_43, %c0_44], %70 {strides = array<i32>} : memref<1x8x16x128xf32, #tpu.memory_space<vmem>>, vector<1x8x16x128xf32>,
    %cst_45 = arith.constant dense<0.000000e+00> : vector<128xf32>
    %72 = vector.multi_reduction <add>, %69, %cst_45 [0] : vector<128x128xf32> to vector<128xf32>
    %73 = vector.shape_cast %72 : vector<128xf32> to vector<1x128xf32>
    %74 = arith.mulf %69, %69 : vector<128x128xf32>
    %cst_46 = arith.constant dense<0.000000e+00> : vector<128xf32>
    %75 = vector.multi_reduction <add>, %74, %cst_46 [0] : vector<128x128xf32> to vector<128xf32>
    %76 = vector.shape_cast %75 : vector<128xf32> to vector<1x128xf32>
    %cst_47 = arith.constant 0.000000e+00 : f32
    %77 = vector.broadcast %cst_47 : f32 to vector<6x128xf32>
    %78 = tpu.concatenate %73, %76, %77 in 0 : vector<1x128xf32>, vector<1x128xf32>, vector<6x128xf32> -> vector<8x128xf32>
    %79 = vector.shape_cast %78 : vector<8x128xf32> to vector<1x1x8x128xf32>
    %c0_48 = arith.constant 0 : index
    %c0_49 = arith.constant 0 : index
    %c0_50 = arith.constant 0 : index
    %c0_51 = arith.constant 0 : index
    %80 = vector.load %arg9[%c0_48, %c0_49, %c0_50, %c0_51] : memref<1x1x8x128xf32, #tpu.memory_space<vmem>>, vector<1x1x8x128xf32>
    tpu.vector_store %arg9[%c0_48, %c0_49, %c0_50, %c0_51], %79 {strides = array<i32>} : memref<1x1x8x128xf32, #tpu.memory_space<vmem>>, vector<1x1x8x128xf32>,
    return
  }
  func.func @transform_0(%arg0: i32, %arg1: i32) -> (i32, i32, i32, i32) {
    %c0_i32 = arith.constant 0 : i32
    %c0_i32_0 = arith.constant 0 : i32
    %c0_i32_1 = arith.constant 0 : i32
    return %arg0, %arg1, %c0_i32, %c0_i32_0 : i32, i32, i32, i32
  }
  func.func @transform_1(%arg0: i32, %arg1: i32) -> (i32, i32, i32, i32) {
    %c8_i32 = arith.constant 8 : i32
    %0 = arith.muli %arg1, %c8_i32 : i32
    %c1_i32 = arith.constant 1 : i32
    %1 = arith.subi %0, %c1_i32 : i32
    %c0_i32 = arith.constant 0 : i32
    %2 = arith.maxsi %1, %c0_i32 : i32
    %c0_i32_0 = arith.constant 0 : i32
    %c0_i32_1 = arith.constant 0 : i32
    %c0_i32_2 = arith.constant 0 : i32
    return %arg0, %2, %c0_i32_0, %c0_i32_1 : i32, i32, i32, i32
  }
  func.func @transform_2(%arg0: i32, %arg1: i32) -> (i32, i32, i32, i32) {
    %c1_i32 = arith.constant 1 : i32
    %0 = arith.addi %arg1, %c1_i32 : i32
    %c8_i32 = arith.constant 8 : i32
    %1 = arith.muli %0, %c8_i32 : i32
    %c15_i32 = arith.constant 15 : i32
    %2 = arith.minsi %1, %c15_i32 : i32
    %c0_i32 = arith.constant 0 : i32
    %c0_i32_0 = arith.constant 0 : i32
    %c0_i32_1 = arith.constant 0 : i32
    return %arg0, %2, %c0_i32, %c0_i32_0 : i32, i32, i32, i32
  }
  func.func @transform_3(%arg0: i32, %arg1: i32) -> (i32, i32) {
    %c0_i32 = arith.constant 0 : i32
    %c0_i32_0 = arith.constant 0 : i32
    %c0_i32_1 = arith.constant 0 : i32
    return %c0_i32, %c0_i32_0 : i32, i32
  }
  func.func @transform_4(%arg0: i32, %arg1: i32) -> (i32, i32) {
    %c0_i32 = arith.constant 0 : i32
    %c0_i32_0 = arith.constant 0 : i32
    %c0_i32_1 = arith.constant 0 : i32
    return %c0_i32, %c0_i32_0 : i32, i32
  }
  func.func @transform_5(%arg0: i32, %arg1: i32) -> (i32, i32, i32) {
    %c0_i32 = arith.constant 0 : i32
    %c0_i32_0 = arith.constant 0 : i32
    %c0_i32_1 = arith.constant 0 : i32
    %c0_i32_2 = arith.constant 0 : i32
    return %c0_i32, %c0_i32_0, %c0_i32_1 : i32, i32, i32
  }
  func.func @transform_6(%arg0: i32, %arg1: i32) -> (i32, i32, i32, i32) {
    %c0_i32 = arith.constant 0 : i32
    %c0_i32_0 = arith.constant 0 : i32
    %c0_i32_1 = arith.constant 0 : i32
    return %arg0, %arg1, %c0_i32, %c0_i32_0 : i32, i32, i32, i32
  }
  func.func @transform_7(%arg0: i32, %arg1: i32) -> (i32, i32, i32, i32) {
    %c0_i32 = arith.constant 0 : i32
    %c0_i32_0 = arith.constant 0 : i32
    %c0_i32_1 = arith.constant 0 : i32
    return %arg0, %arg1, %c0_i32, %c0_i32_0 : i32, i32, i32, i32
  }
}

module attributes {stable_mosaic.version = 11 : i64} {
  func.func @conv3x3_bn_stats_kernel(%arg0: i32, %arg1: i32, %arg2: memref<1x8x16x128xf32, #tpu.memory_space<vmem>>, %arg3: memref<1x1x16x128xf32, #tpu.memory_space<vmem>>, %arg4: memref<1x1x16x128xf32, #tpu.memory_space<vmem>>, %arg5: memref<1x128xf32, #tpu.memory_space<vmem>>, %arg6: memref<1x128xf32, #tpu.memory_space<vmem>>, %arg7: memref<9x128x128xbf16, #tpu.memory_space<vmem>>, %arg8: memref<1x8x16x128xf32, #tpu.memory_space<vmem>>, %arg9: memref<1x1x8x128xf32, #tpu.memory_space<vmem>>) attributes {dimension_semantics = [#tpu.dimension_semantics<parallel>, #tpu.dimension_semantics<parallel>], iteration_bounds = array<i64: 2, 2>, scalar_prefetch = 0 : i64, scratch_operands = 0 : i64, tpu.core_type = #tpu.core_type<tc>, window_params = [{transform_indices = @transform_0, window_bounds = array<i64: 1, 8, 16, 128>}, {transform_indices = @transform_1, window_bounds = array<i64: 1, 1, 16, 128>}, {transform_indices = @transform_2, window_bounds = array<i64: 1, 1, 16, 128>}, {pipeline_mode = #tpu.pipeline_mode<synchronous>, transform_indices = @transform_3, window_bounds = array<i64: 1, 128>}, {pipeline_mode = #tpu.pipeline_mode<synchronous>, transform_indices = @transform_4, window_bounds = array<i64: 1, 128>}, {pipeline_mode = #tpu.pipeline_mode<synchronous>, transform_indices = @transform_5, window_bounds = array<i64: 9, 128, 128>}, {transform_indices = @transform_6, window_bounds = array<i64: 1, 8, 16, 128>}, {transform_indices = @transform_7, window_bounds = array<i64: 1, 1, 8, 128>}]} {
    %cst = arith.constant 0.000000e+00 : f32
    %0 = vector.broadcast %cst : f32 to vector<1x16x128xf32>
    %c0_i32 = arith.constant 0 : i32
    %1 = arith.cmpi sgt, %arg1, %c0_i32 : i32
    %c0 = arith.constant 0 : index
    %c0_0 = arith.constant 0 : index
    %c0_1 = arith.constant 0 : index
    %c0_2 = arith.constant 0 : index
    %2 = vector.load %arg3[%c0, %c0_0, %c0_1, %c0_2] : memref<1x1x16x128xf32, #tpu.memory_space<vmem>>, vector<1x1x16x128xf32>
    %3 = vector.shape_cast %2 : vector<1x1x16x128xf32> to vector<1x16x128xf32>
    %c0_3 = arith.constant 0 : index
    %c0_4 = arith.constant 0 : index
    %4 = vector.load %arg5[%c0_3, %c0_4] : memref<1x128xf32, #tpu.memory_space<vmem>>, vector<1x128xf32>
    %5 = vector.shape_cast %4 : vector<1x128xf32> to vector<128xf32>
    %6 = vector.shape_cast %5 : vector<128xf32> to vector<1x1x128xf32>
    %7 = vector.broadcast %6 : vector<1x1x128xf32> to vector<1x16x128xf32>
    %8 = arith.mulf %3, %7 : vector<1x16x128xf32>
    %c0_5 = arith.constant 0 : index
    %c0_6 = arith.constant 0 : index
    %9 = vector.load %arg6[%c0_5, %c0_6] : memref<1x128xf32, #tpu.memory_space<vmem>>, vector<1x128xf32>
    %10 = vector.shape_cast %9 : vector<1x128xf32> to vector<128xf32>
    %11 = vector.shape_cast %10 : vector<128xf32> to vector<1x1x128xf32>
    %12 = vector.broadcast %11 : vector<1x1x128xf32> to vector<1x16x128xf32>
    %13 = arith.addf %8, %12 : vector<1x16x128xf32>
    %cst_7 = arith.constant 0.000000e+00 : f32
    %14 = vector.broadcast %cst_7 : f32 to vector<1x16x128xf32>
    %15 = arith.maximumf %13, %14 : vector<1x16x128xf32>
    %16 = arith.select %1, %15, %0 : vector<1x16x128xf32>
    %c1_i32 = arith.constant 1 : i32
    %17 = arith.cmpi slt, %arg1, %c1_i32 : i32
    %c0_8 = arith.constant 0 : index
    %c0_9 = arith.constant 0 : index
    %c0_10 = arith.constant 0 : index
    %c0_11 = arith.constant 0 : index
    %18 = vector.load %arg4[%c0_8, %c0_9, %c0_10, %c0_11] : memref<1x1x16x128xf32, #tpu.memory_space<vmem>>, vector<1x1x16x128xf32>
    %19 = vector.shape_cast %18 : vector<1x1x16x128xf32> to vector<1x16x128xf32>
    %c0_12 = arith.constant 0 : index
    %c0_13 = arith.constant 0 : index
    %20 = vector.load %arg5[%c0_12, %c0_13] : memref<1x128xf32, #tpu.memory_space<vmem>>, vector<1x128xf32>
    %21 = vector.shape_cast %20 : vector<1x128xf32> to vector<128xf32>
    %22 = vector.shape_cast %21 : vector<128xf32> to vector<1x1x128xf32>
    %23 = vector.broadcast %22 : vector<1x1x128xf32> to vector<1x16x128xf32>
    %24 = arith.mulf %19, %23 : vector<1x16x128xf32>
    %c0_14 = arith.constant 0 : index
    %c0_15 = arith.constant 0 : index
    %25 = vector.load %arg6[%c0_14, %c0_15] : memref<1x128xf32, #tpu.memory_space<vmem>>, vector<1x128xf32>
    %26 = vector.shape_cast %25 : vector<1x128xf32> to vector<128xf32>
    %27 = vector.shape_cast %26 : vector<128xf32> to vector<1x1x128xf32>
    %28 = vector.broadcast %27 : vector<1x1x128xf32> to vector<1x16x128xf32>
    %29 = arith.addf %24, %28 : vector<1x16x128xf32>
    %cst_16 = arith.constant 0.000000e+00 : f32
    %30 = vector.broadcast %cst_16 : f32 to vector<1x16x128xf32>
    %31 = arith.maximumf %29, %30 : vector<1x16x128xf32>
    %32 = arith.select %17, %31, %0 : vector<1x16x128xf32>
    %c0_17 = arith.constant 0 : index
    %c0_18 = arith.constant 0 : index
    %c0_19 = arith.constant 0 : index
    %c0_20 = arith.constant 0 : index
    %33 = vector.load %arg2[%c0_17, %c0_18, %c0_19, %c0_20] : memref<1x8x16x128xf32, #tpu.memory_space<vmem>>, vector<1x8x16x128xf32>
    %34 = vector.shape_cast %33 : vector<1x8x16x128xf32> to vector<8x16x128xf32>
    %c0_21 = arith.constant 0 : index
    %c0_22 = arith.constant 0 : index
    %35 = vector.load %arg5[%c0_21, %c0_22] : memref<1x128xf32, #tpu.memory_space<vmem>>, vector<1x128xf32>
    %36 = vector.shape_cast %35 : vector<1x128xf32> to vector<128xf32>
    %37 = vector.shape_cast %36 : vector<128xf32> to vector<1x1x128xf32>
    %38 = vector.broadcast %37 : vector<1x1x128xf32> to vector<8x16x128xf32>
    %39 = arith.mulf %34, %38 : vector<8x16x128xf32>
    %c0_23 = arith.constant 0 : index
    %c0_24 = arith.constant 0 : index
    %40 = vector.load %arg6[%c0_23, %c0_24] : memref<1x128xf32, #tpu.memory_space<vmem>>, vector<1x128xf32>
    %41 = vector.shape_cast %40 : vector<1x128xf32> to vector<128xf32>
    %42 = vector.shape_cast %41 : vector<128xf32> to vector<1x1x128xf32>
    %43 = vector.broadcast %42 : vector<1x1x128xf32> to vector<8x16x128xf32>
    %44 = arith.addf %39, %43 : vector<8x16x128xf32>
    %cst_25 = arith.constant 0.000000e+00 : f32
    %45 = vector.broadcast %cst_25 : f32 to vector<8x16x128xf32>
    %46 = arith.maximumf %44, %45 : vector<8x16x128xf32>
    %47 = tpu.concatenate %16, %46, %32 in 0 : vector<1x16x128xf32>, vector<8x16x128xf32>, vector<1x16x128xf32> -> vector<10x16x128xf32>
    %cst_26 = arith.constant 0.000000e+00 : f32
    %48 = vector.broadcast %cst_26 : f32 to vector<10x1x128xf32>
    %49 = tpu.concatenate %48, %47, %48 in 1 : vector<10x1x128xf32>, vector<10x16x128xf32>, vector<10x1x128xf32> -> vector<10x18x128xf32>
    %50 = arith.truncf %49 : vector<10x18x128xf32> to vector<10x18x128xbf16>
    %cst_27 = arith.constant 0.000000e+00 : f32
    %51 = vector.broadcast %cst_27 : f32 to vector<128x128xf32>
    %52 = vector.extract_strided_slice %50 {offsets = [0, 0, 0], sizes = [8, 16, 128], strides = [1, 1, 1]} : vector<10x18x128xbf16> to vector<8x16x128xbf16>
    %53 = vector.shape_cast %52 : vector<8x16x128xbf16> to vector<128x128xbf16>
    %c0_28 = arith.constant 0 : index
    %c0_29 = arith.constant 0 : index
    %c0_30 = arith.constant 0 : index
    %54 = vector.load %arg7[%c0_28, %c0_29, %c0_30] : memref<9x128x128xbf16, #tpu.memory_space<vmem>>, vector<1x128x128xbf16>
    %55 = vector.shape_cast %54 : vector<1x128x128xbf16> to vector<128x128xbf16>
    %cst_31 = arith.constant dense<0.000000e+00> : vector<128x128xf32>
    %56 = tpu.matmul %53, %55, %cst_31 {dimension_numbers = #tpu.dot_dimension_numbers<[1], [0], [0], [1], [0, 0, 1, 1], [], []>} : vector<128x128xbf16>, vector<128x128xbf16>, vector<128x128xf32> -> vector<128x128xf32>
    %57 = arith.addf %51, %56 : vector<128x128xf32>
    %58 = vector.extract_strided_slice %50 {offsets = [0, 1, 0], sizes = [8, 16, 128], strides = [1, 1, 1]} : vector<10x18x128xbf16> to vector<8x16x128xbf16>
    %59 = vector.shape_cast %58 : vector<8x16x128xbf16> to vector<128x128xbf16>
    %c1 = arith.constant 1 : index
    %c0_32 = arith.constant 0 : index
    %c0_33 = arith.constant 0 : index
    %60 = vector.load %arg7[%c1, %c0_32, %c0_33] : memref<9x128x128xbf16, #tpu.memory_space<vmem>>, vector<1x128x128xbf16>
    %61 = vector.shape_cast %60 : vector<1x128x128xbf16> to vector<128x128xbf16>
    %cst_34 = arith.constant dense<0.000000e+00> : vector<128x128xf32>
    %62 = tpu.matmul %59, %61, %cst_34 {dimension_numbers = #tpu.dot_dimension_numbers<[1], [0], [0], [1], [0, 0, 1, 1], [], []>} : vector<128x128xbf16>, vector<128x128xbf16>, vector<128x128xf32> -> vector<128x128xf32>
    %63 = arith.addf %57, %62 : vector<128x128xf32>
    %64 = vector.extract_strided_slice %50 {offsets = [0, 2, 0], sizes = [8, 16, 128], strides = [1, 1, 1]} : vector<10x18x128xbf16> to vector<8x16x128xbf16>
    %65 = vector.shape_cast %64 : vector<8x16x128xbf16> to vector<128x128xbf16>
    %c2 = arith.constant 2 : index
    %c0_35 = arith.constant 0 : index
    %c0_36 = arith.constant 0 : index
    %66 = vector.load %arg7[%c2, %c0_35, %c0_36] : memref<9x128x128xbf16, #tpu.memory_space<vmem>>, vector<1x128x128xbf16>
    %67 = vector.shape_cast %66 : vector<1x128x128xbf16> to vector<128x128xbf16>
    %cst_37 = arith.constant dense<0.000000e+00> : vector<128x128xf32>
    %68 = tpu.matmul %65, %67, %cst_37 {dimension_numbers = #tpu.dot_dimension_numbers<[1], [0], [0], [1], [0, 0, 1, 1], [], []>} : vector<128x128xbf16>, vector<128x128xbf16>, vector<128x128xf32> -> vector<128x128xf32>
    %69 = arith.addf %63, %68 : vector<128x128xf32>
    %70 = vector.extract_strided_slice %50 {offsets = [1, 0, 0], sizes = [8, 16, 128], strides = [1, 1, 1]} : vector<10x18x128xbf16> to vector<8x16x128xbf16>
    %71 = vector.shape_cast %70 : vector<8x16x128xbf16> to vector<128x128xbf16>
    %c3 = arith.constant 3 : index
    %c0_38 = arith.constant 0 : index
    %c0_39 = arith.constant 0 : index
    %72 = vector.load %arg7[%c3, %c0_38, %c0_39] : memref<9x128x128xbf16, #tpu.memory_space<vmem>>, vector<1x128x128xbf16>
    %73 = vector.shape_cast %72 : vector<1x128x128xbf16> to vector<128x128xbf16>
    %cst_40 = arith.constant dense<0.000000e+00> : vector<128x128xf32>
    %74 = tpu.matmul %71, %73, %cst_40 {dimension_numbers = #tpu.dot_dimension_numbers<[1], [0], [0], [1], [0, 0, 1, 1], [], []>} : vector<128x128xbf16>, vector<128x128xbf16>, vector<128x128xf32> -> vector<128x128xf32>
    %75 = arith.addf %69, %74 : vector<128x128xf32>
    %76 = vector.extract_strided_slice %50 {offsets = [1, 1, 0], sizes = [8, 16, 128], strides = [1, 1, 1]} : vector<10x18x128xbf16> to vector<8x16x128xbf16>
    %77 = vector.shape_cast %76 : vector<8x16x128xbf16> to vector<128x128xbf16>
    %c4 = arith.constant 4 : index
    %c0_41 = arith.constant 0 : index
    %c0_42 = arith.constant 0 : index
    %78 = vector.load %arg7[%c4, %c0_41, %c0_42] : memref<9x128x128xbf16, #tpu.memory_space<vmem>>, vector<1x128x128xbf16>
    %79 = vector.shape_cast %78 : vector<1x128x128xbf16> to vector<128x128xbf16>
    %cst_43 = arith.constant dense<0.000000e+00> : vector<128x128xf32>
    %80 = tpu.matmul %77, %79, %cst_43 {dimension_numbers = #tpu.dot_dimension_numbers<[1], [0], [0], [1], [0, 0, 1, 1], [], []>} : vector<128x128xbf16>, vector<128x128xbf16>, vector<128x128xf32> -> vector<128x128xf32>
    %81 = arith.addf %75, %80 : vector<128x128xf32>
    %82 = vector.extract_strided_slice %50 {offsets = [1, 2, 0], sizes = [8, 16, 128], strides = [1, 1, 1]} : vector<10x18x128xbf16> to vector<8x16x128xbf16>
    %83 = vector.shape_cast %82 : vector<8x16x128xbf16> to vector<128x128xbf16>
    %c5 = arith.constant 5 : index
    %c0_44 = arith.constant 0 : index
    %c0_45 = arith.constant 0 : index
    %84 = vector.load %arg7[%c5, %c0_44, %c0_45] : memref<9x128x128xbf16, #tpu.memory_space<vmem>>, vector<1x128x128xbf16>
    %85 = vector.shape_cast %84 : vector<1x128x128xbf16> to vector<128x128xbf16>
    %cst_46 = arith.constant dense<0.000000e+00> : vector<128x128xf32>
    %86 = tpu.matmul %83, %85, %cst_46 {dimension_numbers = #tpu.dot_dimension_numbers<[1], [0], [0], [1], [0, 0, 1, 1], [], []>} : vector<128x128xbf16>, vector<128x128xbf16>, vector<128x128xf32> -> vector<128x128xf32>
    %87 = arith.addf %81, %86 : vector<128x128xf32>
    %88 = vector.extract_strided_slice %50 {offsets = [2, 0, 0], sizes = [8, 16, 128], strides = [1, 1, 1]} : vector<10x18x128xbf16> to vector<8x16x128xbf16>
    %89 = vector.shape_cast %88 : vector<8x16x128xbf16> to vector<128x128xbf16>
    %c6 = arith.constant 6 : index
    %c0_47 = arith.constant 0 : index
    %c0_48 = arith.constant 0 : index
    %90 = vector.load %arg7[%c6, %c0_47, %c0_48] : memref<9x128x128xbf16, #tpu.memory_space<vmem>>, vector<1x128x128xbf16>
    %91 = vector.shape_cast %90 : vector<1x128x128xbf16> to vector<128x128xbf16>
    %cst_49 = arith.constant dense<0.000000e+00> : vector<128x128xf32>
    %92 = tpu.matmul %89, %91, %cst_49 {dimension_numbers = #tpu.dot_dimension_numbers<[1], [0], [0], [1], [0, 0, 1, 1], [], []>} : vector<128x128xbf16>, vector<128x128xbf16>, vector<128x128xf32> -> vector<128x128xf32>
    %93 = arith.addf %87, %92 : vector<128x128xf32>
    %94 = vector.extract_strided_slice %50 {offsets = [2, 1, 0], sizes = [8, 16, 128], strides = [1, 1, 1]} : vector<10x18x128xbf16> to vector<8x16x128xbf16>
    %95 = vector.shape_cast %94 : vector<8x16x128xbf16> to vector<128x128xbf16>
    %c7 = arith.constant 7 : index
    %c0_50 = arith.constant 0 : index
    %c0_51 = arith.constant 0 : index
    %96 = vector.load %arg7[%c7, %c0_50, %c0_51] : memref<9x128x128xbf16, #tpu.memory_space<vmem>>, vector<1x128x128xbf16>
    %97 = vector.shape_cast %96 : vector<1x128x128xbf16> to vector<128x128xbf16>
    %cst_52 = arith.constant dense<0.000000e+00> : vector<128x128xf32>
    %98 = tpu.matmul %95, %97, %cst_52 {dimension_numbers = #tpu.dot_dimension_numbers<[1], [0], [0], [1], [0, 0, 1, 1], [], []>} : vector<128x128xbf16>, vector<128x128xbf16>, vector<128x128xf32> -> vector<128x128xf32>
    %99 = arith.addf %93, %98 : vector<128x128xf32>
    %100 = vector.extract_strided_slice %50 {offsets = [2, 2, 0], sizes = [8, 16, 128], strides = [1, 1, 1]} : vector<10x18x128xbf16> to vector<8x16x128xbf16>
    %101 = vector.shape_cast %100 : vector<8x16x128xbf16> to vector<128x128xbf16>
    %c8 = arith.constant 8 : index
    %c0_53 = arith.constant 0 : index
    %c0_54 = arith.constant 0 : index
    %102 = vector.load %arg7[%c8, %c0_53, %c0_54] : memref<9x128x128xbf16, #tpu.memory_space<vmem>>, vector<1x128x128xbf16>
    %103 = vector.shape_cast %102 : vector<1x128x128xbf16> to vector<128x128xbf16>
    %cst_55 = arith.constant dense<0.000000e+00> : vector<128x128xf32>
    %104 = tpu.matmul %101, %103, %cst_55 {dimension_numbers = #tpu.dot_dimension_numbers<[1], [0], [0], [1], [0, 0, 1, 1], [], []>} : vector<128x128xbf16>, vector<128x128xbf16>, vector<128x128xf32> -> vector<128x128xf32>
    %105 = arith.addf %99, %104 : vector<128x128xf32>
    %106 = vector.shape_cast %105 : vector<128x128xf32> to vector<1x8x16x128xf32>
    %c0_56 = arith.constant 0 : index
    %c0_57 = arith.constant 0 : index
    %c0_58 = arith.constant 0 : index
    %c0_59 = arith.constant 0 : index
    %107 = vector.load %arg8[%c0_56, %c0_57, %c0_58, %c0_59] : memref<1x8x16x128xf32, #tpu.memory_space<vmem>>, vector<1x8x16x128xf32>
    tpu.vector_store %arg8[%c0_56, %c0_57, %c0_58, %c0_59], %106 {strides = array<i32>} : memref<1x8x16x128xf32, #tpu.memory_space<vmem>>, vector<1x8x16x128xf32>,
    %cst_60 = arith.constant dense<0.000000e+00> : vector<128xf32>
    %108 = vector.multi_reduction <add>, %105, %cst_60 [0] : vector<128x128xf32> to vector<128xf32>
    %109 = vector.shape_cast %108 : vector<128xf32> to vector<1x128xf32>
    %110 = arith.mulf %105, %105 : vector<128x128xf32>
    %cst_61 = arith.constant dense<0.000000e+00> : vector<128xf32>
    %111 = vector.multi_reduction <add>, %110, %cst_61 [0] : vector<128x128xf32> to vector<128xf32>
    %112 = vector.shape_cast %111 : vector<128xf32> to vector<1x128xf32>
    %cst_62 = arith.constant 0.000000e+00 : f32
    %113 = vector.broadcast %cst_62 : f32 to vector<6x128xf32>
    %114 = tpu.concatenate %109, %112, %113 in 0 : vector<1x128xf32>, vector<1x128xf32>, vector<6x128xf32> -> vector<8x128xf32>
    %115 = vector.shape_cast %114 : vector<8x128xf32> to vector<1x1x8x128xf32>
    %c0_63 = arith.constant 0 : index
    %c0_64 = arith.constant 0 : index
    %c0_65 = arith.constant 0 : index
    %c0_66 = arith.constant 0 : index
    %116 = vector.load %arg9[%c0_63, %c0_64, %c0_65, %c0_66] : memref<1x1x8x128xf32, #tpu.memory_space<vmem>>, vector<1x1x8x128xf32>
    tpu.vector_store %arg9[%c0_63, %c0_64, %c0_65, %c0_66], %115 {strides = array<i32>} : memref<1x1x8x128xf32, #tpu.memory_space<vmem>>, vector<1x1x8x128xf32>,
    return
  }
  func.func @transform_0(%arg0: i32, %arg1: i32) -> (i32, i32, i32, i32) {
    %c0_i32 = arith.constant 0 : i32
    %c0_i32_0 = arith.constant 0 : i32
    %c0_i32_1 = arith.constant 0 : i32
    return %arg0, %arg1, %c0_i32, %c0_i32_0 : i32, i32, i32, i32
  }
  func.func @transform_1(%arg0: i32, %arg1: i32) -> (i32, i32, i32, i32) {
    %c8_i32 = arith.constant 8 : i32
    %0 = arith.muli %arg1, %c8_i32 : i32
    %c1_i32 = arith.constant 1 : i32
    %1 = arith.subi %0, %c1_i32 : i32
    %c0_i32 = arith.constant 0 : i32
    %2 = arith.maxsi %1, %c0_i32 : i32
    %c0_i32_0 = arith.constant 0 : i32
    %c0_i32_1 = arith.constant 0 : i32
    %c0_i32_2 = arith.constant 0 : i32
    return %arg0, %2, %c0_i32_0, %c0_i32_1 : i32, i32, i32, i32
  }
  func.func @transform_2(%arg0: i32, %arg1: i32) -> (i32, i32, i32, i32) {
    %c1_i32 = arith.constant 1 : i32
    %0 = arith.addi %arg1, %c1_i32 : i32
    %c8_i32 = arith.constant 8 : i32
    %1 = arith.muli %0, %c8_i32 : i32
    %c15_i32 = arith.constant 15 : i32
    %2 = arith.minsi %1, %c15_i32 : i32
    %c0_i32 = arith.constant 0 : i32
    %c0_i32_0 = arith.constant 0 : i32
    %c0_i32_1 = arith.constant 0 : i32
    return %arg0, %2, %c0_i32, %c0_i32_0 : i32, i32, i32, i32
  }
  func.func @transform_3(%arg0: i32, %arg1: i32) -> (i32, i32) {
    %c0_i32 = arith.constant 0 : i32
    %c0_i32_0 = arith.constant 0 : i32
    %c0_i32_1 = arith.constant 0 : i32
    return %c0_i32, %c0_i32_0 : i32, i32
  }
  func.func @transform_4(%arg0: i32, %arg1: i32) -> (i32, i32) {
    %c0_i32 = arith.constant 0 : i32
    %c0_i32_0 = arith.constant 0 : i32
    %c0_i32_1 = arith.constant 0 : i32
    return %c0_i32, %c0_i32_0 : i32, i32
  }
  func.func @transform_5(%arg0: i32, %arg1: i32) -> (i32, i32, i32) {
    %c0_i32 = arith.constant 0 : i32
    %c0_i32_0 = arith.constant 0 : i32
    %c0_i32_1 = arith.constant 0 : i32
    %c0_i32_2 = arith.constant 0 : i32
    return %c0_i32, %c0_i32_0, %c0_i32_1 : i32, i32, i32
  }
  func.func @transform_6(%arg0: i32, %arg1: i32) -> (i32, i32, i32, i32) {
    %c0_i32 = arith.constant 0 : i32
    %c0_i32_0 = arith.constant 0 : i32
    %c0_i32_1 = arith.constant 0 : i32
    return %arg0, %arg1, %c0_i32, %c0_i32_0 : i32, i32, i32, i32
  }
  func.func @transform_7(%arg0: i32, %arg1: i32) -> (i32, i32, i32, i32) {
    %c0_i32 = arith.constant 0 : i32
    %c0_i32_0 = arith.constant 0 : i32
    %c0_i32_1 = arith.constant 0 : i32
    return %arg0, %arg1, %c0_i32, %c0_i32_0 : i32, i32, i32, i32
  }
}

</mosaic_0001>

<llo_original>
// kernel: conv_block_forward.2
$region0: #{conv_block_forward.2}
  #allocation0 [shape = 'u32[]', space=smem, size = 0x4, offset = 0x4, fixed_abs, tag = 'smem constant byte address 0x4 - core index']
  #allocation1 [shape = 'u32[144,128]{1,0:T(1,128)}', space=vmem, size = 0x12000, scoped, tag = 'internal scratch']
  %s0 = inlined_call_operand.vmem [shape: f32[2,16,16,128], index: 0, kind: input, shape index: {}, may-alias: {0,1,2}]
  %s1 = inlined_call_operand.vmem [shape: f32[2,16,16,128], index: 1, kind: input, shape index: {}, may-alias: {0,1,2}]
  %s2 = inlined_call_operand.vmem [shape: f32[2,16,16,128], index: 2, kind: input, shape index: {}, may-alias: {0,1,2}]
  %s3 = inlined_call_operand.vmem [shape: f32[1,128], index: 3, kind: input, shape index: {}]
  %s4 = inlined_call_operand.vmem [shape: f32[1,128], index: 4, kind: input, shape index: {}]
  %s5 = inlined_call_operand.vmem [shape: bf16[9,128,128], index: 5, kind: input, shape index: {}]
  %s6 = inlined_call_operand.vmem [shape: f32[2,16,16,128], index: 6, kind: output, shape index: {0}]
  %s7 = inlined_call_operand.vmem [shape: f32[2,2,8,128], index: 7, kind: output, shape index: {1}]
  %8 = xla_tuple %s6, %s7
  %s9 = sld [smem:[#allocation0]]
  $region65: #{conv_block_forward.2} parent=0
    _
  %s11 = ssub.s32 1, %s9
  %s12 = scalar_select 0, %s11, %s9
  loop: start=0, step=1, limit=6
  $region2: #{conv_block_forward.2} parent=0 // loop_pre_header
    _
  $region3: #{conv_block_forward.2} parent=0 // loop_header
    %s14 = sphi 0, %s18
    %p15 = scmp.ge.s32.totalorder %s14, 6
    %s21 = sphi 0, %s33
    %s22 = sphi 0, %s29
    %s23 = sphi 0, %s21
    %s24 = sphi 0, %s22
    %s25 = sphi 0, %s23
    %s26 = sphi 0, %s24
    %s38 = sphi 0, %s40
    %s41 = sphi 0, %s38
    %s42 = sphi 0, %s41
    %s58 = sphi 0, %s42
    %s74 = sphi 0, %s76
    %s77 = sphi 0, %s74
    %s78 = sphi 0, %s77
    %s94 = sphi 0, %s78
    %s110 = sphi 0, %s112
    %s113 = sphi 0, %s110
    %s114 = sphi 0, %s113
    %s130 = sphi 0, %s114
    %s134 = sphi 0, %s134
    %s136 = sphi 0, %s134
    %s137 = sphi 0, %s136
    %s151 = sphi 0, %s137
    %s155 = sphi 0, %s155
    %s157 = sphi 0, %s155
    %s158 = sphi 0, %s157
    %s172 = sphi 0, %s158
    %s176 = sphi 0, %s176
    %s178 = sphi 0, %s176
    %s179 = sphi 0, %s178
    %s193 = sphi 0, %s179
    %s201 = sphi 0, %s203
    %s204 = sphi 0, %s201
    %s205 = sphi 0, %s204
    %s221 = sphi 0, %s205
    %s229 = sphi 0, %s231
    %s232 = sphi 0, %s229
    %s233 = sphi 0, %s232
    %s249 = sphi 0, %s233
  $region4: #{conv_block_forward.2} parent=0 // loop_header_branch
    %17 = sbr.rel (%p15) target = $region8
  $region5: #{conv_block_forward.2} parent=0 // loop_body
    %s19 = ssub.s32 %s14, 1
    %s20 = ssub.s32 %s14, 2
    %s27 = sadd.s32 1, %s22
    %p28 = scmp.ge.s32.totalorder %s27, 2
    %s29 = scalar_select %p28, 0, %s27
    %s30 = sadd.s32 1, %s21
    %s31 = scalar_select %p28, %s30, %s21
    %p32 = scmp.ge.s32.totalorder %s31, 2
    %s33 = scalar_select %p32, 0, %s31
    %s34 = ssub.s32 %s21, %s33
    %s35 = ssub.s32 %s22, %s29
    %s36 = sor.u32 %s34, %s35
    %p37 = scmp.eq.s32.totalorder %s36, 0
    %s39 = sadd.s32 %s38, 1
    %s40 = scalar_select %p37, %s38, %s39
    %p43 = pneg %p37
    %p44 = scmp.eq.s32.totalorder %s14, 3
    %p45 = por %p43, %p44
    %p46 = scmp.ne.s32.totalorder %s38, %s41
    %p47 = scmp.eq.s32.totalorder %s14, 0
    %p48 = por %p46, %p47
    %p49 = scmp.ne.s32.totalorder %s38, %s41
    %p50 = scmp.eq.s32.totalorder %s19, 3
    %p51 = por %p49, %p50
    %p52 = scmp.ne.s32.totalorder %s41, %s42
    %p53 = scmp.eq.s32.totalorder %s19, 0
    %p54 = por %p52, %p53
    %p55 = scmp.ne.s32.totalorder %s41, %s42
    %p56 = scmp.eq.s32.totalorder %s20, 3
    %p57 = por %p55, %p56
    %p59 = scmp.ne.s32.totalorder %s42, %s58
    %p60 = scmp.eq.s32.totalorder %s20, 0
    %p61 = por %p59, %p60
    %s62 = smul.u32 %s22, 8
    %s63 = ssub.s32 %s62, 1
    %p64 = scmp.gt.s32.totalorder %s63, 0
    %s65 = scalar_select %p64, %s63, 0
    %s66 = smul.u32 %s29, 8
    %s67 = ssub.s32 %s66, 1
    %p68 = scmp.gt.s32.totalorder %s67, 0
    %s69 = scalar_select %p68, %s67, 0
    %s70 = ssub.s32 %s21, %s33
    %s71 = ssub.s32 %s65, %s69
    %s72 = sor.u32 %s70, %s71
    %p73 = scmp.eq.s32.totalorder %s72, 0
    %s75 = sadd.s32 %s74, 1
    %s76 = scalar_select %p73, %s74, %s75
    %p79 = pneg %p73
    %p80 = scmp.eq.s32.totalorder %s14, 3
    %p81 = por %p79, %p80
    %p82 = scmp.ne.s32.totalorder %s74, %s77
    %p83 = scmp.eq.s32.totalorder %s14, 0
    %p84 = por %p82, %p83
    %p85 = scmp.ne.s32.totalorder %s74, %s77
    %p86 = scmp.eq.s32.totalorder %s19, 3
    %p87 = por %p85, %p86
    %p88 = scmp.ne.s32.totalorder %s77, %s78
    %p89 = scmp.eq.s32.totalorder %s19, 0
    %p90 = por %p88, %p89
    %p91 = scmp.ne.s32.totalorder %s77, %s78
    %p92 = scmp.eq.s32.totalorder %s20, 3
    %p93 = por %p91, %p92
    %p95 = scmp.ne.s32.totalorder %s78, %s94
    %p96 = scmp.eq.s32.totalorder %s20, 0
    %p97 = por %p95, %p96
    %s98 = sadd.s32 %s22, 1
    %s99 = smul.u32 %s98, 8
    %p100 = scmp.lt.s32.totalorder %s99, 15
    %s101 = scalar_select %p100, %s99, 15
    %s102 = sadd.s32 %s29, 1
    %s103 = smul.u32 %s102, 8
    %p104 = scmp.lt.s32.totalorder %s103, 15
    %s105 = scalar_select %p104, %s103, 15
    %s106 = ssub.s32 %s21, %s33
    %s107 = ssub.s32 %s101, %s105
    %s108 = sor.u32 %s106, %s107
    %p109 = scmp.eq.s32.totalorder %s108, 0
    %s111 = sadd.s32 %s110, 1
    %s112 = scalar_select %p109, %s110, %s111
    %p115 = pneg %p109
    %p116 = scmp.eq.s32.totalorder %s14, 3
    %p117 = por %p115, %p116
    %p118 = scmp.ne.s32.totalorder %s110, %s113
    %p119 = scmp.eq.s32.totalorder %s14, 0
    %p120 = por %p118, %p119
    %p121 = scmp.ne.s32.totalorder %s110, %s113
    %p122 = scmp.eq.s32.totalorder %s19, 3
    %p123 = por %p121, %p122
    %p124 = scmp.ne.s32.totalorder %s113, %s114
    %p125 = scmp.eq.s32.totalorder %s19, 0
    %p126 = por %p124, %p125
    %p127 = scmp.ne.s32.totalorder %s113, %s114
    %p128 = scmp.eq.s32.totalorder %s20, 3
    %p129 = por %p127, %p128
    %p131 = scmp.ne.s32.totalorder %s114, %s130
    %p132 = scmp.eq.s32.totalorder %s20, 0
    %p133 = por %p131, %p132
    %s135 = sadd.s32 %s134, 1
    %p138 = scmp.eq.s32.totalorder %s14, 3
    %p139 = scmp.ne.s32.totalorder %s134, %s136
    %p140 = scmp.eq.s32.totalorder %s14, 0
    %p141 = por %p139, %p140
    %p142 = scmp.ne.s32.totalorder %s134, %s136
    %p143 = scmp.eq.s32.totalorder %s19, 3
    %p144 = por %p142, %p143
    %p145 = scmp.ne.s32.totalorder %s136, %s137
    %p146 = scmp.eq.s32.totalorder %s19, 0
    %p147 = por %p145, %p146
    %p148 = scmp.ne.s32.totalorder %s136, %s137
    %p149 = scmp.eq.s32.totalorder %s20, 3
    %p150 = por %p148, %p149
    %p152 = scmp.ne.s32.totalorder %s137, %s151
    %p153 = scmp.eq.s32.totalorder %s20, 0
    %p154 = por %p152, %p153
    %s156 = sadd.s32 %s155, 1
    %p159 = scmp.eq.s32.totalorder %s14, 3
    %p160 = scmp.ne.s32.totalorder %s155, %s157
    %p161 = scmp.eq.s32.totalorder %s14, 0
    %p162 = por %p160, %p161
    %p163 = scmp.ne.s32.totalorder %s155, %s157
    %p164 = scmp.eq.s32.totalorder %s19, 3
    %p165 = por %p163, %p164
    %p166 = scmp.ne.s32.totalorder %s157, %s158
    %p167 = scmp.eq.s32.totalorder %s19, 0
    %p168 = por %p166, %p167
    %p169 = scmp.ne.s32.totalorder %s157, %s158
    %p170 = scmp.eq.s32.totalorder %s20, 3
    %p171 = por %p169, %p170
    %p173 = scmp.ne.s32.totalorder %s158, %s172
    %p174 = scmp.eq.s32.totalorder %s20, 0
    %p175 = por %p173, %p174
    %s177 = sadd.s32 %s176, 1
    %p180 = scmp.eq.s32.totalorder %s14, 3
    %p181 = scmp.ne.s32.totalorder %s176, %s178
    %p182 = scmp.eq.s32.totalorder %s14, 0
    %p183 = por %p181, %p182
    %p184 = scmp.ne.s32.totalorder %s176, %s178
    %p185 = scmp.eq.s32.totalorder %s19, 3
    %p186 = por %p184, %p185
    %p187 = scmp.ne.s32.totalorder %s178, %s179
    %p188 = scmp.eq.s32.totalorder %s19, 0
    %p189 = por %p187, %p188
    %p190 = scmp.ne.s32.totalorder %s178, %s179
    %p191 = scmp.eq.s32.totalorder %s20, 3
    %p192 = por %p190, %p191
    %p194 = scmp.ne.s32.totalorder %s179, %s193
    %p195 = scmp.eq.s32.totalorder %s20, 0
    %p196 = por %p194, %p195
    %s197 = ssub.s32 %s21, %s33
    %s198 = ssub.s32 %s22, %s29
    %s199 = sor.u32 %s197, %s198
    %p200 = scmp.eq.s32.totalorder %s199, 0
    %s202 = sadd.s32 %s201, 1
    %s203 = scalar_select %p200, %s201, %s202
    %p206 = pneg %p200
    %p207 = scmp.eq.s32.totalorder %s14, 3
    %p208 = por %p206, %p207
    %p209 = scmp.ne.s32.totalorder %s201, %s204
    %p210 = scmp.eq.s32.totalorder %s14, 0
    %p211 = por %p209, %p210
    %p212 = scmp.ne.s32.totalorder %s201, %s204
    %p213 = scmp.eq.s32.totalorder %s19, 3
    %p214 = por %p212, %p213
    %p215 = scmp.ne.s32.totalorder %s204, %s205
    %p216 = scmp.eq.s32.totalorder %s19, 0
    %p217 = por %p215, %p216
    %p218 = scmp.ne.s32.totalorder %s204, %s205
    %p219 = scmp.eq.s32.totalorder %s20, 3
    %p220 = por %p218, %p219
    %p222 = scmp.ne.s32.totalorder %s205, %s221
    %p223 = scmp.eq.s32.totalorder %s20, 0
    %p224 = por %p222, %p223
    %s225 = ssub.s32 %s21, %s33
    %s226 = ssub.s32 %s22, %s29
    %s227 = sor.u32 %s225, %s226
    %p228 = scmp.eq.s32.totalorder %s227, 0
    %s230 = sadd.s32 %s229, 1
    %s231 = scalar_select %p228, %s229, %s230
    %p234 = pneg %p228
    %p235 = scmp.eq.s32.totalorder %s14, 3
    %p236 = por %p234, %p235
    %p237 = scmp.ne.s32.totalorder %s229, %s232
    %p238 = scmp.eq.s32.totalorder %s14, 0
    %p239 = por %p237, %p238
    %p240 = scmp.ne.s32.totalorder %s229, %s232
    %p241 = scmp.eq.s32.totalorder %s19, 3
    %p242 = por %p240, %p241
    %p243 = scmp.ne.s32.totalorder %s232, %s233
    %p244 = scmp.eq.s32.totalorder %s19, 0
    %p245 = por %p243, %p244
    %p246 = scmp.ne.s32.totalorder %s232, %s233
    %p247 = scmp.eq.s32.totalorder %s20, 3
    %p248 = por %p246, %p247
    %p250 = scmp.ne.s32.totalorder %s233, %s249
    %p251 = scmp.eq.s32.totalorder %s20, 0
    %p252 = por %p250, %p251
    %p253 = scmp.le.s32.totalorder 1, %s14
    %p254 = scmp.lt.s32.totalorder %s14, 5
    %p255 = pnand %p253, %p254
    %p256 = pneg %p255
    // Predicated region
    $region9: #{conv_block_forward.2} parent=5 // pred_check
      _
    $region10: #{conv_block_forward.2} parent=5 // pred_check_branch
      %258 = sbr.rel (%p255) target = $region12
    $region11: #{conv_block_forward.2} parent=5 // pred_region
      %s259 = ssub.s32 %s14, 1
      // Predicated region
      $region13: #{conv_block_forward.2} parent=11 // pred_check
        %p260 = pneg %p147
      $region14: #{conv_block_forward.2} parent=11 // pred_check_branch
        %262 = sbr.rel (%p260) target = $region16
      $region15: #{conv_block_forward.2} parent=11 // pred_region
        _
      $region16: #{conv_block_forward.2} parent=11 // pred_fallthru
        _
      // Predicated region
      $region17: #{conv_block_forward.2} parent=11 // pred_check
        %p263 = pneg %p168
      $region18: #{conv_block_forward.2} parent=11 // pred_check_branch
        %265 = sbr.rel (%p263) target = $region20
      $region19: #{conv_block_forward.2} parent=11 // pred_region
        _
      $region20: #{conv_block_forward.2} parent=11 // pred_fallthru
        _
      // Predicated region
      $region21: #{conv_block_forward.2} parent=11 // pred_check
        %p266 = pneg %p189
      $region22: #{conv_block_forward.2} parent=11 // pred_check_branch
        %268 = sbr.rel (%p266) target = $region24
      $region23: #{conv_block_forward.2} parent=11 // pred_region
        _
      $region24: #{conv_block_forward.2} parent=11 // pred_fallthru
        _
    $region12: #{conv_block_forward.2} parent=5 // pred_fallthru
      _
    %p269 = scmp.lt.s32.totalorder %s14, 4
    // Predicated region
    $region25: #{conv_block_forward.2} parent=5 // pred_check
      %p270 = pneg %p269
    $region26: #{conv_block_forward.2} parent=5 // pred_check_branch
      %272 = sbr.rel (%p270) target = $region28
    $region27: #{conv_block_forward.2} parent=5 // pred_region
      // Predicated region
      $region29: #{conv_block_forward.2} parent=27 // pred_check
        %p273 = pneg %p48
      $region30: #{conv_block_forward.2} parent=27 // pred_check_branch
        %275 = sbr.rel (%p273) target = $region32
      $region31: #{conv_block_forward.2} parent=27 // pred_region
        %s276 = smul.u32 8, %s22
        %p277 = scmp.lt.s32.totalorder %s21, 1
        %s278 = scalar_select %p277, %s21, 1
        %p279 = scmp.lt.s32.totalorder %s276, 15
        %s280 = scalar_select %p279, %s276, 15
        %s281 = smul.addr %s280, 2
        %s282 = smul.addr %s278, 32
        %s283 = sadd.s32 %s281, %s282
        %s284 = smul.addr %s283, 8
        %s285 = scalar_lea.vmem %s0, %s284
        %s286 = smul.u32 8, %s22
      $region32: #{conv_block_forward.2} parent=27 // pred_fallthru
        _
      // Predicated region
      $region33: #{conv_block_forward.2} parent=27 // pred_check
        %p287 = pneg %p84
      $region34: #{conv_block_forward.2} parent=27 // pred_check_branch
        %289 = sbr.rel (%p287) target = $region36
      $region35: #{conv_block_forward.2} parent=27 // pred_region
        %s290 = smul.u32 %s22, 8
        %s291 = ssub.s32 %s290, 1
        %p292 = scmp.gt.s32.totalorder %s291, 0
        %s293 = scalar_select %p292, %s291, 0
        %p294 = scmp.lt.s32.totalorder %s21, 1
        %s295 = scalar_select %p294, %s21, 1
        %p296 = scmp.lt.s32.totalorder %s293, 15
        %s297 = scalar_select %p296, %s293, 15
        %s298 = smul.addr %s297, 2
        %s299 = smul.addr %s295, 32
        %s300 = sadd.s32 %s298, %s299
        %s301 = smul.addr %s300, 8
        %s302 = scalar_lea.vmem %s1, %s301
        %s303 = smul.u32 %s22, 8
        %s304 = ssub.s32 %s303, 1
        %p305 = scmp.gt.s32.totalorder %s304, 0
        %s306 = scalar_select %p305, %s304, 0
      $region36: #{conv_block_forward.2} parent=27 // pred_fallthru
        _
      // Predicated region
      $region37: #{conv_block_forward.2} parent=27 // pred_check
        %p307 = pneg %p120
      $region38: #{conv_block_forward.2} parent=27 // pred_check_branch
        %309 = sbr.rel (%p307) target = $region40
      $region39: #{conv_block_forward.2} parent=27 // pred_region
        %s310 = sadd.s32 %s22, 1
        %s311 = smul.u32 %s310, 8
        %p312 = scmp.lt.s32.totalorder %s311, 15
        %s313 = scalar_select %p312, %s311, 15
        %p314 = scmp.lt.s32.totalorder %s21, 1
        %s315 = scalar_select %p314, %s21, 1
        %p316 = scmp.lt.s32.totalorder %s313, 15
        %s317 = scalar_select %p316, %s313, 15
        %s318 = smul.addr %s317, 2
        %s319 = smul.addr %s315, 32
        %s320 = sadd.s32 %s318, %s319
        %s321 = smul.addr %s320, 8
        %s322 = scalar_lea.vmem %s2, %s321
        %s323 = sadd.s32 %s22, 1
        %s324 = smul.u32 %s323, 8
        %p325 = scmp.lt.s32.totalorder %s324, 15
        %s326 = scalar_select %p325, %s324, 15
      $region40: #{conv_block_forward.2} parent=27 // pred_fallthru
        _
    $region28: #{conv_block_forward.2} parent=5 // pred_fallthru
      _
    %p327 = scmp.le.s32.totalorder 1, %s14
    %p328 = scmp.lt.s32.totalorder %s14, 5
    %p329 = pnand %p327, %p328
    %p330 = pneg %p329
    // Predicated region
    $region41: #{conv_block_forward.2} parent=5 // pred_check
      _
    $region42: #{conv_block_forward.2} parent=5 // pred_check_branch
      %332 = sbr.rel (%p329) target = $region44
    $region43: #{conv_block_forward.2} parent=5 // pred_region
      %s333 = ssub.s32 %s14, 1
      %s334 = smul.u32 8, %s24
      %p335 = scmp.lt.s32.totalorder %s23, 1
      %s336 = scalar_select %p335, %s23, 1
      %p337 = scmp.lt.s32.totalorder %s334, 15
      %s338 = scalar_select %p337, %s334, 15
      %s339 = smul.addr %s338, 2
      %s340 = smul.addr %s336, 32
      %s341 = sadd.s32 %s339, %s340
      %s342 = smul.addr %s341, 8
      %s343 = scalar_lea.vmem %s0, %s342
      %p344 = pneg %p54
      %p345 = pneg %p51
      %s346 = smul.u32 %s24, 8
      %s347 = ssub.s32 %s346, 1
      %p348 = scmp.gt.s32.totalorder %s347, 0
      %s349 = scalar_select %p348, %s347, 0
      %p350 = scmp.lt.s32.totalorder %s23, 1
      %s351 = scalar_select %p350, %s23, 1
      %p352 = scmp.lt.s32.totalorder %s349, 15
      %s353 = scalar_select %p352, %s349, 15
      %s354 = smul.addr %s353, 2
      %s355 = smul.addr %s351, 32
      %s356 = sadd.s32 %s354, %s355
      %s357 = smul.addr %s356, 8
      %s358 = scalar_lea.vmem %s1, %s357
      %p359 = pneg %p90
      %p360 = pneg %p87
      %s361 = sadd.s32 %s24, 1
      %s362 = smul.u32 %s361, 8
      %p363 = scmp.lt.s32.totalorder %s362, 15
      %s364 = scalar_select %p363, %s362, 15
      %p365 = scmp.lt.s32.totalorder %s23, 1
      %s366 = scalar_select %p365, %s23, 1
      %p367 = scmp.lt.s32.totalorder %s364, 15
      %s368 = scalar_select %p367, %s364, 15
      %s369 = smul.addr %s368, 2
      %s370 = smul.addr %s366, 32
      %s371 = sadd.s32 %s369, %s370
      %s372 = smul.addr %s371, 8
      %s373 = scalar_lea.vmem %s2, %s372
      %p374 = pneg %p126
      %p375 = pneg %p123
      %p376 = pneg %p147
      %p377 = pneg %p144
      %p378 = pneg %p168
      %p379 = pneg %p165
      %p380 = pneg %p189
      %p381 = pneg %p186
      %p382 = pneg %p217
      %p383 = pneg %p214
      %s384 = smul.u32 8, %s24
      %p385 = scmp.lt.s32.totalorder %s23, 1
      %s386 = scalar_select %p385, %s23, 1
      %p387 = scmp.lt.s32.totalorder %s384, 15
      %s388 = scalar_select %p387, %s384, 15
      %s389 = smul.addr %s388, 2
      %s390 = smul.addr %s386, 32
      %s391 = sadd.s32 %s389, %s390
      %s392 = smul.addr %s391, 8
      %s393 = scalar_lea.vmem %s6, %s392
      %p394 = pneg %p245
      %p395 = pneg %p242
      %p396 = scmp.lt.s32.totalorder %s23, 1
      %s397 = scalar_select %p396, %s23, 1
      %p398 = scmp.lt.s32.totalorder %s24, 1
      %s399 = scalar_select %p398, %s24, 1
      %s400 = smul.addr %s397, 2
      %s401 = sadd.s32 %s399, %s400
      %s402 = smul.addr %s401, 8
      %s403 = scalar_lea.vmem %s7, %s402
      %s404 = smul.u32 8, %s24
      %p405 = scmp.lt.s32.totalorder %s23, 1
      %s406 = scalar_select %p405, %s23, 1
      %p407 = scmp.lt.s32.totalorder %s404, 15
      %s408 = scalar_select %p407, %s404, 15
      %s409 = smul.addr %s408, 2
      %s410 = smul.addr %s406, 32
      %s411 = sadd.s32 %s409, %s410
      %s412 = smul.addr %s411, 8
      %s413 = scalar_lea.vmem %s0, %s412
      %s414 = smul.u32 8, %s24
      %s415 = smul.u32 %s24, 8
      %s416 = ssub.s32 %s415, 1
      %p417 = scmp.gt.s32.totalorder %s416, 0
      %s418 = scalar_select %p417, %s416, 0
      %p419 = scmp.lt.s32.totalorder %s23, 1
      %s420 = scalar_select %p419, %s23, 1
      %p421 = scmp.lt.s32.totalorder %s418, 15
      %s422 = scalar_select %p421, %s418, 15
      %s423 = smul.addr %s422, 2
      %s424 = smul.addr %s420, 32
      %s425 = sadd.s32 %s423, %s424
      %s426 = smul.addr %s425, 8
      %s427 = scalar_lea.vmem %s1, %s426
      %s428 = smul.u32 %s24, 8
      %s429 = ssub.s32 %s428, 1
      %p430 = scmp.gt.s32.totalorder %s429, 0
      %s431 = scalar_select %p430, %s429, 0
      %s432 = sadd.s32 %s24, 1
      %s433 = smul.u32 %s432, 8
      %p434 = scmp.lt.s32.totalorder %s433, 15
      %s435 = scalar_select %p434, %s433, 15
      %p436 = scmp.lt.s32.totalorder %s23, 1
      %s437 = scalar_select %p436, %s23, 1
      %p438 = scmp.lt.s32.totalorder %s435, 15
      %s439 = scalar_select %p438, %s435, 15
      %s440 = smul.addr %s439, 2
      %s441 = smul.addr %s437, 32
      %s442 = sadd.s32 %s440, %s441
      %s443 = smul.addr %s442, 8
      %s444 = scalar_lea.vmem %s2, %s443
      %s445 = sadd.s32 %s24, 1
      %s446 = smul.u32 %s445, 8
      %p447 = scmp.lt.s32.totalorder %s446, 15
      %s448 = scalar_select %p447, %s446, 15
      %s449 = smul.u32 8, %s24
      %p450 = scmp.lt.s32.totalorder %s23, 1
      %s451 = scalar_select %p450, %s23, 1
      %p452 = scmp.lt.s32.totalorder %s449, 15
      %s453 = scalar_select %p452, %s449, 15
      %s454 = smul.addr %s453, 2
      %s455 = smul.addr %s451, 32
      %s456 = sadd.s32 %s454, %s455
      %s457 = smul.addr %s456, 8
      %s458 = scalar_lea.vmem %s6, %s457
      %s459 = smul.u32 8, %s24
      %p460 = scmp.lt.s32.totalorder %s23, 1
      %s461 = scalar_select %p460, %s23, 1
      %p462 = scmp.lt.s32.totalorder %s24, 1
      %s463 = scalar_select %p462, %s24, 1
      %s464 = smul.addr %s461, 2
      %s465 = sadd.s32 %s463, %s464
      %s466 = smul.addr %s465, 8
      %s467 = scalar_lea.vmem %s7, %s466
      %p469 = scmp.gt.s32.totalorder %s24, 0
      %v470 = vld [vmem:[%s427] sm:$0xff]
      %v471 = vld [vmem:[%s427 + $0x8] sm:$0xff]
      %s472 = scalar_select %p469, 1, 0
      %v473 = vstv %s472
      %vm474 = vcmp.eq.s32.totalorder %v473, 1
      %v475 = vsel %vm474, %v470, 0.0
      %v476 = vsel %vm474, %v471, 0.0
      %p477 = scmp.lt.s32.totalorder %s24, 1
      %v478 = vld [vmem:[%s444] sm:$0xff]
      %v479 = vld [vmem:[%s444 + $0x8] sm:$0xff]
      %s480 = scalar_select %p477, 1, 0
      %v481 = vstv %s480
      %vm482 = vcmp.eq.s32.totalorder %v481, 1
      %v483 = vsel %vm482, %v478, 0.0
      %v484 = vsel %vm482, %v479, 0.0
      %v485 = vld [vmem:[%s413] sm:$0xff]
      %v486 = vld [vmem:[%s413 + $0x8] sm:$0xff]
      %v487 = vld [vmem:[%s413 + $0x10] sm:$0xff]
      %v488 = vld [vmem:[%s413 + $0x18] sm:$0xff]
      %v489 = vld [vmem:[%s413 + $0x20] sm:$0xff]
      %v490 = vld [vmem:[%s413 + $0x28] sm:$0xff]
      %v491 = vld [vmem:[%s413 + $0x30] sm:$0xff]
      %v492 = vld [vmem:[%s413 + $0x38] sm:$0xff]
      %v493 = vld [vmem:[%s413 + $0x40] sm:$0xff]
      %v494 = vld [vmem:[%s413 + $0x48] sm:$0xff]
      %v495 = vld [vmem:[%s413 + $0x50] sm:$0xff]
      %v496 = vld [vmem:[%s413 + $0x58] sm:$0xff]
      %v497 = vld [vmem:[%s413 + $0x60] sm:$0xff]
      %v498 = vld [vmem:[%s413 + $0x68] sm:$0xff]
      %v499 = vld [vmem:[%s413 + $0x70] sm:$0xff]
      %v500 = vld [vmem:[%s413 + $0x78] sm:$0xff]
      %vm521 = vcmask 1040384
      %v522 = vrot.slane %v475, 7
      %v523 = vrot.slane %v476, 7
      %v524 = vsel %vm521, %v522, %v523
      %v525 = vrot.slane %v485, 7
      %v526 = vrot.slane %v486, 7
      %v527 = vsel %vm521, %v525, %v526
      %v528 = vrot.slane %v487, 7
      %v529 = vrot.slane %v488, 7
      %v530 = vsel %vm521, %v528, %v529
      %v531 = vrot.slane %v489, 7
      %v532 = vrot.slane %v490, 7
      %v533 = vsel %vm521, %v531, %v532
      %v534 = vrot.slane %v491, 7
      %v535 = vrot.slane %v492, 7
      %v536 = vsel %vm521, %v534, %v535
      %v537 = vrot.slane %v493, 7
      %v538 = vrot.slane %v494, 7
      %v539 = vsel %vm521, %v537, %v538
      %v540 = vrot.slane %v495, 7
      %v541 = vrot.slane %v496, 7
      %v542 = vsel %vm521, %v540, %v541
      %v543 = vrot.slane %v497, 7
      %v544 = vrot.slane %v498, 7
      %v545 = vsel %vm521, %v543, %v544
      %v546 = vrot.slane %v499, 7
      %v547 = vrot.slane %v500, 7
      %v548 = vsel %vm521, %v546, %v547
      %v549 = vrot.slane %v483, 7
      %v550 = vrot.slane %v484, 7
      %v551 = vsel %vm521, %v549, %v550
      %v582 = vsel %vm521, 0.0, %v522
      %v583 = vsel %vm521, 0.0, %v525
      %v584 = vsel %vm521, 0.0, %v528
      %v585 = vsel %vm521, 0.0, %v531
      %v586 = vsel %vm521, 0.0, %v534
      %v587 = vsel %vm521, 0.0, %v537
      %v588 = vsel %vm521, 0.0, %v540
      %v589 = vsel %vm521, 0.0, %v543
      %v590 = vsel %vm521, 0.0, %v546
      %v591 = vsel %vm521, 0.0, %v549
      %v592 = vsel %vm521, %v523, 0.0
      %v593 = vsel %vm521, %v526, 0.0
      %v594 = vsel %vm521, %v529, 0.0
      %v595 = vsel %vm521, %v532, 0.0
      %v596 = vsel %vm521, %v535, 0.0
      %v597 = vsel %vm521, %v538, 0.0
      %v598 = vsel %vm521, %v541, 0.0
      %v599 = vsel %vm521, %v544, 0.0
      %v600 = vsel %vm521, %v547, 0.0
      %v601 = vsel %vm521, %v550, 0.0
      %v602 = vpack.c.bf16 %v524, %v582
      %v603 = vpack.c.bf16 %v592, %v592
      %v604 = vpack.c.bf16 %v527, %v583
      %v605 = vpack.c.bf16 %v593, %v593
      %v606 = vpack.c.bf16 %v530, %v584
      %v607 = vpack.c.bf16 %v594, %v594
      %v608 = vpack.c.bf16 %v533, %v585
      %v609 = vpack.c.bf16 %v595, %v595
      %v610 = vpack.c.bf16 %v536, %v586
      %v611 = vpack.c.bf16 %v596, %v596
      %v612 = vpack.c.bf16 %v539, %v587
      %v613 = vpack.c.bf16 %v597, %v597
      %v614 = vpack.c.bf16 %v542, %v588
      %v615 = vpack.c.bf16 %v598, %v598
      %v616 = vpack.c.bf16 %v545, %v589
      %v617 = vpack.c.bf16 %v599, %v599
      %v618 = vpack.c.bf16 %v548, %v590
      %v619 = vpack.c.bf16 %v600, %v600
      %v620 = vpack.c.bf16 %v551, %v591
      %v621 = vpack.c.bf16 %v601, %v601
      %v622 = vld [vmem:[%s5] sm:$0xf]
      %v623 = vld [vmem:[%s5 + $0x4] sm:$0xf]
      %v624 = vld [vmem:[%s5 + $0x8] sm:$0xf]
      %v625 = vld [vmem:[%s5 + $0xc] sm:$0xf]
      %v626 = vld [vmem:[%s5 + $0x10] sm:$0xf]
      %v627 = vld [vmem:[%s5 + $0x14] sm:$0xf]
      %v628 = vld [vmem:[%s5 + $0x18] sm:$0xf]
      %v629 = vld [vmem:[%s5 + $0x1c] sm:$0xf]
      %v630 = vld [vmem:[%s5 + $0x20] sm:$0xf]
      %v631 = vld [vmem:[%s5 + $0x24] sm:$0xf]
      %v632 = vld [vmem:[%s5 + $0x28] sm:$0xf]
      %v633 = vld [vmem:[%s5 + $0x2c] sm:$0xf]
      %v634 = vld [vmem:[%s5 + $0x30] sm:$0xf]
      %v635 = vld [vmem:[%s5 + $0x34] sm:$0xf]
      %v636 = vld [vmem:[%s5 + $0x38] sm:$0xf]
      %v637 = vld [vmem:[%s5 + $0x3c] sm:$0xf]
      %vm638 = vsmask.f32 7424
      %v640 = vshrl.u32 %v602, 16
      %v642 = vshll.u32 %v602, 16
      %v644 = vrot.slane %v642, 1
      %v645 = vor.u32 %v640, %v644
      %v647 = vshll.u32 %v603, 16
      %v649 = vrot.slane %v647, 1
      %v650 = vsel %vm638, %v645, %v649
      %v652 = vshrl.u32 %v604, 16
      %v654 = vshll.u32 %v604, 16
      %v656 = vrot.slane %v654, 1
      %v657 = vor.u32 %v652, %v656
      %v659 = vshll.u32 %v605, 16
      %v661 = vrot.slane %v659, 1
      %v662 = vsel %vm638, %v657, %v661
      %v664 = vshrl.u32 %v606, 16
      %v666 = vshll.u32 %v606, 16
      %v668 = vrot.slane %v666, 1
      %v669 = vor.u32 %v664, %v668
      %v671 = vshll.u32 %v607, 16
      %v673 = vrot.slane %v671, 1
      %v674 = vsel %vm638, %v669, %v673
      %v676 = vshrl.u32 %v608, 16
      %v678 = vshll.u32 %v608, 16
      %v680 = vrot.slane %v678, 1
      %v681 = vor.u32 %v676, %v680
      %v683 = vshll.u32 %v609, 16
      %v685 = vrot.slane %v683, 1
      %v686 = vsel %vm638, %v681, %v685
      %v688 = vshrl.u32 %v610, 16
      %v690 = vshll.u32 %v610, 16
      %v692 = vrot.slane %v690, 1
      %v693 = vor.u32 %v688, %v692
      %v695 = vshll.u32 %v611, 16
      %v697 = vrot.slane %v695, 1
      %v698 = vsel %vm638, %v693, %v697
      %v700 = vshrl.u32 %v612, 16
      %v702 = vshll.u32 %v612, 16
      %v704 = vrot.slane %v702, 1
      %v705 = vor.u32 %v700, %v704
      %v707 = vshll.u32 %v613, 16
      %v709 = vrot.slane %v707, 1
      %v710 = vsel %vm638, %v705, %v709
      %v712 = vshrl.u32 %v614, 16
      %v714 = vshll.u32 %v614, 16
      %v716 = vrot.slane %v714, 1
      %v717 = vor.u32 %v712, %v716
      %v719 = vshll.u32 %v615, 16
      %v721 = vrot.slane %v719, 1
      %v722 = vsel %vm638, %v717, %v721
      %v724 = vshrl.u32 %v616, 16
      %v726 = vshll.u32 %v616, 16
      %v728 = vrot.slane %v726, 1
      %v729 = vor.u32 %v724, %v728
      %v731 = vshll.u32 %v617, 16
      %v733 = vrot.slane %v731, 1
      %v734 = vsel %vm638, %v729, %v733
      %s743 = scalar_lea.vmem %s5, 64
      %v744 = vld [vmem:[%s743] sm:$0xf]
      %v745 = vld [vmem:[%s743 + $0x4] sm:$0xf]
      %v746 = vld [vmem:[%s743 + $0x8] sm:$0xf]
      %v747 = vld [vmem:[%s743 + $0xc] sm:$0xf]
      %v748 = vld [vmem:[%s743 + $0x10] sm:$0xf]
      %v749 = vld [vmem:[%s743 + $0x14] sm:$0xf]
      %v750 = vld [vmem:[%s743 + $0x18] sm:$0xf]
      %v751 = vld [vmem:[%s743 + $0x1c] sm:$0xf]
      %v752 = vld [vmem:[%s743 + $0x20] sm:$0xf]
      %v753 = vld [vmem:[%s743 + $0x24] sm:$0xf]
      %v754 = vld [vmem:[%s743 + $0x28] sm:$0xf]
      %v755 = vld [vmem:[%s743 + $0x2c] sm:$0xf]
      %v756 = vld [vmem:[%s743 + $0x30] sm:$0xf]
      %v757 = vld [vmem:[%s743 + $0x34] sm:$0xf]
      %v758 = vld [vmem:[%s743 + $0x38] sm:$0xf]
      %v759 = vld [vmem:[%s743 + $0x3c] sm:$0xf]
      %v776 = vunpack.c.l.b16 %v744
      %v777 = vunpack.c.l.b16 %v745
      %v778 = vunpack.c.l.b16 %v746
      %v779 = vunpack.c.l.b16 %v747
      %v780 = vunpack.c.l.b16 %v748
      %v781 = vunpack.c.l.b16 %v749
      %v782 = vunpack.c.l.b16 %v750
      %v783 = vunpack.c.l.b16 %v751
      %v784 = vunpack.c.l.b16 %v752
      %v785 = vunpack.c.l.b16 %v753
      %v786 = vunpack.c.l.b16 %v754
      %v787 = vunpack.c.l.b16 %v755
      %v788 = vunpack.c.l.b16 %v756
      %v789 = vunpack.c.l.b16 %v757
      %v790 = vunpack.c.l.b16 %v758
      %v791 = vunpack.c.l.b16 %v759
      %v792 = vpack.c.b16 %v777, %v776
      %v793 = vpack.c.b16 %v779, %v778
      %v794 = vpack.c.b16 %v781, %v780
      %v795 = vpack.c.b16 %v783, %v782
      %v796 = vpack.c.b16 %v785, %v784
      %v797 = vpack.c.b16 %v787, %v786
      %v798 = vpack.c.b16 %v789, %v788
      %v799 = vpack.c.b16 %v791, %v790
      %808 = vmatprep.subr.bf16.mxu0 0
      %809 = vmatpush1.bf16.msra.mxu0 %v792
      %810 = vmatprep.subr.bf16.mxu0 0
      %811 = vmatpush1.bf16.msra.mxu0 %v793
      %812 = vmatprep.subr.bf16.mxu0 0
      %813 = vmatpush1.bf16.msra.mxu0 %v794
      %814 = vmatprep.subr.bf16.mxu0 0
      %815 = vmatpush1.bf16.msra.mxu0 %v795
      %816 = vmatprep.subr.bf16.mxu0 0
      %817 = vmatpush1.bf16.msra.mxu0 %v796
      %818 = vmatprep.subr.bf16.mxu0 0
      %819 = vmatpush1.bf16.msra.mxu0 %v797
      %820 = vmatprep.subr.bf16.mxu0 0
      %821 = vmatpush1.bf16.msra.mxu0 %v798
      %822 = vmatprep.subr.bf16.mxu0 0
      %823 = vmatpush1.bf16.msra.mxu0 %v799
      %824 = vmatprep.subr.bf16.mxu0 0
      %825 = vmatpush1.bf16.msra.mxu0 0
      %826 = vmatprep.subr.bf16.mxu0 0
      %827 = vmatpush1.bf16.msra.mxu0 0
      %828 = vmatprep.subr.bf16.mxu0 0
      %829 = vmatpush1.bf16.msra.mxu0 0
      %830 = vmatprep.subr.bf16.mxu0 0
      %831 = vmatpush1.bf16.msra.mxu0 0
      %832 = vmatprep.subr.bf16.mxu0 0
      %833 = vmatpush1.bf16.msra.mxu0 0
      %834 = vmatprep.subr.bf16.mxu0 0
      %835 = vmatpush1.bf16.msra.mxu0 0
      %836 = vmatprep.subr.bf16.mxu0 0
      %837 = vmatpush1.bf16.msra.mxu0 0
      %838 = vmatprep.subr.bf16.mxu0 0
      %839 = vmatpush1.bf16.msra.mxu0 0
      %840 = vmatprep.mubr.bf16.mxu0 0
      %841 = vmatmul.mubr.bf16.gmra.mrb[0].mxu0 %v650
      %v842 = vpop.f32.mrb[0].mxu0
      %v843 = vadd.f32 0.0, %v842
      %v844 = vpop.f32.mrb[0].mxu0
      %v845 = vpop.f32.mrb[0].mxu0
      %v846 = vadd.f32 0.0, %v845
      %v847 = vpop.f32.mrb[0].mxu0
      %848 = vmatprep.mubr.bf16.mxu0 0
      %849 = vmatmul.mubr.bf16.gmra.mrb[0].mxu0 %v662
      %v850 = vpop.f32.mrb[0].mxu0
      %v851 = vadd.f32 0.0, %v850
      %v852 = vpop.f32.mrb[0].mxu0
      %v853 = vpop.f32.mrb[0].mxu0
      %v854 = vadd.f32 0.0, %v853
      %v855 = vpop.f32.mrb[0].mxu0
      %856 = vmatprep.mubr.bf16.mxu0 0
      %857 = vmatmul.mubr.bf16.gmra.mrb[0].mxu0 %v674
      %v858 = vpop.f32.mrb[0].mxu0
      %v859 = vadd.f32 0.0, %v858
      %v860 = vpop.f32.mrb[0].mxu0
      %v861 = vpop.f32.mrb[0].mxu0
      %v862 = vadd.f32 0.0, %v861
      %v863 = vpop.f32.mrb[0].mxu0
      %864 = vmatprep.mubr.bf16.mxu0 0
      %865 = vmatmul.mubr.bf16.gmra.mrb[0].mxu0 %v686
      %v866 = vpop.f32.mrb[0].mxu0
      %v867 = vadd.f32 0.0, %v866
      %v868 = vpop.f32.mrb[0].mxu0
      %v869 = vpop.f32.mrb[0].mxu0
      %v870 = vadd.f32 0.0, %v869
      %v871 = vpop.f32.mrb[0].mxu0
      %872 = vmatprep.mubr.bf16.mxu0 0
      %873 = vmatmul.mubr.bf16.gmra.mrb[0].mxu0 %v698
      %v874 = vpop.f32.mrb[0].mxu0
      %v875 = vadd.f32 0.0, %v874
      %v876 = vpop.f32.mrb[0].mxu0
      %v877 = vpop.f32.mrb[0].mxu0
      %v878 = vadd.f32 0.0, %v877
      %v879 = vpop.f32.mrb[0].mxu0
      %880 = vmatprep.mubr.bf16.mxu0 0
      %881 = vmatmul.mubr.bf16.gmra.mrb[0].mxu0 %v710
      %v882 = vpop.f32.mrb[0].mxu0
      %v883 = vadd.f32 0.0, %v882
      %v884 = vpop.f32.mrb[0].mxu0
      %v885 = vpop.f32.mrb[0].mxu0
      %v886 = vadd.f32 0.0, %v885
      %v887 = vpop.f32.mrb[0].mxu0
      %888 = vmatprep.mubr.bf16.mxu0 0
      %889 = vmatmul.mubr.bf16.gmra.mrb[0].mxu0 %v722
      %v890 = vpop.f32.mrb[0].mxu0
      %v891 = vadd.f32 0.0, %v890
      %v892 = vpop.f32.mrb[0].mxu0
      %v893 = vpop.f32.mrb[0].mxu0
      %v894 = vadd.f32 0.0, %v893
      %v895 = vpop.f32.mrb[0].mxu0
      %896 = vmatprep.mubr.bf16.mxu0 0
      %897 = vmatmul.mubr.bf16.gmra.mrb[0].mxu0 %v734
      %v898 = vpop.f32.mrb[0].mxu0
      %v899 = vadd.f32 0.0, %v898
      %v900 = vpop.f32.mrb[0].mxu0
      %v901 = vpop.f32.mrb[0].mxu0
      %v902 = vadd.f32 0.0, %v901
      %v903 = vpop.f32.mrb[0].mxu0
      %904 = vdwg.mxu0
      %v921 = vunpack.c.l.b16 %v622
      %v922 = vunpack.c.l.b16 %v623
      %v923 = vunpack.c.l.b16 %v624
      %v924 = vunpack.c.l.b16 %v625
      %v925 = vunpack.c.l.b16 %v626
      %v926 = vunpack.c.l.b16 %v627
      %v927 = vunpack.c.l.b16 %v628
      %v928 = vunpack.c.l.b16 %v629
      %v929 = vunpack.c.l.b16 %v630
      %v930 = vunpack.c.l.b16 %v631
      %v931 = vunpack.c.l.b16 %v632
      %v932 = vunpack.c.l.b16 %v633
      %v933 = vunpack.c.l.b16 %v634
      %v934 = vunpack.c.l.b16 %v635
      %v935 = vunpack.c.l.b16 %v636
      %v936 = vunpack.c.l.b16 %v637
      %v937 = vpack.c.b16 %v922, %v921
      %v938 = vpack.c.b16 %v924, %v923
      %v939 = vpack.c.b16 %v926, %v925
      %v940 = vpack.c.b16 %v928, %v927
      %v941 = vpack.c.b16 %v930, %v929
      %v942 = vpack.c.b16 %v932, %v931
      %v943 = vpack.c.b16 %v934, %v933
      %v944 = vpack.c.b16 %v936, %v935
      %953 = vmatprep.subr.bf16.mxu0 0
      %954 = vmatpush1.bf16.msra.mxu0 %v937
      %955 = vmatprep.subr.bf16.mxu0 0
      %956 = vmatpush1.bf16.msra.mxu0 %v938
      %957 = vmatprep.subr.bf16.mxu0 0
      %958 = vmatpush1.bf16.msra.mxu0 %v939
      %959 = vmatprep.subr.bf16.mxu0 0
      %960 = vmatpush1.bf16.msra.mxu0 %v940
      %961 = vmatprep.subr.bf16.mxu0 0
      %962 = vmatpush1.bf16.msra.mxu0 %v941
      %963 = vmatprep.subr.bf16.mxu0 0
      %964 = vmatpush1.bf16.msra.mxu0 %v942
      %965 = vmatprep.subr.bf16.mxu0 0
      %966 = vmatpush1.bf16.msra.mxu0 %v943
      %967 = vmatprep.subr.bf16.mxu0 0
      %968 = vmatpush1.bf16.msra.mxu0 %v944
      %969 = vmatprep.subr.bf16.mxu0 0
      %970 = vmatpush1.bf16.msra.mxu0 0
      %971 = vmatprep.subr.bf16.mxu0 0
      %972 = vmatpush1.bf16.msra.mxu0 0
      %973 = vmatprep.subr.bf16.mxu0 0
      %974 = vmatpush1.bf16.msra.mxu0 0
      %975 = vmatprep.subr.bf16.mxu0 0
      %976 = vmatpush1.bf16.msra.mxu0 0
      %977 = vmatprep.subr.bf16.mxu0 0
      %978 = vmatpush1.bf16.msra.mxu0 0
      %979 = vmatprep.subr.bf16.mxu0 0
      %980 = vmatpush1.bf16.msra.mxu0 0
      %981 = vmatprep.subr.bf16.mxu0 0
      %982 = vmatpush1.bf16.msra.mxu0 0
      %983 = vmatprep.subr.bf16.mxu0 0
      %984 = vmatpush1.bf16.msra.mxu0 0
      %985 = vmatprep.mubr.bf16.mxu0 0
      %986 = vmatmul.mubr.bf16.gmra.mrb[0].mxu0 %v602
      %v987 = vpop.f32.mrb[0].mxu0
      %v988 = vadd.f32 %v843, %v987
      %v989 = vpop.f32.mrb[0].mxu0
      %v990 = vpop.f32.mrb[0].mxu0
      %v991 = vadd.f32 %v846, %v990
      %v992 = vpop.f32.mrb[0].mxu0
      %993 = vmatprep.mubr.bf16.mxu0 0
      %994 = vmatmul.mubr.bf16.gmra.mrb[0].mxu0 %v604
      %v995 = vpop.f32.mrb[0].mxu0
      %v996 = vadd.f32 %v851, %v995
      %v997 = vpop.f32.mrb[0].mxu0
      %v998 = vpop.f32.mrb[0].mxu0
      %v999 = vadd.f32 %v854, %v998
      %v1000 = vpop.f32.mrb[0].mxu0
      %1001 = vmatprep.mubr.bf16.mxu0 0
      %1002 = vmatmul.mubr.bf16.gmra.mrb[0].mxu0 %v606
      %v1003 = vpop.f32.mrb[0].mxu0
      %v1004 = vadd.f32 %v859, %v1003
      %v1005 = vpop.f32.mrb[0].mxu0
      %v1006 = vpop.f32.mrb[0].mxu0
      %v1007 = vadd.f32 %v862, %v1006
      %v1008 = vpop.f32.mrb[0].mxu0
      %1009 = vmatprep.mubr.bf16.mxu0 0
      %1010 = vmatmul.mubr.bf16.gmra.mrb[0].mxu0 %v608
      %v1011 = vpop.f32.mrb[0].mxu0
      %v1012 = vadd.f32 %v867, %v1011
      %v1013 = vpop.f32.mrb[0].mxu0
      %v1014 = vpop.f32.mrb[0].mxu0
      %v1015 = vadd.f32 %v870, %v1014
      %v1016 = vpop.f32.mrb[0].mxu0
      %1017 = vmatprep.mubr.bf16.mxu0 0
      %1018 = vmatmul.mubr.bf16.gmra.mrb[0].mxu0 %v610
      %v1019 = vpop.f32.mrb[0].mxu0
      %v1020 = vadd.f32 %v875, %v1019
      %v1021 = vpop.f32.mrb[0].mxu0
      %v1022 = vpop.f32.mrb[0].mxu0
      %v1023 = vadd.f32 %v878, %v1022
      %v1024 = vpop.f32.mrb[0].mxu0
      %1025 = vmatprep.mubr.bf16.mxu0 0
      %1026 = vmatmul.mubr.bf16.gmra.mrb[0].mxu0 %v612
      %v1027 = vpop.f32.mrb[0].mxu0
      %v1028 = vadd.f32 %v883, %v1027
      %v1029 = vpop.f32.mrb[0].mxu0
      %v1030 = vpop.f32.mrb[0].mxu0
      %v1031 = vadd.f32 %v886, %v1030
      %v1032 = vpop.f32.mrb[0].mxu0
      %1033 = vmatprep.mubr.bf16.mxu0 0
      %1034 = vmatmul.mubr.bf16.gmra.mrb[0].mxu0 %v614
      %v1035 = vpop.f32.mrb[0].mxu0
      %v1036 = vadd.f32 %v891, %v1035
      %v1037 = vpop.f32.mrb[0].mxu0
      %v1038 = vpop.f32.mrb[0].mxu0
      %v1039 = vadd.f32 %v894, %v1038
      %v1040 = vpop.f32.mrb[0].mxu0
      %1041 = vmatprep.mubr.bf16.mxu0 0
      %1042 = vmatmul.mubr.bf16.gmra.mrb[0].mxu0 %v616
      %v1043 = vpop.f32.mrb[0].mxu0
      %v1044 = vadd.f32 %v899, %v1043
      %v1045 = vpop.f32.mrb[0].mxu0
      %v1046 = vpop.f32.mrb[0].mxu0
      %v1047 = vadd.f32 %v902, %v1046
      %v1048 = vpop.f32.mrb[0].mxu0
      %1049 = vdwg.mxu0
      %vm1066 = vcmask 1046528
      %v1067 = vrot.slane %v602, 1
      %v1068 = vrot.slane %v603, 1
      %v1069 = vsel %vm1066, %v1067, %v1068
      %v1070 = vrot.slane %v604, 1
      %v1071 = vrot.slane %v605, 1
      %v1072 = vsel %vm1066, %v1070, %v1071
      %v1073 = vrot.slane %v606, 1
      %v1074 = vrot.slane %v607, 1
      %v1075 = vsel %vm1066, %v1073, %v1074
      %v1076 = vrot.slane %v608, 1
      %v1077 = vrot.slane %v609, 1
      %v1078 = vsel %vm1066, %v1076, %v1077
      %v1079 = vrot.slane %v610, 1
      %v1080 = vrot.slane %v611, 1
      %v1081 = vsel %vm1066, %v1079, %v1080
      %v1082 = vrot.slane %v612, 1
      %v1083 = vrot.slane %v613, 1
      %v1084 = vsel %vm1066, %v1082, %v1083
      %v1085 = vrot.slane %v614, 1
      %v1086 = vrot.slane %v615, 1
      %v1087 = vsel %vm1066, %v1085, %v1086
      %v1088 = vrot.slane %v616, 1
      %v1089 = vrot.slane %v617, 1
      %v1090 = vsel %vm1066, %v1088, %v1089
      %s1099 = scalar_lea.vmem %s5, 128
      %v1100 = vld [vmem:[%s1099] sm:$0xf]
      %v1101 = vld [vmem:[%s1099 + $0x4] sm:$0xf]
      %v1102 = vld [vmem:[%s1099 + $0x8] sm:$0xf]
      %v1103 = vld [vmem:[%s1099 + $0xc] sm:$0xf]
      %v1104 = vld [vmem:[%s1099 + $0x10] sm:$0xf]
      %v1105 = vld [vmem:[%s1099 + $0x14] sm:$0xf]
      %v1106 = vld [vmem:[%s1099 + $0x18] sm:$0xf]
      %v1107 = vld [vmem:[%s1099 + $0x1c] sm:$0xf]
      %v1108 = vld [vmem:[%s1099 + $0x20] sm:$0xf]
      %v1109 = vld [vmem:[%s1099 + $0x24] sm:$0xf]
      %v1110 = vld [vmem:[%s1099 + $0x28] sm:$0xf]
      %v1111 = vld [vmem:[%s1099 + $0x2c] sm:$0xf]
      %v1112 = vld [vmem:[%s1099 + $0x30] sm:$0xf]
      %v1113 = vld [vmem:[%s1099 + $0x34] sm:$0xf]
      %v1114 = vld [vmem:[%s1099 + $0x38] sm:$0xf]
      %v1115 = vld [vmem:[%s1099 + $0x3c] sm:$0xf]
      %v1132 = vunpack.c.l.b16 %v1100
      %v1133 = vunpack.c.l.b16 %v1101
      %v1134 = vunpack.c.l.b16 %v1102
      %v1135 = vunpack.c.l.b16 %v1103
      %v1136 = vunpack.c.l.b16 %v1104
      %v1137 = vunpack.c.l.b16 %v1105
      %v1138 = vunpack.c.l.b16 %v1106
      %v1139 = vunpack.c.l.b16 %v1107
      %v1140 = vunpack.c.l.b16 %v1108
      %v1141 = vunpack.c.l.b16 %v1109
      %v1142 = vunpack.c.l.b16 %v1110
      %v1143 = vunpack.c.l.b16 %v1111
      %v1144 = vunpack.c.l.b16 %v1112
      %v1145 = vunpack.c.l.b16 %v1113
      %v1146 = vunpack.c.l.b16 %v1114
      %v1147 = vunpack.c.l.b16 %v1115
      %v1148 = vpack.c.b16 %v1133, %v1132
      %v1149 = vpack.c.b16 %v1135, %v1134
      %v1150 = vpack.c.b16 %v1137, %v1136
      %v1151 = vpack.c.b16 %v1139, %v1138
      %v1152 = vpack.c.b16 %v1141, %v1140
      %v1153 = vpack.c.b16 %v1143, %v1142
      %v1154 = vpack.c.b16 %v1145, %v1144
      %v1155 = vpack.c.b16 %v1147, %v1146
      %1164 = vmatprep.subr.bf16.mxu0 0
      %1165 = vmatpush1.bf16.msra.mxu0 %v1148
      %1166 = vmatprep.subr.bf16.mxu0 0
      %1167 = vmatpush1.bf16.msra.mxu0 %v1149
      %1168 = vmatprep.subr.bf16.mxu0 0
      %1169 = vmatpush1.bf16.msra.mxu0 %v1150
      %1170 = vmatprep.subr.bf16.mxu0 0
      %1171 = vmatpush1.bf16.msra.mxu0 %v1151
      %1172 = vmatprep.subr.bf16.mxu0 0
      %1173 = vmatpush1.bf16.msra.mxu0 %v1152
      %1174 = vmatprep.subr.bf16.mxu0 0
      %1175 = vmatpush1.bf16.msra.mxu0 %v1153
      %1176 = vmatprep.subr.bf16.mxu0 0
      %1177 = vmatpush1.bf16.msra.mxu0 %v1154
      %1178 = vmatprep.subr.bf16.mxu0 0
      %1179 = vmatpush1.bf16.msra.mxu0 %v1155
      %1180 = vmatprep.subr.bf16.mxu0 0
      %1181 = vmatpush1.bf16.msra.mxu0 0
      %1182 = vmatprep.subr.bf16.mxu0 0
      %1183 = vmatpush1.bf16.msra.mxu0 0
      %1184 = vmatprep.subr.bf16.mxu0 0
      %1185 = vmatpush1.bf16.msra.mxu0 0
      %1186 = vmatprep.subr.bf16.mxu0 0
      %1187 = vmatpush1.bf16.msra.mxu0 0
      %1188 = vmatprep.subr.bf16.mxu0 0
      %1189 = vmatpush1.bf16.msra.mxu0 0
      %1190 = vmatprep.subr.bf16.mxu0 0
      %1191 = vmatpush1.bf16.msra.mxu0 0
      %1192 = vmatprep.subr.bf16.mxu0 0
      %1193 = vmatpush1.bf16.msra.mxu0 0
      %1194 = vmatprep.subr.bf16.mxu0 0
      %1195 = vmatpush1.bf16.msra.mxu0 0
      %1196 = vmatprep.mubr.bf16.mxu0 0
      %1197 = vmatmul.mubr.bf16.gmra.mrb[0].mxu0 %v1069
      %v1198 = vpop.f32.mrb[0].mxu0
      %v1199 = vadd.f32 0.0, %v1198
      %v1200 = vpop.f32.mrb[0].mxu0
      %v1201 = vpop.f32.mrb[0].mxu0
      %v1202 = vadd.f32 0.0, %v1201
      %v1203 = vpop.f32.mrb[0].mxu0
      %1204 = vmatprep.mubr.bf16.mxu0 0
      %1205 = vmatmul.mubr.bf16.gmra.mrb[0].mxu0 %v1072
      %v1206 = vpop.f32.mrb[0].mxu0
      %v1207 = vadd.f32 0.0, %v1206
      %v1208 = vpop.f32.mrb[0].mxu0
      %v1209 = vpop.f32.mrb[0].mxu0
      %v1210 = vadd.f32 0.0, %v1209
      %v1211 = vpop.f32.mrb[0].mxu0
      %1212 = vmatprep.mubr.bf16.mxu0 0
      %1213 = vmatmul.mubr.bf16.gmra.mrb[0].mxu0 %v1075
      %v1214 = vpop.f32.mrb[0].mxu0
      %v1215 = vadd.f32 0.0, %v1214
      %v1216 = vpop.f32.mrb[0].mxu0
      %v1217 = vpop.f32.mrb[0].mxu0
      %v1218 = vadd.f32 0.0, %v1217
      %v1219 = vpop.f32.mrb[0].mxu0
      %1220 = vmatprep.mubr.bf16.mxu0 0
      %1221 = vmatmul.mubr.bf16.gmra.mrb[0].mxu0 %v1078
      %v1222 = vpop.f32.mrb[0].mxu0
      %v1223 = vadd.f32 0.0, %v1222
      %v1224 = vpop.f32.mrb[0].mxu0
      %v1225 = vpop.f32.mrb[0].mxu0
      %v1226 = vadd.f32 0.0, %v1225
      %v1227 = vpop.f32.mrb[0].mxu0
      %1228 = vmatprep.mubr.bf16.mxu0 0
      %1229 = vmatmul.mubr.bf16.gmra.mrb[0].mxu0 %v1081
      %v1230 = vpop.f32.mrb[0].mxu0
      %v1231 = vadd.f32 0.0, %v1230
      %v1232 = vpop.f32.mrb[0].mxu0
      %v1233 = vpop.f32.mrb[0].mxu0
      %v1234 = vadd.f32 0.0, %v1233
      %v1235 = vpop.f32.mrb[0].mxu0
      %1236 = vmatprep.mubr.bf16.mxu0 0
      %1237 = vmatmul.mubr.bf16.gmra.mrb[0].mxu0 %v1084
      %v1238 = vpop.f32.mrb[0].mxu0
      %v1239 = vadd.f32 0.0, %v1238
      %v1240 = vpop.f32.mrb[0].mxu0
      %v1241 = vpop.f32.mrb[0].mxu0
      %v1242 = vadd.f32 0.0, %v1241
      %v1243 = vpop.f32.mrb[0].mxu0
      %1244 = vmatprep.mubr.bf16.mxu0 0
      %1245 = vmatmul.mubr.bf16.gmra.mrb[0].mxu0 %v1087
      %v1246 = vpop.f32.mrb[0].mxu0
      %v1247 = vadd.f32 0.0, %v1246
      %v1248 = vpop.f32.mrb[0].mxu0
      %v1249 = vpop.f32.mrb[0].mxu0
      %v1250 = vadd.f32 0.0, %v1249
      %v1251 = vpop.f32.mrb[0].mxu0
      %1252 = vmatprep.mubr.bf16.mxu0 0
      %1253 = vmatmul.mubr.bf16.gmra.mrb[0].mxu0 %v1090
      %v1254 = vpop.f32.mrb[0].mxu0
      %v1255 = vadd.f32 0.0, %v1254
      %v1256 = vpop.f32.mrb[0].mxu0
      %v1257 = vpop.f32.mrb[0].mxu0
      %v1258 = vadd.f32 0.0, %v1257
      %v1259 = vpop.f32.mrb[0].mxu0
      %1260 = vdwg.mxu0
      %v1261 = vadd.f32 %v988, %v1199
      %v1262 = vadd.f32 %v991, %v1202
      %v1263 = vadd.f32 %v996, %v1207
      %v1264 = vadd.f32 %v999, %v1210
      %v1265 = vadd.f32 %v1004, %v1215
      %v1266 = vadd.f32 %v1007, %v1218
      %v1267 = vadd.f32 %v1012, %v1223
      %v1268 = vadd.f32 %v1015, %v1226
      %v1269 = vadd.f32 %v1020, %v1231
      %v1270 = vadd.f32 %v1023, %v1234
      %v1271 = vadd.f32 %v1028, %v1239
      %v1272 = vadd.f32 %v1031, %v1242
      %v1273 = vadd.f32 %v1036, %v1247
      %v1274 = vadd.f32 %v1039, %v1250
      %v1275 = vadd.f32 %v1044, %v1255
      %v1276 = vadd.f32 %v1047, %v1258
      %s1277 = scalar_lea.vmem %s5, 192
      %v1278 = vld [vmem:[%s1277] sm:$0xf]
      %v1279 = vld [vmem:[%s1277 + $0x4] sm:$0xf]
      %v1280 = vld [vmem:[%s1277 + $0x8] sm:$0xf]
      %v1281 = vld [vmem:[%s1277 + $0xc] sm:$0xf]
      %v1282 = vld [vmem:[%s1277 + $0x10] sm:$0xf]
      %v1283 = vld [vmem:[%s1277 + $0x14] sm:$0xf]
      %v1284 = vld [vmem:[%s1277 + $0x18] sm:$0xf]
      %v1285 = vld [vmem:[%s1277 + $0x1c] sm:$0xf]
      %v1286 = vld [vmem:[%s1277 + $0x20] sm:$0xf]
      %v1287 = vld [vmem:[%s1277 + $0x24] sm:$0xf]
      %v1288 = vld [vmem:[%s1277 + $0x28] sm:$0xf]
      %v1289 = vld [vmem:[%s1277 + $0x2c] sm:$0xf]
      %v1290 = vld [vmem:[%s1277 + $0x30] sm:$0xf]
      %v1291 = vld [vmem:[%s1277 + $0x34] sm:$0xf]
      %v1292 = vld [vmem:[%s1277 + $0x38] sm:$0xf]
      %v1293 = vld [vmem:[%s1277 + $0x3c] sm:$0xf]
      %v1310 = vunpack.c.l.b16 %v1278
      %v1311 = vunpack.c.l.b16 %v1279
      %v1312 = vunpack.c.l.b16 %v1280
      %v1313 = vunpack.c.l.b16 %v1281
      %v1314 = vunpack.c.l.b16 %v1282
      %v1315 = vunpack.c.l.b16 %v1283
      %v1316 = vunpack.c.l.b16 %v1284
      %v1317 = vunpack.c.l.b16 %v1285
      %v1318 = vunpack.c.l.b16 %v1286
      %v1319 = vunpack.c.l.b16 %v1287
      %v1320 = vunpack.c.l.b16 %v1288
      %v1321 = vunpack.c.l.b16 %v1289
      %v1322 = vunpack.c.l.b16 %v1290
      %v1323 = vunpack.c.l.b16 %v1291
      %v1324 = vunpack.c.l.b16 %v1292
      %v1325 = vunpack.c.l.b16 %v1293
      %v1326 = vpack.c.b16 %v1311, %v1310
      %v1327 = vpack.c.b16 %v1313, %v1312
      %v1328 = vpack.c.b16 %v1315, %v1314
      %v1329 = vpack.c.b16 %v1317, %v1316
      %v1330 = vpack.c.b16 %v1319, %v1318
      %v1331 = vpack.c.b16 %v1321, %v1320
      %v1332 = vpack.c.b16 %v1323, %v1322
      %v1333 = vpack.c.b16 %v1325, %v1324
      %1342 = vmatprep.subr.bf16.mxu0 0
      %1343 = vmatpush1.bf16.msra.mxu0 %v1326
      %1344 = vmatprep.subr.bf16.mxu0 0
      %1345 = vmatpush1.bf16.msra.mxu0 %v1327
      %1346 = vmatprep.subr.bf16.mxu0 0
      %1347 = vmatpush1.bf16.msra.mxu0 %v1328
      %1348 = vmatprep.subr.bf16.mxu0 0
      %1349 = vmatpush1.bf16.msra.mxu0 %v1329
      %1350 = vmatprep.subr.bf16.mxu0 0
      %1351 = vmatpush1.bf16.msra.mxu0 %v1330
      %1352 = vmatprep.subr.bf16.mxu0 0
      %1353 = vmatpush1.bf16.msra.mxu0 %v1331
      %1354 = vmatprep.subr.bf16.mxu0 0
      %1355 = vmatpush1.bf16.msra.mxu0 %v1332
      %1356 = vmatprep.subr.bf16.mxu0 0
      %1357 = vmatpush1.bf16.msra.mxu0 %v1333
      %1358 = vmatprep.subr.bf16.mxu0 0
      %1359 = vmatpush1.bf16.msra.mxu0 0
      %1360 = vmatprep.subr.bf16.mxu0 0
      %1361 = vmatpush1.bf16.msra.mxu0 0
      %1362 = vmatprep.subr.bf16.mxu0 0
      %1363 = vmatpush1.bf16.msra.mxu0 0
      %1364 = vmatprep.subr.bf16.mxu0 0
      %1365 = vmatpush1.bf16.msra.mxu0 0
      %1366 = vmatprep.subr.bf16.mxu0 0
      %1367 = vmatpush1.bf16.msra.mxu0 0
      %1368 = vmatprep.subr.bf16.mxu0 0
      %1369 = vmatpush1.bf16.msra.mxu0 0
      %1370 = vmatprep.subr.bf16.mxu0 0
      %1371 = vmatpush1.bf16.msra.mxu0 0
      %1372 = vmatprep.subr.bf16.mxu0 0
      %1373 = vmatpush1.bf16.msra.mxu0 0
      %1374 = vmatprep.mubr.bf16.mxu0 0
      %1375 = vmatmul.mubr.bf16.gmra.mrb[0].mxu0 %v604
      %v1376 = vpop.f32.mrb[0].mxu0
      %v1377 = vadd.f32 0.0, %v1376
      %v1378 = vpop.f32.mrb[0].mxu0
      %v1379 = vpop.f32.mrb[0].mxu0
      %v1380 = vadd.f32 0.0, %v1379
      %v1381 = vpop.f32.mrb[0].mxu0
      %1382 = vmatprep.mubr.bf16.mxu0 0
      %1383 = vmatmul.mubr.bf16.gmra.mrb[0].mxu0 %v606
      %v1384 = vpop.f32.mrb[0].mxu0
      %v1385 = vadd.f32 0.0, %v1384
      %v1386 = vpop.f32.mrb[0].mxu0
      %v1387 = vpop.f32.mrb[0].mxu0
      %v1388 = vadd.f32 0.0, %v1387
      %v1389 = vpop.f32.mrb[0].mxu0
      %1390 = vmatprep.mubr.bf16.mxu0 0
      %1391 = vmatmul.mubr.bf16.gmra.mrb[0].mxu0 %v608
      %v1392 = vpop.f32.mrb[0].mxu0
      %v1393 = vadd.f32 0.0, %v1392
      %v1394 = vpop.f32.mrb[0].mxu0
      %v1395 = vpop.f32.mrb[0].mxu0
      %v1396 = vadd.f32 0.0, %v1395
      %v1397 = vpop.f32.mrb[0].mxu0
      %1398 = vmatprep.mubr.bf16.mxu0 0
      %1399 = vmatmul.mubr.bf16.gmra.mrb[0].mxu0 %v610
      %v1400 = vpop.f32.mrb[0].mxu0
      %v1401 = vadd.f32 0.0, %v1400
      %v1402 = vpop.f32.mrb[0].mxu0
      %v1403 = vpop.f32.mrb[0].mxu0
      %v1404 = vadd.f32 0.0, %v1403
      %v1405 = vpop.f32.mrb[0].mxu0
      %1406 = vmatprep.mubr.bf16.mxu0 0
      %1407 = vmatmul.mubr.bf16.gmra.mrb[0].mxu0 %v612
      %v1408 = vpop.f32.mrb[0].mxu0
      %v1409 = vadd.f32 0.0, %v1408
      %v1410 = vpop.f32.mrb[0].mxu0
      %v1411 = vpop.f32.mrb[0].mxu0
      %v1412 = vadd.f32 0.0, %v1411
      %v1413 = vpop.f32.mrb[0].mxu0
      %1414 = vmatprep.mubr.bf16.mxu0 0
      %1415 = vmatmul.mubr.bf16.gmra.mrb[0].mxu0 %v614
      %v1416 = vpop.f32.mrb[0].mxu0
      %v1417 = vadd.f32 0.0, %v1416
      %v1418 = vpop.f32.mrb[0].mxu0
      %v1419 = vpop.f32.mrb[0].mxu0
      %v1420 = vadd.f32 0.0, %v1419
      %v1421 = vpop.f32.mrb[0].mxu0
      %1422 = vmatprep.mubr.bf16.mxu0 0
      %1423 = vmatmul.mubr.bf16.gmra.mrb[0].mxu0 %v616
      %v1424 = vpop.f32.mrb[0].mxu0
      %v1425 = vadd.f32 0.0, %v1424
      %v1426 = vpop.f32.mrb[0].mxu0
      %v1427 = vpop.f32.mrb[0].mxu0
      %v1428 = vadd.f32 0.0, %v1427
      %v1429 = vpop.f32.mrb[0].mxu0
      %1430 = vmatprep.mubr.bf16.mxu0 0
      %1431 = vmatmul.mubr.bf16.gmra.mrb[0].mxu0 %v618
      %v1432 = vpop.f32.mrb[0].mxu0
      %v1433 = vadd.f32 0.0, %v1432
      %v1434 = vpop.f32.mrb[0].mxu0
      %v1435 = vpop.f32.mrb[0].mxu0
      %v1436 = vadd.f32 0.0, %v1435
      %v1437 = vpop.f32.mrb[0].mxu0
      %1438 = vdwg.mxu0
      %v1439 = vadd.f32 %v1261, %v1377
      %v1440 = vadd.f32 %v1262, %v1380
      %v1441 = vadd.f32 %v1263, %v1385
      %v1442 = vadd.f32 %v1264, %v1388
      %v1443 = vadd.f32 %v1265, %v1393
      %v1444 = vadd.f32 %v1266, %v1396
      %v1445 = vadd.f32 %v1267, %v1401
      %v1446 = vadd.f32 %v1268, %v1404
      %v1447 = vadd.f32 %v1269, %v1409
      %v1448 = vadd.f32 %v1270, %v1412
      %v1449 = vadd.f32 %v1271, %v1417
      %v1450 = vadd.f32 %v1272, %v1420
      %v1451 = vadd.f32 %v1273, %v1425
      %v1452 = vadd.f32 %v1274, %v1428
      %v1453 = vadd.f32 %v1275, %v1433
      %v1454 = vadd.f32 %v1276, %v1436
      %v1456 = vshrl.u32 %v618, 16
      %v1458 = vshll.u32 %v618, 16
      %v1460 = vrot.slane %v1458, 1
      %v1461 = vor.u32 %v1456, %v1460
      %v1463 = vshll.u32 %v619, 16
      %v1465 = vrot.slane %v1463, 1
      %v1466 = vsel %vm638, %v1461, %v1465
      %s1468 = scalar_lea.vmem %s5, 256
      %v1469 = vld [vmem:[%s1468] sm:$0xf]
      %v1470 = vld [vmem:[%s1468 + $0x4] sm:$0xf]
      %v1471 = vld [vmem:[%s1468 + $0x8] sm:$0xf]
      %v1472 = vld [vmem:[%s1468 + $0xc] sm:$0xf]
      %v1473 = vld [vmem:[%s1468 + $0x10] sm:$0xf]
      %v1474 = vld [vmem:[%s1468 + $0x14] sm:$0xf]
      %v1475 = vld [vmem:[%s1468 + $0x18] sm:$0xf]
      %v1476 = vld [vmem:[%s1468 + $0x1c] sm:$0xf]
      %v1477 = vld [vmem:[%s1468 + $0x20] sm:$0xf]
      %v1478 = vld [vmem:[%s1468 + $0x24] sm:$0xf]
      %v1479 = vld [vmem:[%s1468 + $0x28] sm:$0xf]
      %v1480 = vld [vmem:[%s1468 + $0x2c] sm:$0xf]
      %v1481 = vld [vmem:[%s1468 + $0x30] sm:$0xf]
      %v1482 = vld [vmem:[%s1468 + $0x34] sm:$0xf]
      %v1483 = vld [vmem:[%s1468 + $0x38] sm:$0xf]
      %v1484 = vld [vmem:[%s1468 + $0x3c] sm:$0xf]
      %v1501 = vunpack.c.l.b16 %v1469
      %v1502 = vunpack.c.l.b16 %v1470
      %v1503 = vunpack.c.l.b16 %v1471
      %v1504 = vunpack.c.l.b16 %v1472
      %v1505 = vunpack.c.l.b16 %v1473
      %v1506 = vunpack.c.l.b16 %v1474
      %v1507 = vunpack.c.l.b16 %v1475
      %v1508 = vunpack.c.l.b16 %v1476
      %v1509 = vunpack.c.l.b16 %v1477
      %v1510 = vunpack.c.l.b16 %v1478
      %v1511 = vunpack.c.l.b16 %v1479
      %v1512 = vunpack.c.l.b16 %v1480
      %v1513 = vunpack.c.l.b16 %v1481
      %v1514 = vunpack.c.l.b16 %v1482
      %v1515 = vunpack.c.l.b16 %v1483
      %v1516 = vunpack.c.l.b16 %v1484
      %v1517 = vpack.c.b16 %v1502, %v1501
      %v1518 = vpack.c.b16 %v1504, %v1503
      %v1519 = vpack.c.b16 %v1506, %v1505
      %v1520 = vpack.c.b16 %v1508, %v1507
      %v1521 = vpack.c.b16 %v1510, %v1509
      %v1522 = vpack.c.b16 %v1512, %v1511
      %v1523 = vpack.c.b16 %v1514, %v1513
      %v1524 = vpack.c.b16 %v1516, %v1515
      %1533 = vmatprep.subr.bf16.mxu0 0
      %1534 = vmatpush1.bf16.msra.mxu0 %v1517
      %1535 = vmatprep.subr.bf16.mxu0 0
      %1536 = vmatpush1.bf16.msra.mxu0 %v1518
      %1537 = vmatprep.subr.bf16.mxu0 0
      %1538 = vmatpush1.bf16.msra.mxu0 %v1519
      %1539 = vmatprep.subr.bf16.mxu0 0
      %1540 = vmatpush1.bf16.msra.mxu0 %v1520
      %1541 = vmatprep.subr.bf16.mxu0 0
      %1542 = vmatpush1.bf16.msra.mxu0 %v1521
      %1543 = vmatprep.subr.bf16.mxu0 0
      %1544 = vmatpush1.bf16.msra.mxu0 %v1522
      %1545 = vmatprep.subr.bf16.mxu0 0
      %1546 = vmatpush1.bf16.msra.mxu0 %v1523
      %1547 = vmatprep.subr.bf16.mxu0 0
      %1548 = vmatpush1.bf16.msra.mxu0 %v1524
      %1549 = vmatprep.subr.bf16.mxu0 0
      %1550 = vmatpush1.bf16.msra.mxu0 0
      %1551 = vmatprep.subr.bf16.mxu0 0
      %1552 = vmatpush1.bf16.msra.mxu0 0
      %1553 = vmatprep.subr.bf16.mxu0 0
      %1554 = vmatpush1.bf16.msra.mxu0 0
      %1555 = vmatprep.subr.bf16.mxu0 0
      %1556 = vmatpush1.bf16.msra.mxu0 0
      %1557 = vmatprep.subr.bf16.mxu0 0
      %1558 = vmatpush1.bf16.msra.mxu0 0
      %1559 = vmatprep.subr.bf16.mxu0 0
      %1560 = vmatpush1.bf16.msra.mxu0 0
      %1561 = vmatprep.subr.bf16.mxu0 0
      %1562 = vmatpush1.bf16.msra.mxu0 0
      %1563 = vmatprep.subr.bf16.mxu0 0
      %1564 = vmatpush1.bf16.msra.mxu0 0
      %1565 = vmatprep.mubr.bf16.mxu0 0
      %1566 = vmatmul.mubr.bf16.gmra.mrb[0].mxu0 %v662
      %v1567 = vpop.f32.mrb[0].mxu0
      %v1568 = vadd.f32 0.0, %v1567
      %v1569 = vpop.f32.mrb[0].mxu0
      %v1570 = vpop.f32.mrb[0].mxu0
      %v1571 = vadd.f32 0.0, %v1570
      %v1572 = vpop.f32.mrb[0].mxu0
      %1573 = vmatprep.mubr.bf16.mxu0 0
      %1574 = vmatmul.mubr.bf16.gmra.mrb[0].mxu0 %v674
      %v1575 = vpop.f32.mrb[0].mxu0
      %v1576 = vadd.f32 0.0, %v1575
      %v1577 = vpop.f32.mrb[0].mxu0
      %v1578 = vpop.f32.mrb[0].mxu0
      %v1579 = vadd.f32 0.0, %v1578
      %v1580 = vpop.f32.mrb[0].mxu0
      %1581 = vmatprep.mubr.bf16.mxu0 0
      %1582 = vmatmul.mubr.bf16.gmra.mrb[0].mxu0 %v686
      %v1583 = vpop.f32.mrb[0].mxu0
      %v1584 = vadd.f32 0.0, %v1583
      %v1585 = vpop.f32.mrb[0].mxu0
      %v1586 = vpop.f32.mrb[0].mxu0
      %v1587 = vadd.f32 0.0, %v1586
      %v1588 = vpop.f32.mrb[0].mxu0
      %1589 = vmatprep.mubr.bf16.mxu0 0
      %1590 = vmatmul.mubr.bf16.gmra.mrb[0].mxu0 %v698
      %v1591 = vpop.f32.mrb[0].mxu0
      %v1592 = vadd.f32 0.0, %v1591
      %v1593 = vpop.f32.mrb[0].mxu0
      %v1594 = vpop.f32.mrb[0].mxu0
      %v1595 = vadd.f32 0.0, %v1594
      %v1596 = vpop.f32.mrb[0].mxu0
      %1597 = vmatprep.mubr.bf16.mxu0 0
      %1598 = vmatmul.mubr.bf16.gmra.mrb[0].mxu0 %v710
      %v1599 = vpop.f32.mrb[0].mxu0
      %v1600 = vadd.f32 0.0, %v1599
      %v1601 = vpop.f32.mrb[0].mxu0
      %v1602 = vpop.f32.mrb[0].mxu0
      %v1603 = vadd.f32 0.0, %v1602
      %v1604 = vpop.f32.mrb[0].mxu0
      %1605 = vmatprep.mubr.bf16.mxu0 0
      %1606 = vmatmul.mubr.bf16.gmra.mrb[0].mxu0 %v722
      %v1607 = vpop.f32.mrb[0].mxu0
      %v1608 = vadd.f32 0.0, %v1607
      %v1609 = vpop.f32.mrb[0].mxu0
      %v1610 = vpop.f32.mrb[0].mxu0
      %v1611 = vadd.f32 0.0, %v1610
      %v1612 = vpop.f32.mrb[0].mxu0
      %1613 = vmatprep.mubr.bf16.mxu0 0
      %1614 = vmatmul.mubr.bf16.gmra.mrb[0].mxu0 %v734
      %v1615 = vpop.f32.mrb[0].mxu0
      %v1616 = vadd.f32 0.0, %v1615
      %v1617 = vpop.f32.mrb[0].mxu0
      %v1618 = vpop.f32.mrb[0].mxu0
      %v1619 = vadd.f32 0.0, %v1618
      %v1620 = vpop.f32.mrb[0].mxu0
      %1621 = vmatprep.mubr.bf16.mxu0 0
      %1622 = vmatmul.mubr.bf16.gmra.mrb[0].mxu0 %v1466
      %v1623 = vpop.f32.mrb[0].mxu0
      %v1624 = vadd.f32 0.0, %v1623
      %v1625 = vpop.f32.mrb[0].mxu0
      %v1626 = vpop.f32.mrb[0].mxu0
      %v1627 = vadd.f32 0.0, %v1626
      %v1628 = vpop.f32.mrb[0].mxu0
      %1629 = vdwg.mxu0
      %v1630 = vadd.f32 %v1439, %v1568
      %v1631 = vadd.f32 %v1440, %v1571
      %v1632 = vadd.f32 %v1441, %v1576
      %v1633 = vadd.f32 %v1442, %v1579
      %v1634 = vadd.f32 %v1443, %v1584
      %v1635 = vadd.f32 %v1444, %v1587
      %v1636 = vadd.f32 %v1445, %v1592
      %v1637 = vadd.f32 %v1446, %v1595
      %v1638 = vadd.f32 %v1447, %v1600
      %v1639 = vadd.f32 %v1448, %v1603
      %v1640 = vadd.f32 %v1449, %v1608
      %v1641 = vadd.f32 %v1450, %v1611
      %v1642 = vadd.f32 %v1451, %v1616
      %v1643 = vadd.f32 %v1452, %v1619
      %v1644 = vadd.f32 %v1453, %v1624
      %v1645 = vadd.f32 %v1454, %v1627
      %v1648 = vrot.slane %v618, 1
      %v1649 = vrot.slane %v619, 1
      %v1650 = vsel %vm1066, %v1648, %v1649
      %s1652 = scalar_lea.vmem %s5, 320
      %v1653 = vld [vmem:[%s1652] sm:$0xf]
      %v1654 = vld [vmem:[%s1652 + $0x4] sm:$0xf]
      %v1655 = vld [vmem:[%s1652 + $0x8] sm:$0xf]
      %v1656 = vld [vmem:[%s1652 + $0xc] sm:$0xf]
      %v1657 = vld [vmem:[%s1652 + $0x10] sm:$0xf]
      %v1658 = vld [vmem:[%s1652 + $0x14] sm:$0xf]
      %v1659 = vld [vmem:[%s1652 + $0x18] sm:$0xf]
      %v1660 = vld [vmem:[%s1652 + $0x1c] sm:$0xf]
      %v1661 = vld [vmem:[%s1652 + $0x20] sm:$0xf]
      %v1662 = vld [vmem:[%s1652 + $0x24] sm:$0xf]
      %v1663 = vld [vmem:[%s1652 + $0x28] sm:$0xf]
      %v1664 = vld [vmem:[%s1652 + $0x2c] sm:$0xf]
      %v1665 = vld [vmem:[%s1652 + $0x30] sm:$0xf]
      %v1666 = vld [vmem:[%s1652 + $0x34] sm:$0xf]
      %v1667 = vld [vmem:[%s1652 + $0x38] sm:$0xf]
      %v1668 = vld [vmem:[%s1652 + $0x3c] sm:$0xf]
      %v1685 = vunpack.c.l.b16 %v1653
      %v1686 = vunpack.c.l.b16 %v1654
      %v1687 = vunpack.c.l.b16 %v1655
      %v1688 = vunpack.c.l.b16 %v1656
      %v1689 = vunpack.c.l.b16 %v1657
      %v1690 = vunpack.c.l.b16 %v1658
      %v1691 = vunpack.c.l.b16 %v1659
      %v1692 = vunpack.c.l.b16 %v1660
      %v1693 = vunpack.c.l.b16 %v1661
      %v1694 = vunpack.c.l.b16 %v1662
      %v1695 = vunpack.c.l.b16 %v1663
      %v1696 = vunpack.c.l.b16 %v1664
      %v1697 = vunpack.c.l.b16 %v1665
      %v1698 = vunpack.c.l.b16 %v1666
      %v1699 = vunpack.c.l.b16 %v1667
      %v1700 = vunpack.c.l.b16 %v1668
      %v1701 = vpack.c.b16 %v1686, %v1685
      %v1702 = vpack.c.b16 %v1688, %v1687
      %v1703 = vpack.c.b16 %v1690, %v1689
      %v1704 = vpack.c.b16 %v1692, %v1691
      %v1705 = vpack.c.b16 %v1694, %v1693
      %v1706 = vpack.c.b16 %v1696, %v1695
      %v1707 = vpack.c.b16 %v1698, %v1697
      %v1708 = vpack.c.b16 %v1700, %v1699
      %1717 = vmatprep.subr.bf16.mxu0 0
      %1718 = vmatpush1.bf16.msra.mxu0 %v1701
      %1719 = vmatprep.subr.bf16.mxu0 0
      %1720 = vmatpush1.bf16.msra.mxu0 %v1702
      %1721 = vmatprep.subr.bf16.mxu0 0
      %1722 = vmatpush1.bf16.msra.mxu0 %v1703
      %1723 = vmatprep.subr.bf16.mxu0 0
      %1724 = vmatpush1.bf16.msra.mxu0 %v1704
      %1725 = vmatprep.subr.bf16.mxu0 0
      %1726 = vmatpush1.bf16.msra.mxu0 %v1705
      %1727 = vmatprep.subr.bf16.mxu0 0
      %1728 = vmatpush1.bf16.msra.mxu0 %v1706
      %1729 = vmatprep.subr.bf16.mxu0 0
      %1730 = vmatpush1.bf16.msra.mxu0 %v1707
      %1731 = vmatprep.subr.bf16.mxu0 0
      %1732 = vmatpush1.bf16.msra.mxu0 %v1708
      %1733 = vmatprep.subr.bf16.mxu0 0
      %1734 = vmatpush1.bf16.msra.mxu0 0
      %1735 = vmatprep.subr.bf16.mxu0 0
      %1736 = vmatpush1.bf16.msra.mxu0 0
      %1737 = vmatprep.subr.bf16.mxu0 0
      %1738 = vmatpush1.bf16.msra.mxu0 0
      %1739 = vmatprep.subr.bf16.mxu0 0
      %1740 = vmatpush1.bf16.msra.mxu0 0
      %1741 = vmatprep.subr.bf16.mxu0 0
      %1742 = vmatpush1.bf16.msra.mxu0 0
      %1743 = vmatprep.subr.bf16.mxu0 0
      %1744 = vmatpush1.bf16.msra.mxu0 0
      %1745 = vmatprep.subr.bf16.mxu0 0
      %1746 = vmatpush1.bf16.msra.mxu0 0
      %1747 = vmatprep.subr.bf16.mxu0 0
      %1748 = vmatpush1.bf16.msra.mxu0 0
      %1749 = vmatprep.mubr.bf16.mxu0 0
      %1750 = vmatmul.mubr.bf16.gmra.mrb[0].mxu0 %v1072
      %v1751 = vpop.f32.mrb[0].mxu0
      %v1752 = vadd.f32 0.0, %v1751
      %v1753 = vpop.f32.mrb[0].mxu0
      %v1754 = vpop.f32.mrb[0].mxu0
      %v1755 = vadd.f32 0.0, %v1754
      %v1756 = vpop.f32.mrb[0].mxu0
      %1757 = vmatprep.mubr.bf16.mxu0 0
      %1758 = vmatmul.mubr.bf16.gmra.mrb[0].mxu0 %v1075
      %v1759 = vpop.f32.mrb[0].mxu0
      %v1760 = vadd.f32 0.0, %v1759
      %v1761 = vpop.f32.mrb[0].mxu0
      %v1762 = vpop.f32.mrb[0].mxu0
      %v1763 = vadd.f32 0.0, %v1762
      %v1764 = vpop.f32.mrb[0].mxu0
      %1765 = vmatprep.mubr.bf16.mxu0 0
      %1766 = vmatmul.mubr.bf16.gmra.mrb[0].mxu0 %v1078
      %v1767 = vpop.f32.mrb[0].mxu0
      %v1768 = vadd.f32 0.0, %v1767
      %v1769 = vpop.f32.mrb[0].mxu0
      %v1770 = vpop.f32.mrb[0].mxu0
      %v1771 = vadd.f32 0.0, %v1770
      %v1772 = vpop.f32.mrb[0].mxu0
      %1773 = vmatprep.mubr.bf16.mxu0 0
      %1774 = vmatmul.mubr.bf16.gmra.mrb[0].mxu0 %v1081
      %v1775 = vpop.f32.mrb[0].mxu0
      %v1776 = vadd.f32 0.0, %v1775
      %v1777 = vpop.f32.mrb[0].mxu0
      %v1778 = vpop.f32.mrb[0].mxu0
      %v1779 = vadd.f32 0.0, %v1778
      %v1780 = vpop.f32.mrb[0].mxu0
      %1781 = vmatprep.mubr.bf16.mxu0 0
      %1782 = vmatmul.mubr.bf16.gmra.mrb[0].mxu0 %v1084
      %v1783 = vpop.f32.mrb[0].mxu0
      %v1784 = vadd.f32 0.0, %v1783
      %v1785 = vpop.f32.mrb[0].mxu0
      %v1786 = vpop.f32.mrb[0].mxu0
      %v1787 = vadd.f32 0.0, %v1786
      %v1788 = vpop.f32.mrb[0].mxu0
      %1789 = vmatprep.mubr.bf16.mxu0 0
      %1790 = vmatmul.mubr.bf16.gmra.mrb[0].mxu0 %v1087
      %v1791 = vpop.f32.mrb[0].mxu0
      %v1792 = vadd.f32 0.0, %v1791
      %v1793 = vpop.f32.mrb[0].mxu0
      %v1794 = vpop.f32.mrb[0].mxu0
      %v1795 = vadd.f32 0.0, %v1794
      %v1796 = vpop.f32.mrb[0].mxu0
      %1797 = vmatprep.mubr.bf16.mxu0 0
      %1798 = vmatmul.mubr.bf16.gmra.mrb[0].mxu0 %v1090
      %v1799 = vpop.f32.mrb[0].mxu0
      %v1800 = vadd.f32 0.0, %v1799
      %v1801 = vpop.f32.mrb[0].mxu0
      %v1802 = vpop.f32.mrb[0].mxu0
      %v1803 = vadd.f32 0.0, %v1802
      %v1804 = vpop.f32.mrb[0].mxu0
      %1805 = vmatprep.mubr.bf16.mxu0 0
      %1806 = vmatmul.mubr.bf16.gmra.mrb[0].mxu0 %v1650
      %v1807 = vpop.f32.mrb[0].mxu0
      %v1808 = vadd.f32 0.0, %v1807
      %v1809 = vpop.f32.mrb[0].mxu0
      %v1810 = vpop.f32.mrb[0].mxu0
      %v1811 = vadd.f32 0.0, %v1810
      %v1812 = vpop.f32.mrb[0].mxu0
      %1813 = vdwg.mxu0
      %v1814 = vadd.f32 %v1630, %v1752
      %v1815 = vadd.f32 %v1631, %v1755
      %v1816 = vadd.f32 %v1632, %v1760
      %v1817 = vadd.f32 %v1633, %v1763
      %v1818 = vadd.f32 %v1634, %v1768
      %v1819 = vadd.f32 %v1635, %v1771
      %v1820 = vadd.f32 %v1636, %v1776
      %v1821 = vadd.f32 %v1637, %v1779
      %v1822 = vadd.f32 %v1638, %v1784
      %v1823 = vadd.f32 %v1639, %v1787
      %v1824 = vadd.f32 %v1640, %v1792
      %v1825 = vadd.f32 %v1641, %v1795
      %v1826 = vadd.f32 %v1642, %v1800
      %v1827 = vadd.f32 %v1643, %v1803
      %v1828 = vadd.f32 %v1644, %v1808
      %v1829 = vadd.f32 %v1645, %v1811
      %s1830 = scalar_lea.vmem %s5, 384
      %v1831 = vld [vmem:[%s1830] sm:$0xf]
      %v1832 = vld [vmem:[%s1830 + $0x4] sm:$0xf]
      %v1833 = vld [vmem:[%s1830 + $0x8] sm:$0xf]
      %v1834 = vld [vmem:[%s1830 + $0xc] sm:$0xf]
      %v1835 = vld [vmem:[%s1830 + $0x10] sm:$0xf]
      %v1836 = vld [vmem:[%s1830 + $0x14] sm:$0xf]
      %v1837 = vld [vmem:[%s1830 + $0x18] sm:$0xf]
      %v1838 = vld [vmem:[%s1830 + $0x1c] sm:$0xf]
      %v1839 = vld [vmem:[%s1830 + $0x20] sm:$0xf]
      %v1840 = vld [vmem:[%s1830 + $0x24] sm:$0xf]
      %v1841 = vld [vmem:[%s1830 + $0x28] sm:$0xf]
      %v1842 = vld [vmem:[%s1830 + $0x2c] sm:$0xf]
      %v1843 = vld [vmem:[%s1830 + $0x30] sm:$0xf]
      %v1844 = vld [vmem:[%s1830 + $0x34] sm:$0xf]
      %v1845 = vld [vmem:[%s1830 + $0x38] sm:$0xf]
      %v1846 = vld [vmem:[%s1830 + $0x3c] sm:$0xf]
      %v1863 = vunpack.c.l.b16 %v1831
      %v1864 = vunpack.c.l.b16 %v1832
      %v1865 = vunpack.c.l.b16 %v1833
      %v1866 = vunpack.c.l.b16 %v1834
      %v1867 = vunpack.c.l.b16 %v1835
      %v1868 = vunpack.c.l.b16 %v1836
      %v1869 = vunpack.c.l.b16 %v1837
      %v1870 = vunpack.c.l.b16 %v1838
      %v1871 = vunpack.c.l.b16 %v1839
      %v1872 = vunpack.c.l.b16 %v1840
      %v1873 = vunpack.c.l.b16 %v1841
      %v1874 = vunpack.c.l.b16 %v1842
      %v1875 = vunpack.c.l.b16 %v1843
      %v1876 = vunpack.c.l.b16 %v1844
      %v1877 = vunpack.c.l.b16 %v1845
      %v1878 = vunpack.c.l.b16 %v1846
      %v1879 = vpack.c.b16 %v1864, %v1863
      %v1880 = vpack.c.b16 %v1866, %v1865
      %v1881 = vpack.c.b16 %v1868, %v1867
      %v1882 = vpack.c.b16 %v1870, %v1869
      %v1883 = vpack.c.b16 %v1872, %v1871
      %v1884 = vpack.c.b16 %v1874, %v1873
      %v1885 = vpack.c.b16 %v1876, %v1875
      %v1886 = vpack.c.b16 %v1878, %v1877
      %1895 = vmatprep.subr.bf16.mxu0 0
      %1896 = vmatpush1.bf16.msra.mxu0 %v1879
      %1897 = vmatprep.subr.bf16.mxu0 0
      %1898 = vmatpush1.bf16.msra.mxu0 %v1880
      %1899 = vmatprep.subr.bf16.mxu0 0
      %1900 = vmatpush1.bf16.msra.mxu0 %v1881
      %1901 = vmatprep.subr.bf16.mxu0 0
      %1902 = vmatpush1.bf16.msra.mxu0 %v1882
      %1903 = vmatprep.subr.bf16.mxu0 0
      %1904 = vmatpush1.bf16.msra.mxu0 %v1883
      %1905 = vmatprep.subr.bf16.mxu0 0
      %1906 = vmatpush1.bf16.msra.mxu0 %v1884
      %1907 = vmatprep.subr.bf16.mxu0 0
      %1908 = vmatpush1.bf16.msra.mxu0 %v1885
      %1909 = vmatprep.subr.bf16.mxu0 0
      %1910 = vmatpush1.bf16.msra.mxu0 %v1886
      %1911 = vmatprep.subr.bf16.mxu0 0
      %1912 = vmatpush1.bf16.msra.mxu0 0
      %1913 = vmatprep.subr.bf16.mxu0 0
      %1914 = vmatpush1.bf16.msra.mxu0 0
      %1915 = vmatprep.subr.bf16.mxu0 0
      %1916 = vmatpush1.bf16.msra.mxu0 0
      %1917 = vmatprep.subr.bf16.mxu0 0
      %1918 = vmatpush1.bf16.msra.mxu0 0
      %1919 = vmatprep.subr.bf16.mxu0 0
      %1920 = vmatpush1.bf16.msra.mxu0 0
      %1921 = vmatprep.subr.bf16.mxu0 0
      %1922 = vmatpush1.bf16.msra.mxu0 0
      %1923 = vmatprep.subr.bf16.mxu0 0
      %1924 = vmatpush1.bf16.msra.mxu0 0
      %1925 = vmatprep.subr.bf16.mxu0 0
      %1926 = vmatpush1.bf16.msra.mxu0 0
      %1927 = vmatprep.mubr.bf16.mxu0 0
      %1928 = vmatmul.mubr.bf16.gmra.mrb[0].mxu0 %v606
      %v1929 = vpop.f32.mrb[0].mxu0
      %v1930 = vadd.f32 0.0, %v1929
      %v1931 = vpop.f32.mrb[0].mxu0
      %v1932 = vpop.f32.mrb[0].mxu0
      %v1933 = vadd.f32 0.0, %v1932
      %v1934 = vpop.f32.mrb[0].mxu0
      %1935 = vmatprep.mubr.bf16.mxu0 0
      %1936 = vmatmul.mubr.bf16.gmra.mrb[0].mxu0 %v608
      %v1937 = vpop.f32.mrb[0].mxu0
      %v1938 = vadd.f32 0.0, %v1937
      %v1939 = vpop.f32.mrb[0].mxu0
      %v1940 = vpop.f32.mrb[0].mxu0
      %v1941 = vadd.f32 0.0, %v1940
      %v1942 = vpop.f32.mrb[0].mxu0
      %1943 = vmatprep.mubr.bf16.mxu0 0
      %1944 = vmatmul.mubr.bf16.gmra.mrb[0].mxu0 %v610
      %v1945 = vpop.f32.mrb[0].mxu0
      %v1946 = vadd.f32 0.0, %v1945
      %v1947 = vpop.f32.mrb[0].mxu0
      %v1948 = vpop.f32.mrb[0].mxu0
      %v1949 = vadd.f32 0.0, %v1948
      %v1950 = vpop.f32.mrb[0].mxu0
      %1951 = vmatprep.mubr.bf16.mxu0 0
      %1952 = vmatmul.mubr.bf16.gmra.mrb[0].mxu0 %v612
      %v1953 = vpop.f32.mrb[0].mxu0
      %v1954 = vadd.f32 0.0, %v1953
      %v1955 = vpop.f32.mrb[0].mxu0
      %v1956 = vpop.f32.mrb[0].mxu0
      %v1957 = vadd.f32 0.0, %v1956
      %v1958 = vpop.f32.mrb[0].mxu0
      %1959 = vmatprep.mubr.bf16.mxu0 0
      %1960 = vmatmul.mubr.bf16.gmra.mrb[0].mxu0 %v614
      %v1961 = vpop.f32.mrb[0].mxu0
      %v1962 = vadd.f32 0.0, %v1961
      %v1963 = vpop.f32.mrb[0].mxu0
      %v1964 = vpop.f32.mrb[0].mxu0
      %v1965 = vadd.f32 0.0, %v1964
      %v1966 = vpop.f32.mrb[0].mxu0
      %1967 = vmatprep.mubr.bf16.mxu0 0
      %1968 = vmatmul.mubr.bf16.gmra.mrb[0].mxu0 %v616
      %v1969 = vpop.f32.mrb[0].mxu0
      %v1970 = vadd.f32 0.0, %v1969
      %v1971 = vpop.f32.mrb[0].mxu0
      %v1972 = vpop.f32.mrb[0].mxu0
      %v1973 = vadd.f32 0.0, %v1972
      %v1974 = vpop.f32.mrb[0].mxu0
      %1975 = vmatprep.mubr.bf16.mxu0 0
      %1976 = vmatmul.mubr.bf16.gmra.mrb[0].mxu0 %v618
      %v1977 = vpop.f32.mrb[0].mxu0
      %v1978 = vadd.f32 0.0, %v1977
      %v1979 = vpop.f32.mrb[0].mxu0
      %v1980 = vpop.f32.mrb[0].mxu0
      %v1981 = vadd.f32 0.0, %v1980
      %v1982 = vpop.f32.mrb[0].mxu0
      %1983 = vmatprep.mubr.bf16.mxu0 0
      %1984 = vmatmul.mubr.bf16.gmra.mrb[0].mxu0 %v620
      %v1985 = vpop.f32.mrb[0].mxu0
      %v1986 = vadd.f32 0.0, %v1985
      %v1987 = vpop.f32.mrb[0].mxu0
      %v1988 = vpop.f32.mrb[0].mxu0
      %v1989 = vadd.f32 0.0, %v1988
      %v1990 = vpop.f32.mrb[0].mxu0
      %1991 = vdwg.mxu0
      %v1992 = vadd.f32 %v1814, %v1930
      %v1993 = vadd.f32 %v1815, %v1933
      %v1994 = vadd.f32 %v1816, %v1938
      %v1995 = vadd.f32 %v1817, %v1941
      %v1996 = vadd.f32 %v1818, %v1946
      %v1997 = vadd.f32 %v1819, %v1949
      %v1998 = vadd.f32 %v1820, %v1954
      %v1999 = vadd.f32 %v1821, %v1957
      %v2000 = vadd.f32 %v1822, %v1962
      %v2001 = vadd.f32 %v1823, %v1965
      %v2002 = vadd.f32 %v1824, %v1970
      %v2003 = vadd.f32 %v1825, %v1973
      %v2004 = vadd.f32 %v1826, %v1978
      %v2005 = vadd.f32 %v1827, %v1981
      %v2006 = vadd.f32 %v1828, %v1986
      %v2007 = vadd.f32 %v1829, %v1989
      %v2009 = vshrl.u32 %v620, 16
      %v2011 = vshll.u32 %v620, 16
      %v2013 = vrot.slane %v2011, 1
      %v2014 = vor.u32 %v2009, %v2013
      %v2016 = vshll.u32 %v621, 16
      %v2018 = vrot.slane %v2016, 1
      %v2019 = vsel %vm638, %v2014, %v2018
      %s2021 = scalar_lea.vmem %s5, 448
      %v2022 = vld [vmem:[%s2021] sm:$0xf]
      %v2023 = vld [vmem:[%s2021 + $0x4] sm:$0xf]
      %v2024 = vld [vmem:[%s2021 + $0x8] sm:$0xf]
      %v2025 = vld [vmem:[%s2021 + $0xc] sm:$0xf]
      %v2026 = vld [vmem:[%s2021 + $0x10] sm:$0xf]
      %v2027 = vld [vmem:[%s2021 + $0x14] sm:$0xf]
      %v2028 = vld [vmem:[%s2021 + $0x18] sm:$0xf]
      %v2029 = vld [vmem:[%s2021 + $0x1c] sm:$0xf]
      %v2030 = vld [vmem:[%s2021 + $0x20] sm:$0xf]
      %v2031 = vld [vmem:[%s2021 + $0x24] sm:$0xf]
      %v2032 = vld [vmem:[%s2021 + $0x28] sm:$0xf]
      %v2033 = vld [vmem:[%s2021 + $0x2c] sm:$0xf]
      %v2034 = vld [vmem:[%s2021 + $0x30] sm:$0xf]
      %v2035 = vld [vmem:[%s2021 + $0x34] sm:$0xf]
      %v2036 = vld [vmem:[%s2021 + $0x38] sm:$0xf]
      %v2037 = vld [vmem:[%s2021 + $0x3c] sm:$0xf]
      %v2054 = vunpack.c.l.b16 %v2022
      %v2055 = vunpack.c.l.b16 %v2023
      %v2056 = vunpack.c.l.b16 %v2024
      %v2057 = vunpack.c.l.b16 %v2025
      %v2058 = vunpack.c.l.b16 %v2026
      %v2059 = vunpack.c.l.b16 %v2027
      %v2060 = vunpack.c.l.b16 %v2028
      %v2061 = vunpack.c.l.b16 %v2029
      %v2062 = vunpack.c.l.b16 %v2030
      %v2063 = vunpack.c.l.b16 %v2031
      %v2064 = vunpack.c.l.b16 %v2032
      %v2065 = vunpack.c.l.b16 %v2033
      %v2066 = vunpack.c.l.b16 %v2034
      %v2067 = vunpack.c.l.b16 %v2035
      %v2068 = vunpack.c.l.b16 %v2036
      %v2069 = vunpack.c.l.b16 %v2037
      %v2070 = vpack.c.b16 %v2055, %v2054
      %v2071 = vpack.c.b16 %v2057, %v2056
      %v2072 = vpack.c.b16 %v2059, %v2058
      %v2073 = vpack.c.b16 %v2061, %v2060
      %v2074 = vpack.c.b16 %v2063, %v2062
      %v2075 = vpack.c.b16 %v2065, %v2064
      %v2076 = vpack.c.b16 %v2067, %v2066
      %v2077 = vpack.c.b16 %v2069, %v2068
      %2086 = vmatprep.subr.bf16.mxu0 0
      %2087 = vmatpush1.bf16.msra.mxu0 %v2070
      %2088 = vmatprep.subr.bf16.mxu0 0
      %2089 = vmatpush1.bf16.msra.mxu0 %v2071
      %2090 = vmatprep.subr.bf16.mxu0 0
      %2091 = vmatpush1.bf16.msra.mxu0 %v2072
      %2092 = vmatprep.subr.bf16.mxu0 0
      %2093 = vmatpush1.bf16.msra.mxu0 %v2073
      %2094 = vmatprep.subr.bf16.mxu0 0
      %2095 = vmatpush1.bf16.msra.mxu0 %v2074
      %2096 = vmatprep.subr.bf16.mxu0 0
      %2097 = vmatpush1.bf16.msra.mxu0 %v2075
      %2098 = vmatprep.subr.bf16.mxu0 0
      %2099 = vmatpush1.bf16.msra.mxu0 %v2076
      %2100 = vmatprep.subr.bf16.mxu0 0
      %2101 = vmatpush1.bf16.msra.mxu0 %v2077
      %2102 = vmatprep.subr.bf16.mxu0 0
      %2103 = vmatpush1.bf16.msra.mxu0 0
      %2104 = vmatprep.subr.bf16.mxu0 0
      %2105 = vmatpush1.bf16.msra.mxu0 0
      %2106 = vmatprep.subr.bf16.mxu0 0
      %2107 = vmatpush1.bf16.msra.mxu0 0
      %2108 = vmatprep.subr.bf16.mxu0 0
      %2109 = vmatpush1.bf16.msra.mxu0 0
      %2110 = vmatprep.subr.bf16.mxu0 0
      %2111 = vmatpush1.bf16.msra.mxu0 0
      %2112 = vmatprep.subr.bf16.mxu0 0
      %2113 = vmatpush1.bf16.msra.mxu0 0
      %2114 = vmatprep.subr.bf16.mxu0 0
      %2115 = vmatpush1.bf16.msra.mxu0 0
      %2116 = vmatprep.subr.bf16.mxu0 0
      %2117 = vmatpush1.bf16.msra.mxu0 0
      %2118 = vmatprep.mubr.bf16.mxu0 0
      %2119 = vmatmul.mubr.bf16.gmra.mrb[0].mxu0 %v674
      %v2120 = vpop.f32.mrb[0].mxu0
      %v2121 = vadd.f32 0.0, %v2120
      %v2122 = vpop.f32.mrb[0].mxu0
      %v2123 = vpop.f32.mrb[0].mxu0
      %v2124 = vadd.f32 0.0, %v2123
      %v2125 = vpop.f32.mrb[0].mxu0
      %2126 = vmatprep.mubr.bf16.mxu0 0
      %2127 = vmatmul.mubr.bf16.gmra.mrb[0].mxu0 %v686
      %v2128 = vpop.f32.mrb[0].mxu0
      %v2129 = vadd.f32 0.0, %v2128
      %v2130 = vpop.f32.mrb[0].mxu0
      %v2131 = vpop.f32.mrb[0].mxu0
      %v2132 = vadd.f32 0.0, %v2131
      %v2133 = vpop.f32.mrb[0].mxu0
      %2134 = vmatprep.mubr.bf16.mxu0 0
      %2135 = vmatmul.mubr.bf16.gmra.mrb[0].mxu0 %v698
      %v2136 = vpop.f32.mrb[0].mxu0
      %v2137 = vadd.f32 0.0, %v2136
      %v2138 = vpop.f32.mrb[0].mxu0
      %v2139 = vpop.f32.mrb[0].mxu0
      %v2140 = vadd.f32 0.0, %v2139
      %v2141 = vpop.f32.mrb[0].mxu0
      %2142 = vmatprep.mubr.bf16.mxu0 0
      %2143 = vmatmul.mubr.bf16.gmra.mrb[0].mxu0 %v710
      %v2144 = vpop.f32.mrb[0].mxu0
      %v2145 = vadd.f32 0.0, %v2144
      %v2146 = vpop.f32.mrb[0].mxu0
      %v2147 = vpop.f32.mrb[0].mxu0
      %v2148 = vadd.f32 0.0, %v2147
      %v2149 = vpop.f32.mrb[0].mxu0
      %2150 = vmatprep.mubr.bf16.mxu0 0
      %2151 = vmatmul.mubr.bf16.gmra.mrb[0].mxu0 %v722
      %v2152 = vpop.f32.mrb[0].mxu0
      %v2153 = vadd.f32 0.0, %v2152
      %v2154 = vpop.f32.mrb[0].mxu0
      %v2155 = vpop.f32.mrb[0].mxu0
      %v2156 = vadd.f32 0.0, %v2155
      %v2157 = vpop.f32.mrb[0].mxu0
      %2158 = vmatprep.mubr.bf16.mxu0 0
      %2159 = vmatmul.mubr.bf16.gmra.mrb[0].mxu0 %v734
      %v2160 = vpop.f32.mrb[0].mxu0
      %v2161 = vadd.f32 0.0, %v2160
      %v2162 = vpop.f32.mrb[0].mxu0
      %v2163 = vpop.f32.mrb[0].mxu0
      %v2164 = vadd.f32 0.0, %v2163
      %v2165 = vpop.f32.mrb[0].mxu0
      %2166 = vmatprep.mubr.bf16.mxu0 0
      %2167 = vmatmul.mubr.bf16.gmra.mrb[0].mxu0 %v1466
      %v2168 = vpop.f32.mrb[0].mxu0
      %v2169 = vadd.f32 0.0, %v2168
      %v2170 = vpop.f32.mrb[0].mxu0
      %v2171 = vpop.f32.mrb[0].mxu0
      %v2172 = vadd.f32 0.0, %v2171
      %v2173 = vpop.f32.mrb[0].mxu0
      %2174 = vmatprep.mubr.bf16.mxu0 0
      %2175 = vmatmul.mubr.bf16.gmra.mrb[0].mxu0 %v2019
      %v2176 = vpop.f32.mrb[0].mxu0
      %v2177 = vadd.f32 0.0, %v2176
      %v2178 = vpop.f32.mrb[0].mxu0
      %v2179 = vpop.f32.mrb[0].mxu0
      %v2180 = vadd.f32 0.0, %v2179
      %v2181 = vpop.f32.mrb[0].mxu0
      %2182 = vdwg.mxu0
      %v2183 = vadd.f32 %v1992, %v2121
      %v2184 = vadd.f32 %v1993, %v2124
      %v2185 = vadd.f32 %v1994, %v2129
      %v2186 = vadd.f32 %v1995, %v2132
      %v2187 = vadd.f32 %v1996, %v2137
      %v2188 = vadd.f32 %v1997, %v2140
      %v2189 = vadd.f32 %v1998, %v2145
      %v2190 = vadd.f32 %v1999, %v2148
      %v2191 = vadd.f32 %v2000, %v2153
      %v2192 = vadd.f32 %v2001, %v2156
      %v2193 = vadd.f32 %v2002, %v2161
      %v2194 = vadd.f32 %v2003, %v2164
      %v2195 = vadd.f32 %v2004, %v2169
      %v2196 = vadd.f32 %v2005, %v2172
      %v2197 = vadd.f32 %v2006, %v2177
      %v2198 = vadd.f32 %v2007, %v2180
      %v2201 = vrot.slane %v620, 1
      %v2202 = vrot.slane %v621, 1
      %v2203 = vsel %vm1066, %v2201, %v2202
      %s2205 = scalar_lea.vmem %s5, 512
      %v2206 = vld [vmem:[%s2205] sm:$0xf]
      %v2207 = vld [vmem:[%s2205 + $0x4] sm:$0xf]
      %v2208 = vld [vmem:[%s2205 + $0x8] sm:$0xf]
      %v2209 = vld [vmem:[%s2205 + $0xc] sm:$0xf]
      %v2210 = vld [vmem:[%s2205 + $0x10] sm:$0xf]
      %v2211 = vld [vmem:[%s2205 + $0x14] sm:$0xf]
      %v2212 = vld [vmem:[%s2205 + $0x18] sm:$0xf]
      %v2213 = vld [vmem:[%s2205 + $0x1c] sm:$0xf]
      %v2214 = vld [vmem:[%s2205 + $0x20] sm:$0xf]
      %v2215 = vld [vmem:[%s2205 + $0x24] sm:$0xf]
      %v2216 = vld [vmem:[%s2205 + $0x28] sm:$0xf]
      %v2217 = vld [vmem:[%s2205 + $0x2c] sm:$0xf]
      %v2218 = vld [vmem:[%s2205 + $0x30] sm:$0xf]
      %v2219 = vld [vmem:[%s2205 + $0x34] sm:$0xf]
      %v2220 = vld [vmem:[%s2205 + $0x38] sm:$0xf]
      %v2221 = vld [vmem:[%s2205 + $0x3c] sm:$0xf]
      %v2238 = vunpack.c.l.b16 %v2206
      %v2239 = vunpack.c.l.b16 %v2207
      %v2240 = vunpack.c.l.b16 %v2208
      %v2241 = vunpack.c.l.b16 %v2209
      %v2242 = vunpack.c.l.b16 %v2210
      %v2243 = vunpack.c.l.b16 %v2211
      %v2244 = vunpack.c.l.b16 %v2212
      %v2245 = vunpack.c.l.b16 %v2213
      %v2246 = vunpack.c.l.b16 %v2214
      %v2247 = vunpack.c.l.b16 %v2215
      %v2248 = vunpack.c.l.b16 %v2216
      %v2249 = vunpack.c.l.b16 %v2217
      %v2250 = vunpack.c.l.b16 %v2218
      %v2251 = vunpack.c.l.b16 %v2219
      %v2252 = vunpack.c.l.b16 %v2220
      %v2253 = vunpack.c.l.b16 %v2221
      %v2254 = vpack.c.b16 %v2239, %v2238
      %v2255 = vpack.c.b16 %v2241, %v2240
      %v2256 = vpack.c.b16 %v2243, %v2242
      %v2257 = vpack.c.b16 %v2245, %v2244
      %v2258 = vpack.c.b16 %v2247, %v2246
      %v2259 = vpack.c.b16 %v2249, %v2248
      %v2260 = vpack.c.b16 %v2251, %v2250
      %v2261 = vpack.c.b16 %v2253, %v2252
      %2270 = vmatprep.subr.bf16.mxu0 0
      %2271 = vmatpush1.bf16.msra.mxu0 %v2254
      %2272 = vmatprep.subr.bf16.mxu0 0
      %2273 = vmatpush1.bf16.msra.mxu0 %v2255
      %2274 = vmatprep.subr.bf16.mxu0 0
      %2275 = vmatpush1.bf16.msra.mxu0 %v2256
      %2276 = vmatprep.subr.bf16.mxu0 0
      %2277 = vmatpush1.bf16.msra.mxu0 %v2257
      %2278 = vmatprep.subr.bf16.mxu0 0
      %2279 = vmatpush1.bf16.msra.mxu0 %v2258
      %2280 = vmatprep.subr.bf16.mxu0 0
      %2281 = vmatpush1.bf16.msra.mxu0 %v2259
      %2282 = vmatprep.subr.bf16.mxu0 0
      %2283 = vmatpush1.bf16.msra.mxu0 %v2260
      %2284 = vmatprep.subr.bf16.mxu0 0
      %2285 = vmatpush1.bf16.msra.mxu0 %v2261
      %2286 = vmatprep.subr.bf16.mxu0 0
      %2287 = vmatpush1.bf16.msra.mxu0 0
      %2288 = vmatprep.subr.bf16.mxu0 0
      %2289 = vmatpush1.bf16.msra.mxu0 0
      %2290 = vmatprep.subr.bf16.mxu0 0
      %2291 = vmatpush1.bf16.msra.mxu0 0
      %2292 = vmatprep.subr.bf16.mxu0 0
      %2293 = vmatpush1.bf16.msra.mxu0 0
      %2294 = vmatprep.subr.bf16.mxu0 0
      %2295 = vmatpush1.bf16.msra.mxu0 0
      %2296 = vmatprep.subr.bf16.mxu0 0
      %2297 = vmatpush1.bf16.msra.mxu0 0
      %2298 = vmatprep.subr.bf16.mxu0 0
      %2299 = vmatpush1.bf16.msra.mxu0 0
      %2300 = vmatprep.subr.bf16.mxu0 0
      %2301 = vmatpush1.bf16.msra.mxu0 0
      %2302 = vmatprep.mubr.bf16.mxu0 0
      %2303 = vmatmul.mubr.bf16.gmra.mrb[0].mxu0 %v1075
      %v2304 = vpop.f32.mrb[0].mxu0
      %v2305 = vadd.f32 0.0, %v2304
      %v2306 = vpop.f32.mrb[0].mxu0
      %v2307 = vpop.f32.mrb[0].mxu0
      %v2308 = vadd.f32 0.0, %v2307
      %v2309 = vpop.f32.mrb[0].mxu0
      %2310 = vmatprep.mubr.bf16.mxu0 0
      %2311 = vmatmul.mubr.bf16.gmra.mrb[0].mxu0 %v1078
      %v2312 = vpop.f32.mrb[0].mxu0
      %v2313 = vadd.f32 0.0, %v2312
      %v2314 = vpop.f32.mrb[0].mxu0
      %v2315 = vpop.f32.mrb[0].mxu0
      %v2316 = vadd.f32 0.0, %v2315
      %v2317 = vpop.f32.mrb[0].mxu0
      %2318 = vmatprep.mubr.bf16.mxu0 0
      %2319 = vmatmul.mubr.bf16.gmra.mrb[0].mxu0 %v1081
      %v2320 = vpop.f32.mrb[0].mxu0
      %v2321 = vadd.f32 0.0, %v2320
      %v2322 = vpop.f32.mrb[0].mxu0
      %v2323 = vpop.f32.mrb[0].mxu0
      %v2324 = vadd.f32 0.0, %v2323
      %v2325 = vpop.f32.mrb[0].mxu0
      %2326 = vmatprep.mubr.bf16.mxu0 0
      %2327 = vmatmul.mubr.bf16.gmra.mrb[0].mxu0 %v1084
      %v2328 = vpop.f32.mrb[0].mxu0
      %v2329 = vadd.f32 0.0, %v2328
      %v2330 = vpop.f32.mrb[0].mxu0
      %v2331 = vpop.f32.mrb[0].mxu0
      %v2332 = vadd.f32 0.0, %v2331
      %v2333 = vpop.f32.mrb[0].mxu0
      %2334 = vmatprep.mubr.bf16.mxu0 0
      %2335 = vmatmul.mubr.bf16.gmra.mrb[0].mxu0 %v1087
      %v2336 = vpop.f32.mrb[0].mxu0
      %v2337 = vadd.f32 0.0, %v2336
      %v2338 = vpop.f32.mrb[0].mxu0
      %v2339 = vpop.f32.mrb[0].mxu0
      %v2340 = vadd.f32 0.0, %v2339
      %v2341 = vpop.f32.mrb[0].mxu0
      %2342 = vmatprep.mubr.bf16.mxu0 0
      %2343 = vmatmul.mubr.bf16.gmra.mrb[0].mxu0 %v1090
      %v2344 = vpop.f32.mrb[0].mxu0
      %v2345 = vadd.f32 0.0, %v2344
      %v2346 = vpop.f32.mrb[0].mxu0
      %v2347 = vpop.f32.mrb[0].mxu0
      %v2348 = vadd.f32 0.0, %v2347
      %v2349 = vpop.f32.mrb[0].mxu0
      %2350 = vmatprep.mubr.bf16.mxu0 0
      %2351 = vmatmul.mubr.bf16.gmra.mrb[0].mxu0 %v1650
      %v2352 = vpop.f32.mrb[0].mxu0
      %v2353 = vadd.f32 0.0, %v2352
      %v2354 = vpop.f32.mrb[0].mxu0
      %v2355 = vpop.f32.mrb[0].mxu0
      %v2356 = vadd.f32 0.0, %v2355
      %v2357 = vpop.f32.mrb[0].mxu0
      %2358 = vmatprep.mubr.bf16.mxu0 0
      %2359 = vmatmul.mubr.bf16.gmra.mrb[0].mxu0 %v2203
      %v2360 = vpop.f32.mrb[0].mxu0
      %v2361 = vadd.f32 0.0, %v2360
      %v2362 = vpop.f32.mrb[0].mxu0
      %v2363 = vpop.f32.mrb[0].mxu0
      %v2364 = vadd.f32 0.0, %v2363
      %v2365 = vpop.f32.mrb[0].mxu0
      %2366 = vdwg.mxu0
      %v2367 = vadd.f32 %v2183, %v2305
      %v2368 = vadd.f32 %v2184, %v2308
      %v2369 = vadd.f32 %v2185, %v2313
      %v2370 = vadd.f32 %v2186, %v2316
      %v2371 = vadd.f32 %v2187, %v2321
      %v2372 = vadd.f32 %v2188, %v2324
      %v2373 = vadd.f32 %v2189, %v2329
      %v2374 = vadd.f32 %v2190, %v2332
      %v2375 = vadd.f32 %v2191, %v2337
      %v2376 = vadd.f32 %v2192, %v2340
      %v2377 = vadd.f32 %v2193, %v2345
      %v2378 = vadd.f32 %v2194, %v2348
      %v2379 = vadd.f32 %v2195, %v2353
      %v2380 = vadd.f32 %v2196, %v2356
      %v2381 = vadd.f32 %v2197, %v2361
      %v2382 = vadd.f32 %v2198, %v2364
      %2383 = vst [vmem:[%s458] sm:$0xff] %v2367
      %2384 = vst [vmem:[%s458 + $0x8] sm:$0xff] %v2368
      %2385 = vst [vmem:[%s458 + $0x10] sm:$0xff] %v2369
      %2386 = vst [vmem:[%s458 + $0x18] sm:$0xff] %v2370
      %2387 = vst [vmem:[%s458 + $0x20] sm:$0xff] %v2371
      %2388 = vst [vmem:[%s458 + $0x28] sm:$0xff] %v2372
      %2389 = vst [vmem:[%s458 + $0x30] sm:$0xff] %v2373
      %2390 = vst [vmem:[%s458 + $0x38] sm:$0xff] %v2374
      %2391 = vst [vmem:[%s458 + $0x40] sm:$0xff] %v2375
      %2392 = vst [vmem:[%s458 + $0x48] sm:$0xff] %v2376
      %2393 = vst [vmem:[%s458 + $0x50] sm:$0xff] %v2377
      %2394 = vst [vmem:[%s458 + $0x58] sm:$0xff] %v2378
      %2395 = vst [vmem:[%s458 + $0x60] sm:$0xff] %v2379
      %2396 = vst [vmem:[%s458 + $0x68] sm:$0xff] %v2380
      %2397 = vst [vmem:[%s458 + $0x70] sm:$0xff] %v2381
      %2398 = vst [vmem:[%s458 + $0x78] sm:$0xff] %v2382
      %v2399 = vadd.f32 %v2367, %v2368
      %v2400 = vadd.f32 %v2399, %v2369
      %v2401 = vadd.f32 %v2400, %v2370
      %v2402 = vadd.f32 %v2401, %v2371
      %v2403 = vadd.f32 %v2402, %v2372
      %v2404 = vadd.f32 %v2403, %v2373
      %v2405 = vadd.f32 %v2404, %v2374
      %v2406 = vadd.f32 %v2405, %v2375
      %v2407 = vadd.f32 %v2406, %v2376
      %v2408 = vadd.f32 %v2407, %v2377
      %v2409 = vadd.f32 %v2408, %v2378
      %v2410 = vadd.f32 %v2409, %v2379
      %v2411 = vadd.f32 %v2410, %v2380
      %v2412 = vadd.f32 %v2411, %v2381
      %v2413 = vadd.f32 %v2412, %v2382
      %v2414 = vrot.slane %v2413, 4
      %v2415 = vadd.f32 %v2413, %v2414
      %v2416 = vrot.slane %v2415, 2
      %v2417 = vadd.f32 %v2415, %v2416
      %v2418 = vrot.slane %v2417, 1
      %v2419 = vadd.f32 %v2417, %v2418
      %v2420 = vmul.f32 %v2367, %v2367
      %v2421 = vmul.f32 %v2368, %v2368
      %v2422 = vmul.f32 %v2369, %v2369
      %v2423 = vmul.f32 %v2370, %v2370
      %v2424 = vmul.f32 %v2371, %v2371
      %v2425 = vmul.f32 %v2372, %v2372
      %v2426 = vmul.f32 %v2373, %v2373
      %v2427 = vmul.f32 %v2374, %v2374
      %v2428 = vmul.f32 %v2375, %v2375
      %v2429 = vmul.f32 %v2376, %v2376
      %v2430 = vmul.f32 %v2377, %v2377
      %v2431 = vmul.f32 %v2378, %v2378
      %v2432 = vmul.f32 %v2379, %v2379
      %v2433 = vmul.f32 %v2380, %v2380
      %v2434 = vmul.f32 %v2381, %v2381
      %v2435 = vmul.f32 %v2382, %v2382
      %v2436 = vadd.f32 %v2420, %v2421
      %v2437 = vadd.f32 %v2436, %v2422
      %v2438 = vadd.f32 %v2437, %v2423
      %v2439 = vadd.f32 %v2438, %v2424
      %v2440 = vadd.f32 %v2439, %v2425
      %v2441 = vadd.f32 %v2440, %v2426
      %v2442 = vadd.f32 %v2441, %v2427
      %v2443 = vadd.f32 %v2442, %v2428
      %v2444 = vadd.f32 %v2443, %v2429
      %v2445 = vadd.f32 %v2444, %v2430
      %v2446 = vadd.f32 %v2445, %v2431
      %v2447 = vadd.f32 %v2446, %v2432
      %v2448 = vadd.f32 %v2447, %v2433
      %v2449 = vadd.f32 %v2448, %v2434
      %v2450 = vadd.f32 %v2449, %v2435
      %v2451 = vrot.slane %v2450, 4
      %v2452 = vadd.f32 %v2450, %v2451
      %v2453 = vrot.slane %v2452, 2
      %v2454 = vadd.f32 %v2452, %v2453
      %v2455 = vrot.slane %v2454, 1
      %v2456 = vadd.f32 %v2454, %v2455
      %v2457 = vsel %vm521, %v2419, %v2456
      %vm2458 = vcmask 1041408
      %v2459 = vsel %vm2458, %v2457, 0.0
      %2460 = vst [vmem:[%s467] sm:$0xff] %v2459
      %s2461 = smul.u32 8, %s24
      %p2462 = scmp.lt.s32.totalorder %s23, 1
      %s2463 = scalar_select %p2462, %s23, 1
      %p2464 = scmp.lt.s32.totalorder %s2461, 15
      %s2465 = scalar_select %p2464, %s2461, 15
      %s2466 = smul.addr %s2465, 2
      %s2467 = smul.addr %s2463, 32
      %s2468 = sadd.s32 %s2466, %s2467
      %s2469 = smul.addr %s2468, 8
      %s2470 = scalar_lea.vmem %s6, %s2469
      %p2471 = scmp.lt.s32.totalorder %s23, 1
      %s2472 = scalar_select %p2471, %s23, 1
      %p2473 = scmp.lt.s32.totalorder %s24, 1
      %s2474 = scalar_select %p2473, %s24, 1
      %s2475 = smul.addr %s2472, 2
      %s2476 = sadd.s32 %s2474, %s2475
      %s2477 = smul.addr %s2476, 8
      %s2478 = scalar_lea.vmem %s7, %s2477
      // Predicated region
      $region45: #{conv_block_forward.2} parent=43 // pred_check
        %p2479 = pneg %p214
      $region46: #{conv_block_forward.2} parent=43 // pred_check_branch
        %2481 = sbr.rel (%p2479) target = $region48
      $region47: #{conv_block_forward.2} parent=43 // pred_region
        %s2482 = smul.u32 8, %s24
      $region48: #{conv_block_forward.2} parent=43 // pred_fallthru
        _
      // Predicated region
      $region49: #{conv_block_forward.2} parent=43 // pred_check
        %p2483 = pneg %p242
      $region50: #{conv_block_forward.2} parent=43 // pred_check_branch
        %2485 = sbr.rel (%p2483) target = $region52
      $region51: #{conv_block_forward.2} parent=43 // pred_region
        _
      $region52: #{conv_block_forward.2} parent=43 // pred_fallthru
        _
    $region44: #{conv_block_forward.2} parent=5 // pred_fallthru
      _
    %p2486 = scmp.le.s32.totalorder 2, %s14
    // Predicated region
    $region53: #{conv_block_forward.2} parent=5 // pred_check
      %p2487 = pneg %p2486
    $region54: #{conv_block_forward.2} parent=5 // pred_check_branch
      %2489 = sbr.rel (%p2487) target = $region56
    $region55: #{conv_block_forward.2} parent=5 // pred_region
      %s2490 = ssub.s32 %s14, 2
      // Predicated region
      $region57: #{conv_block_forward.2} parent=55 // pred_check
        %p2491 = pneg %p220
      $region58: #{conv_block_forward.2} parent=55 // pred_check_branch
        %2493 = sbr.rel (%p2491) target = $region60
      $region59: #{conv_block_forward.2} parent=55 // pred_region
        %s2494 = smul.u32 8, %s26
        %p2495 = scmp.lt.s32.totalorder %s25, 1
        %s2496 = scalar_select %p2495, %s25, 1
        %p2497 = scmp.lt.s32.totalorder %s2494, 15
        %s2498 = scalar_select %p2497, %s2494, 15
        %s2499 = smul.addr %s2498, 2
        %s2500 = smul.addr %s2496, 32
        %s2501 = sadd.s32 %s2499, %s2500
        %s2502 = smul.addr %s2501, 8
        %s2503 = scalar_lea.vmem %s6, %s2502
      $region60: #{conv_block_forward.2} parent=55 // pred_fallthru
        _
      // Predicated region
      $region61: #{conv_block_forward.2} parent=55 // pred_check
        %p2504 = pneg %p248
      $region62: #{conv_block_forward.2} parent=55 // pred_check_branch
        %2506 = sbr.rel (%p2504) target = $region64
      $region63: #{conv_block_forward.2} parent=55 // pred_region
        %p2507 = scmp.lt.s32.totalorder %s25, 1
        %s2508 = scalar_select %p2507, %s25, 1
        %p2509 = scmp.lt.s32.totalorder %s26, 1
        %s2510 = scalar_select %p2509, %s26, 1
        %s2511 = smul.addr %s2508, 2
        %s2512 = sadd.s32 %s2510, %s2511
        %s2513 = smul.addr %s2512, 8
        %s2514 = scalar_lea.vmem %s7, %s2513
      $region64: #{conv_block_forward.2} parent=55 // pred_fallthru
        _
    $region56: #{conv_block_forward.2} parent=5 // pred_fallthru
      _
  $region6: #{conv_block_forward.2} parent=0 // loop_footer
    %s18 = sadd.s32 1, %s14
  $region7: #{conv_block_forward.2} parent=0 // loop_footer_branch
    %13 = sbr.rel target = $region3
  $region8: #{conv_block_forward.2} parent=0 // loop_exit
    _

// kernel: conv_block_forward.3
$region0: #{conv_block_forward.3}
  #allocation0 [shape = 'u32[]', space=smem, size = 0x4, offset = 0x4, fixed_abs, tag = 'smem constant byte address 0x4 - core index']
  #allocation1 [shape = 'u32[144,128]{1,0:T(1,128)}', space=vmem, size = 0x12000, scoped, tag = 'internal scratch']
  %s0 = inlined_call_operand.vmem [shape: f32[2,16,16,128], index: 0, kind: input, shape index: {}, may-alias: {0,1,2}]
  %s1 = inlined_call_operand.vmem [shape: f32[2,16,16,128], index: 1, kind: input, shape index: {}, may-alias: {0,1,2}]
  %s2 = inlined_call_operand.vmem [shape: f32[2,16,16,128], index: 2, kind: input, shape index: {}, may-alias: {0,1,2}]
  %s3 = inlined_call_operand.vmem [shape: f32[1,128], index: 3, kind: input, shape index: {}]
  %s4 = inlined_call_operand.vmem [shape: f32[1,128], index: 4, kind: input, shape index: {}]
  %s5 = inlined_call_operand.vmem [shape: bf16[9,128,128], index: 5, kind: input, shape index: {}]
  %s6 = inlined_call_operand.vmem [shape: f32[2,16,16,128], index: 6, kind: output, shape index: {0}]
  %s7 = inlined_call_operand.vmem [shape: f32[2,2,8,128], index: 7, kind: output, shape index: {1}]
  %8 = xla_tuple %s6, %s7
  %s9 = sld [smem:[#allocation0]]
  $region65: #{conv_block_forward.3} parent=0
    _
  %s11 = ssub.s32 1, %s9
  %s12 = scalar_select 0, %s11, %s9
  loop: start=0, step=1, limit=6
  $region2: #{conv_block_forward.3} parent=0 // loop_pre_header
    _
  $region3: #{conv_block_forward.3} parent=0 // loop_header
    %s14 = sphi 0, %s18
    %p15 = scmp.ge.s32.totalorder %s14, 6
    %s21 = sphi 0, %s33
    %s22 = sphi 0, %s29
    %s23 = sphi 0, %s21
    %s24 = sphi 0, %s22
    %s25 = sphi 0, %s23
    %s26 = sphi 0, %s24
    %s38 = sphi 0, %s40
    %s41 = sphi 0, %s38
    %s42 = sphi 0, %s41
    %s58 = sphi 0, %s42
    %s74 = sphi 0, %s76
    %s77 = sphi 0, %s74
    %s78 = sphi 0, %s77
    %s94 = sphi 0, %s78
    %s110 = sphi 0, %s112
    %s113 = sphi 0, %s110
    %s114 = sphi 0, %s113
    %s130 = sphi 0, %s114
    %s134 = sphi 0, %s134
    %s136 = sphi 0, %s134
    %s137 = sphi 0, %s136
    %s151 = sphi 0, %s137
    %s155 = sphi 0, %s155
    %s157 = sphi 0, %s155
    %s158 = sphi 0, %s157
    %s172 = sphi 0, %s158
    %s176 = sphi 0, %s176
    %s178 = sphi 0, %s176
    %s179 = sphi 0, %s178
    %s193 = sphi 0, %s179
    %s201 = sphi 0, %s203
    %s204 = sphi 0, %s201
    %s205 = sphi 0, %s204
    %s221 = sphi 0, %s205
    %s229 = sphi 0, %s231
    %s232 = sphi 0, %s229
    %s233 = sphi 0, %s232
    %s249 = sphi 0, %s233
  $region4: #{conv_block_forward.3} parent=0 // loop_header_branch
    %17 = sbr.rel (%p15) target = $region8
  $region5: #{conv_block_forward.3} parent=0 // loop_body
    %s19 = ssub.s32 %s14, 1
    %s20 = ssub.s32 %s14, 2
    %s27 = sadd.s32 1, %s22
    %p28 = scmp.ge.s32.totalorder %s27, 2
    %s29 = scalar_select %p28, 0, %s27
    %s30 = sadd.s32 1, %s21
    %s31 = scalar_select %p28, %s30, %s21
    %p32 = scmp.ge.s32.totalorder %s31, 2
    %s33 = scalar_select %p32, 0, %s31
    %s34 = ssub.s32 %s21, %s33
    %s35 = ssub.s32 %s22, %s29
    %s36 = sor.u32 %s34, %s35
    %p37 = scmp.eq.s32.totalorder %s36, 0
    %s39 = sadd.s32 %s38, 1
    %s40 = scalar_select %p37, %s38, %s39
    %p43 = pneg %p37
    %p44 = scmp.eq.s32.totalorder %s14, 3
    %p45 = por %p43, %p44
    %p46 = scmp.ne.s32.totalorder %s38, %s41
    %p47 = scmp.eq.s32.totalorder %s14, 0
    %p48 = por %p46, %p47
    %p49 = scmp.ne.s32.totalorder %s38, %s41
    %p50 = scmp.eq.s32.totalorder %s19, 3
    %p51 = por %p49, %p50
    %p52 = scmp.ne.s32.totalorder %s41, %s42
    %p53 = scmp.eq.s32.totalorder %s19, 0
    %p54 = por %p52, %p53
    %p55 = scmp.ne.s32.totalorder %s41, %s42
    %p56 = scmp.eq.s32.totalorder %s20, 3
    %p57 = por %p55, %p56
    %p59 = scmp.ne.s32.totalorder %s42, %s58
    %p60 = scmp.eq.s32.totalorder %s20, 0
    %p61 = por %p59, %p60
    %s62 = smul.u32 %s22, 8
    %s63 = ssub.s32 %s62, 1
    %p64 = scmp.gt.s32.totalorder %s63, 0
    %s65 = scalar_select %p64, %s63, 0
    %s66 = smul.u32 %s29, 8
    %s67 = ssub.s32 %s66, 1
    %p68 = scmp.gt.s32.totalorder %s67, 0
    %s69 = scalar_select %p68, %s67, 0
    %s70 = ssub.s32 %s21, %s33
    %s71 = ssub.s32 %s65, %s69
    %s72 = sor.u32 %s70, %s71
    %p73 = scmp.eq.s32.totalorder %s72, 0
    %s75 = sadd.s32 %s74, 1
    %s76 = scalar_select %p73, %s74, %s75
    %p79 = pneg %p73
    %p80 = scmp.eq.s32.totalorder %s14, 3
    %p81 = por %p79, %p80
    %p82 = scmp.ne.s32.totalorder %s74, %s77
    %p83 = scmp.eq.s32.totalorder %s14, 0
    %p84 = por %p82, %p83
    %p85 = scmp.ne.s32.totalorder %s74, %s77
    %p86 = scmp.eq.s32.totalorder %s19, 3
    %p87 = por %p85, %p86
    %p88 = scmp.ne.s32.totalorder %s77, %s78
    %p89 = scmp.eq.s32.totalorder %s19, 0
    %p90 = por %p88, %p89
    %p91 = scmp.ne.s32.totalorder %s77, %s78
    %p92 = scmp.eq.s32.totalorder %s20, 3
    %p93 = por %p91, %p92
    %p95 = scmp.ne.s32.totalorder %s78, %s94
    %p96 = scmp.eq.s32.totalorder %s20, 0
    %p97 = por %p95, %p96
    %s98 = sadd.s32 %s22, 1
    %s99 = smul.u32 %s98, 8
    %p100 = scmp.lt.s32.totalorder %s99, 15
    %s101 = scalar_select %p100, %s99, 15
    %s102 = sadd.s32 %s29, 1
    %s103 = smul.u32 %s102, 8
    %p104 = scmp.lt.s32.totalorder %s103, 15
    %s105 = scalar_select %p104, %s103, 15
    %s106 = ssub.s32 %s21, %s33
    %s107 = ssub.s32 %s101, %s105
    %s108 = sor.u32 %s106, %s107
    %p109 = scmp.eq.s32.totalorder %s108, 0
    %s111 = sadd.s32 %s110, 1
    %s112 = scalar_select %p109, %s110, %s111
    %p115 = pneg %p109
    %p116 = scmp.eq.s32.totalorder %s14, 3
    %p117 = por %p115, %p116
    %p118 = scmp.ne.s32.totalorder %s110, %s113
    %p119 = scmp.eq.s32.totalorder %s14, 0
    %p120 = por %p118, %p119
    %p121 = scmp.ne.s32.totalorder %s110, %s113
    %p122 = scmp.eq.s32.totalorder %s19, 3
    %p123 = por %p121, %p122
    %p124 = scmp.ne.s32.totalorder %s113, %s114
    %p125 = scmp.eq.s32.totalorder %s19, 0
    %p126 = por %p124, %p125
    %p127 = scmp.ne.s32.totalorder %s113, %s114
    %p128 = scmp.eq.s32.totalorder %s20, 3
    %p129 = por %p127, %p128
    %p131 = scmp.ne.s32.totalorder %s114, %s130
    %p132 = scmp.eq.s32.totalorder %s20, 0
    %p133 = por %p131, %p132
    %s135 = sadd.s32 %s134, 1
    %p138 = scmp.eq.s32.totalorder %s14, 3
    %p139 = scmp.ne.s32.totalorder %s134, %s136
    %p140 = scmp.eq.s32.totalorder %s14, 0
    %p141 = por %p139, %p140
    %p142 = scmp.ne.s32.totalorder %s134, %s136
    %p143 = scmp.eq.s32.totalorder %s19, 3
    %p144 = por %p142, %p143
    %p145 = scmp.ne.s32.totalorder %s136, %s137
    %p146 = scmp.eq.s32.totalorder %s19, 0
    %p147 = por %p145, %p146
    %p148 = scmp.ne.s32.totalorder %s136, %s137
    %p149 = scmp.eq.s32.totalorder %s20, 3
    %p150 = por %p148, %p149
    %p152 = scmp.ne.s32.totalorder %s137, %s151
    %p153 = scmp.eq.s32.totalorder %s20, 0
    %p154 = por %p152, %p153
    %s156 = sadd.s32 %s155, 1
    %p159 = scmp.eq.s32.totalorder %s14, 3
    %p160 = scmp.ne.s32.totalorder %s155, %s157
    %p161 = scmp.eq.s32.totalorder %s14, 0
    %p162 = por %p160, %p161
    %p163 = scmp.ne.s32.totalorder %s155, %s157
    %p164 = scmp.eq.s32.totalorder %s19, 3
    %p165 = por %p163, %p164
    %p166 = scmp.ne.s32.totalorder %s157, %s158
    %p167 = scmp.eq.s32.totalorder %s19, 0
    %p168 = por %p166, %p167
    %p169 = scmp.ne.s32.totalorder %s157, %s158
    %p170 = scmp.eq.s32.totalorder %s20, 3
    %p171 = por %p169, %p170
    %p173 = scmp.ne.s32.totalorder %s158, %s172
    %p174 = scmp.eq.s32.totalorder %s20, 0
    %p175 = por %p173, %p174
    %s177 = sadd.s32 %s176, 1
    %p180 = scmp.eq.s32.totalorder %s14, 3
    %p181 = scmp.ne.s32.totalorder %s176, %s178
    %p182 = scmp.eq.s32.totalorder %s14, 0
    %p183 = por %p181, %p182
    %p184 = scmp.ne.s32.totalorder %s176, %s178
    %p185 = scmp.eq.s32.totalorder %s19, 3
    %p186 = por %p184, %p185
    %p187 = scmp.ne.s32.totalorder %s178, %s179
    %p188 = scmp.eq.s32.totalorder %s19, 0
    %p189 = por %p187, %p188
    %p190 = scmp.ne.s32.totalorder %s178, %s179
    %p191 = scmp.eq.s32.totalorder %s20, 3
    %p192 = por %p190, %p191
    %p194 = scmp.ne.s32.totalorder %s179, %s193
    %p195 = scmp.eq.s32.totalorder %s20, 0
    %p196 = por %p194, %p195
    %s197 = ssub.s32 %s21, %s33
    %s198 = ssub.s32 %s22, %s29
    %s199 = sor.u32 %s197, %s198
    %p200 = scmp.eq.s32.totalorder %s199, 0
    %s202 = sadd.s32 %s201, 1
    %s203 = scalar_select %p200, %s201, %s202
    %p206 = pneg %p200
    %p207 = scmp.eq.s32.totalorder %s14, 3
    %p208 = por %p206, %p207
    %p209 = scmp.ne.s32.totalorder %s201, %s204
    %p210 = scmp.eq.s32.totalorder %s14, 0
    %p211 = por %p209, %p210
    %p212 = scmp.ne.s32.totalorder %s201, %s204
    %p213 = scmp.eq.s32.totalorder %s19, 3
    %p214 = por %p212, %p213
    %p215 = scmp.ne.s32.totalorder %s204, %s205
    %p216 = scmp.eq.s32.totalorder %s19, 0
    %p217 = por %p215, %p216
    %p218 = scmp.ne.s32.totalorder %s204, %s205
    %p219 = scmp.eq.s32.totalorder %s20, 3
    %p220 = por %p218, %p219
    %p222 = scmp.ne.s32.totalorder %s205, %s221
    %p223 = scmp.eq.s32.totalorder %s20, 0
    %p224 = por %p222, %p223
    %s225 = ssub.s32 %s21, %s33
    %s226 = ssub.s32 %s22, %s29
    %s227 = sor.u32 %s225, %s226
    %p228 = scmp.eq.s32.totalorder %s227, 0
    %s230 = sadd.s32 %s229, 1
    %s231 = scalar_select %p228, %s229, %s230
    %p234 = pneg %p228
    %p235 = scmp.eq.s32.totalorder %s14, 3
    %p236 = por %p234, %p235
    %p237 = scmp.ne.s32.totalorder %s229, %s232
    %p238 = scmp.eq.s32.totalorder %s14, 0
    %p239 = por %p237, %p238
    %p240 = scmp.ne.s32.totalorder %s229, %s232
    %p241 = scmp.eq.s32.totalorder %s19, 3
    %p242 = por %p240, %p241
    %p243 = scmp.ne.s32.totalorder %s232, %s233
    %p244 = scmp.eq.s32.totalorder %s19, 0
    %p245 = por %p243, %p244
    %p246 = scmp.ne.s32.totalorder %s232, %s233
    %p247 = scmp.eq.s32.totalorder %s20, 3
    %p248 = por %p246, %p247
    %p250 = scmp.ne.s32.totalorder %s233, %s249
    %p251 = scmp.eq.s32.totalorder %s20, 0
    %p252 = por %p250, %p251
    %p253 = scmp.le.s32.totalorder 1, %s14
    %p254 = scmp.lt.s32.totalorder %s14, 5
    %p255 = pnand %p253, %p254
    %p256 = pneg %p255
    // Predicated region
    $region9: #{conv_block_forward.3} parent=5 // pred_check
      _
    $region10: #{conv_block_forward.3} parent=5 // pred_check_branch
      %258 = sbr.rel (%p255) target = $region12
    $region11: #{conv_block_forward.3} parent=5 // pred_region
      %s259 = ssub.s32 %s14, 1
      // Predicated region
      $region13: #{conv_block_forward.3} parent=11 // pred_check
        %p260 = pneg %p147
      $region14: #{conv_block_forward.3} parent=11 // pred_check_branch
        %262 = sbr.rel (%p260) target = $region16
      $region15: #{conv_block_forward.3} parent=11 // pred_region
        _
      $region16: #{conv_block_forward.3} parent=11 // pred_fallthru
        _
      // Predicated region
      $region17: #{conv_block_forward.3} parent=11 // pred_check
        %p263 = pneg %p168
      $region18: #{conv_block_forward.3} parent=11 // pred_check_branch
        %265 = sbr.rel (%p263) target = $region20
      $region19: #{conv_block_forward.3} parent=11 // pred_region
        _
      $region20: #{conv_block_forward.3} parent=11 // pred_fallthru
        _
      // Predicated region
      $region21: #{conv_block_forward.3} parent=11 // pred_check
        %p266 = pneg %p189
      $region22: #{conv_block_forward.3} parent=11 // pred_check_branch
        %268 = sbr.rel (%p266) target = $region24
      $region23: #{conv_block_forward.3} parent=11 // pred_region
        _
      $region24: #{conv_block_forward.3} parent=11 // pred_fallthru
        _
    $region12: #{conv_block_forward.3} parent=5 // pred_fallthru
      _
    %p269 = scmp.lt.s32.totalorder %s14, 4
    // Predicated region
    $region25: #{conv_block_forward.3} parent=5 // pred_check
      %p270 = pneg %p269
    $region26: #{conv_block_forward.3} parent=5 // pred_check_branch
      %272 = sbr.rel (%p270) target = $region28
    $region27: #{conv_block_forward.3} parent=5 // pred_region
      // Predicated region
      $region29: #{conv_block_forward.3} parent=27 // pred_check
        %p273 = pneg %p48
      $region30: #{conv_block_forward.3} parent=27 // pred_check_branch
        %275 = sbr.rel (%p273) target = $region32
      $region31: #{conv_block_forward.3} parent=27 // pred_region
        %s276 = smul.u32 8, %s22
        %p277 = scmp.lt.s32.totalorder %s21, 1
        %s278 = scalar_select %p277, %s21, 1
        %p279 = scmp.lt.s32.totalorder %s276, 15
        %s280 = scalar_select %p279, %s276, 15
        %s281 = smul.addr %s280, 2
        %s282 = smul.addr %s278, 32
        %s283 = sadd.s32 %s281, %s282
        %s284 = smul.addr %s283, 8
        %s285 = scalar_lea.vmem %s0, %s284
        %s286 = smul.u32 8, %s22
      $region32: #{conv_block_forward.3} parent=27 // pred_fallthru
        _
      // Predicated region
      $region33: #{conv_block_forward.3} parent=27 // pred_check
        %p287 = pneg %p84
      $region34: #{conv_block_forward.3} parent=27 // pred_check_branch
        %289 = sbr.rel (%p287) target = $region36
      $region35: #{conv_block_forward.3} parent=27 // pred_region
        %s290 = smul.u32 %s22, 8
        %s291 = ssub.s32 %s290, 1
        %p292 = scmp.gt.s32.totalorder %s291, 0
        %s293 = scalar_select %p292, %s291, 0
        %p294 = scmp.lt.s32.totalorder %s21, 1
        %s295 = scalar_select %p294, %s21, 1
        %p296 = scmp.lt.s32.totalorder %s293, 15
        %s297 = scalar_select %p296, %s293, 15
        %s298 = smul.addr %s297, 2
        %s299 = smul.addr %s295, 32
        %s300 = sadd.s32 %s298, %s299
        %s301 = smul.addr %s300, 8
        %s302 = scalar_lea.vmem %s1, %s301
        %s303 = smul.u32 %s22, 8
        %s304 = ssub.s32 %s303, 1
        %p305 = scmp.gt.s32.totalorder %s304, 0
        %s306 = scalar_select %p305, %s304, 0
      $region36: #{conv_block_forward.3} parent=27 // pred_fallthru
        _
      // Predicated region
      $region37: #{conv_block_forward.3} parent=27 // pred_check
        %p307 = pneg %p120
      $region38: #{conv_block_forward.3} parent=27 // pred_check_branch
        %309 = sbr.rel (%p307) target = $region40
      $region39: #{conv_block_forward.3} parent=27 // pred_region
        %s310 = sadd.s32 %s22, 1
        %s311 = smul.u32 %s310, 8
        %p312 = scmp.lt.s32.totalorder %s311, 15
        %s313 = scalar_select %p312, %s311, 15
        %p314 = scmp.lt.s32.totalorder %s21, 1
        %s315 = scalar_select %p314, %s21, 1
        %p316 = scmp.lt.s32.totalorder %s313, 15
        %s317 = scalar_select %p316, %s313, 15
        %s318 = smul.addr %s317, 2
        %s319 = smul.addr %s315, 32
        %s320 = sadd.s32 %s318, %s319
        %s321 = smul.addr %s320, 8
        %s322 = scalar_lea.vmem %s2, %s321
        %s323 = sadd.s32 %s22, 1
        %s324 = smul.u32 %s323, 8
        %p325 = scmp.lt.s32.totalorder %s324, 15
        %s326 = scalar_select %p325, %s324, 15
      $region40: #{conv_block_forward.3} parent=27 // pred_fallthru
        _
    $region28: #{conv_block_forward.3} parent=5 // pred_fallthru
      _
    %p327 = scmp.le.s32.totalorder 1, %s14
    %p328 = scmp.lt.s32.totalorder %s14, 5
    %p329 = pnand %p327, %p328
    %p330 = pneg %p329
    // Predicated region
    $region41: #{conv_block_forward.3} parent=5 // pred_check
      _
    $region42: #{conv_block_forward.3} parent=5 // pred_check_branch
      %332 = sbr.rel (%p329) target = $region44
    $region43: #{conv_block_forward.3} parent=5 // pred_region
      %s333 = ssub.s32 %s14, 1
      %s334 = smul.u32 8, %s24
      %p335 = scmp.lt.s32.totalorder %s23, 1
      %s336 = scalar_select %p335, %s23, 1
      %p337 = scmp.lt.s32.totalorder %s334, 15
      %s338 = scalar_select %p337, %s334, 15
      %s339 = smul.addr %s338, 2
      %s340 = smul.addr %s336, 32
      %s341 = sadd.s32 %s339, %s340
      %s342 = smul.addr %s341, 8
      %s343 = scalar_lea.vmem %s0, %s342
      %p344 = pneg %p54
      %p345 = pneg %p51
      %s346 = smul.u32 %s24, 8
      %s347 = ssub.s32 %s346, 1
      %p348 = scmp.gt.s32.totalorder %s347, 0
      %s349 = scalar_select %p348, %s347, 0
      %p350 = scmp.lt.s32.totalorder %s23, 1
      %s351 = scalar_select %p350, %s23, 1
      %p352 = scmp.lt.s32.totalorder %s349, 15
      %s353 = scalar_select %p352, %s349, 15
      %s354 = smul.addr %s353, 2
      %s355 = smul.addr %s351, 32
      %s356 = sadd.s32 %s354, %s355
      %s357 = smul.addr %s356, 8
      %s358 = scalar_lea.vmem %s1, %s357
      %p359 = pneg %p90
      %p360 = pneg %p87
      %s361 = sadd.s32 %s24, 1
      %s362 = smul.u32 %s361, 8
      %p363 = scmp.lt.s32.totalorder %s362, 15
      %s364 = scalar_select %p363, %s362, 15
      %p365 = scmp.lt.s32.totalorder %s23, 1
      %s366 = scalar_select %p365, %s23, 1
      %p367 = scmp.lt.s32.totalorder %s364, 15
      %s368 = scalar_select %p367, %s364, 15
      %s369 = smul.addr %s368, 2
      %s370 = smul.addr %s366, 32
      %s371 = sadd.s32 %s369, %s370
      %s372 = smul.addr %s371, 8
      %s373 = scalar_lea.vmem %s2, %s372
      %p374 = pneg %p126
      %p375 = pneg %p123
      %p376 = pneg %p147
      %p377 = pneg %p144
      %p378 = pneg %p168
      %p379 = pneg %p165
      %p380 = pneg %p189
      %p381 = pneg %p186
      %p382 = pneg %p217
      %p383 = pneg %p214
      %s384 = smul.u32 8, %s24
      %p385 = scmp.lt.s32.totalorder %s23, 1
      %s386 = scalar_select %p385, %s23, 1
      %p387 = scmp.lt.s32.totalorder %s384, 15
      %s388 = scalar_select %p387, %s384, 15
      %s389 = smul.addr %s388, 2
      %s390 = smul.addr %s386, 32
      %s391 = sadd.s32 %s389, %s390
      %s392 = smul.addr %s391, 8
      %s393 = scalar_lea.vmem %s6, %s392
      %p394 = pneg %p245
      %p395 = pneg %p242
      %p396 = scmp.lt.s32.totalorder %s23, 1
      %s397 = scalar_select %p396, %s23, 1
      %p398 = scmp.lt.s32.totalorder %s24, 1
      %s399 = scalar_select %p398, %s24, 1
      %s400 = smul.addr %s397, 2
      %s401 = sadd.s32 %s399, %s400
      %s402 = smul.addr %s401, 8
      %s403 = scalar_lea.vmem %s7, %s402
      %s404 = smul.u32 8, %s24
      %p405 = scmp.lt.s32.totalorder %s23, 1
      %s406 = scalar_select %p405, %s23, 1
      %p407 = scmp.lt.s32.totalorder %s404, 15
      %s408 = scalar_select %p407, %s404, 15
      %s409 = smul.addr %s408, 2
      %s410 = smul.addr %s406, 32
      %s411 = sadd.s32 %s409, %s410
      %s412 = smul.addr %s411, 8
      %s413 = scalar_lea.vmem %s0, %s412
      %s414 = smul.u32 8, %s24
      %s415 = smul.u32 %s24, 8
      %s416 = ssub.s32 %s415, 1
      %p417 = scmp.gt.s32.totalorder %s416, 0
      %s418 = scalar_select %p417, %s416, 0
      %p419 = scmp.lt.s32.totalorder %s23, 1
      %s420 = scalar_select %p419, %s23, 1
      %p421 = scmp.lt.s32.totalorder %s418, 15
      %s422 = scalar_select %p421, %s418, 15
      %s423 = smul.addr %s422, 2
      %s424 = smul.addr %s420, 32
      %s425 = sadd.s32 %s423, %s424
      %s426 = smul.addr %s425, 8
      %s427 = scalar_lea.vmem %s1, %s426
      %s428 = smul.u32 %s24, 8
      %s429 = ssub.s32 %s428, 1
      %p430 = scmp.gt.s32.totalorder %s429, 0
      %s431 = scalar_select %p430, %s429, 0
      %s432 = sadd.s32 %s24, 1
      %s433 = smul.u32 %s432, 8
      %p434 = scmp.lt.s32.totalorder %s433, 15
      %s435 = scalar_select %p434, %s433, 15
      %p436 = scmp.lt.s32.totalorder %s23, 1
      %s437 = scalar_select %p436, %s23, 1
      %p438 = scmp.lt.s32.totalorder %s435, 15
      %s439 = scalar_select %p438, %s435, 15
      %s440 = smul.addr %s439, 2
      %s441 = smul.addr %s437, 32
      %s442 = sadd.s32 %s440, %s441
      %s443 = smul.addr %s442, 8
      %s444 = scalar_lea.vmem %s2, %s443
      %s445 = sadd.s32 %s24, 1
      %s446 = smul.u32 %s445, 8
      %p447 = scmp.lt.s32.totalorder %s446, 15
      %s448 = scalar_select %p447, %s446, 15
      %s449 = smul.u32 8, %s24
      %p450 = scmp.lt.s32.totalorder %s23, 1
      %s451 = scalar_select %p450, %s23, 1
      %p452 = scmp.lt.s32.totalorder %s449, 15
      %s453 = scalar_select %p452, %s449, 15
      %s454 = smul.addr %s453, 2
      %s455 = smul.addr %s451, 32
      %s456 = sadd.s32 %s454, %s455
      %s457 = smul.addr %s456, 8
      %s458 = scalar_lea.vmem %s6, %s457
      %s459 = smul.u32 8, %s24
      %p460 = scmp.lt.s32.totalorder %s23, 1
      %s461 = scalar_select %p460, %s23, 1
      %p462 = scmp.lt.s32.totalorder %s24, 1
      %s463 = scalar_select %p462, %s24, 1
      %s464 = smul.addr %s461, 2
      %s465 = sadd.s32 %s463, %s464
      %s466 = smul.addr %s465, 8
      %s467 = scalar_lea.vmem %s7, %s466
      %p469 = scmp.gt.s32.totalorder %s24, 0
      %v470 = vld [vmem:[%s427] sm:$0xff]
      %v471 = vld [vmem:[%s427 + $0x8] sm:$0xff]
      %v472 = vld [vmem:[%s3] sm:$0x1]
      %v474 = vlaneseq
      %v475 = vshrl.u32 %v474, 7
      %v476 = vsub.s32 0, %v475
      %v477 = vrot.slane %v472, %v476
      %v479 = vmul.f32 %v470, %v477
      %v480 = vmul.f32 %v471, %v477
      %v481 = vld [vmem:[%s4] sm:$0x1]
      %v483 = vlaneseq
      %v484 = vshrl.u32 %v483, 7
      %v485 = vsub.s32 0, %v484
      %v486 = vrot.slane %v481, %v485
      %v488 = vadd.f32 %v479, %v486
      %v489 = vadd.f32 %v480, %v486
      %v490 = vmax.f32 %v488, 0.0
      %v491 = vmax.f32 %v489, 0.0
      %s492 = scalar_select %p469, 1, 0
      %v493 = vstv %s492
      %vm494 = vcmp.eq.s32.totalorder %v493, 1
      %v495 = vsel %vm494, %v490, 0.0
      %v496 = vsel %vm494, %v491, 0.0
      %p497 = scmp.lt.s32.totalorder %s24, 1
      %v498 = vld [vmem:[%s444] sm:$0xff]
      %v499 = vld [vmem:[%s444 + $0x8] sm:$0xff]
      %v500 = vmul.f32 %v498, %v477
      %v501 = vmul.f32 %v499, %v477
      %v502 = vadd.f32 %v500, %v486
      %v503 = vadd.f32 %v501, %v486
      %v504 = vmax.f32 %v502, 0.0
      %v505 = vmax.f32 %v503, 0.0
      %s506 = scalar_select %p497, 1, 0
      %v507 = vstv %s506
      %vm508 = vcmp.eq.s32.totalorder %v507, 1
      %v509 = vsel %vm508, %v504, 0.0
      %v510 = vsel %vm508, %v505, 0.0
      %v511 = vld [vmem:[%s413] sm:$0xff]
      %v512 = vld [vmem:[%s413 + $0x8] sm:$0xff]
      %v513 = vld [vmem:[%s413 + $0x10] sm:$0xff]
      %v514 = vld [vmem:[%s413 + $0x18] sm:$0xff]
      %v515 = vld [vmem:[%s413 + $0x20] sm:$0xff]
      %v516 = vld [vmem:[%s413 + $0x28] sm:$0xff]
      %v517 = vld [vmem:[%s413 + $0x30] sm:$0xff]
      %v518 = vld [vmem:[%s413 + $0x38] sm:$0xff]
      %v519 = vld [vmem:[%s413 + $0x40] sm:$0xff]
      %v520 = vld [vmem:[%s413 + $0x48] sm:$0xff]
      %v521 = vld [vmem:[%s413 + $0x50] sm:$0xff]
      %v522 = vld [vmem:[%s413 + $0x58] sm:$0xff]
      %v523 = vld [vmem:[%s413 + $0x60] sm:$0xff]
      %v524 = vld [vmem:[%s413 + $0x68] sm:$0xff]
      %v525 = vld [vmem:[%s413 + $0x70] sm:$0xff]
      %v526 = vld [vmem:[%s413 + $0x78] sm:$0xff]
      %v527 = vmul.f32 %v511, %v477
      %v528 = vmul.f32 %v512, %v477
      %v529 = vmul.f32 %v513, %v477
      %v530 = vmul.f32 %v514, %v477
      %v531 = vmul.f32 %v515, %v477
      %v532 = vmul.f32 %v516, %v477
      %v533 = vmul.f32 %v517, %v477
      %v534 = vmul.f32 %v518, %v477
      %v535 = vmul.f32 %v519, %v477
      %v536 = vmul.f32 %v520, %v477
      %v537 = vmul.f32 %v521, %v477
      %v538 = vmul.f32 %v522, %v477
      %v539 = vmul.f32 %v523, %v477
      %v540 = vmul.f32 %v524, %v477
      %v541 = vmul.f32 %v525, %v477
      %v542 = vmul.f32 %v526, %v477
      %v543 = vadd.f32 %v527, %v486
      %v544 = vadd.f32 %v528, %v486
      %v545 = vadd.f32 %v529, %v486
      %v546 = vadd.f32 %v530, %v486
      %v547 = vadd.f32 %v531, %v486
      %v548 = vadd.f32 %v532, %v486
      %v549 = vadd.f32 %v533, %v486
      %v550 = vadd.f32 %v534, %v486
      %v551 = vadd.f32 %v535, %v486
      %v552 = vadd.f32 %v536, %v486
      %v553 = vadd.f32 %v537, %v486
      %v554 = vadd.f32 %v538, %v486
      %v555 = vadd.f32 %v539, %v486
      %v556 = vadd.f32 %v540, %v486
      %v557 = vadd.f32 %v541, %v486
      %v558 = vadd.f32 %v542, %v486
      %v559 = vmax.f32 %v543, 0.0
      %v560 = vmax.f32 %v544, 0.0
      %v561 = vmax.f32 %v545, 0.0
      %v562 = vmax.f32 %v546, 0.0
      %v563 = vmax.f32 %v547, 0.0
      %v564 = vmax.f32 %v548, 0.0
      %v565 = vmax.f32 %v549, 0.0
      %v566 = vmax.f32 %v550, 0.0
      %v567 = vmax.f32 %v551, 0.0
      %v568 = vmax.f32 %v552, 0.0
      %v569 = vmax.f32 %v553, 0.0
      %v570 = vmax.f32 %v554, 0.0
      %v571 = vmax.f32 %v555, 0.0
      %v572 = vmax.f32 %v556, 0.0
      %v573 = vmax.f32 %v557, 0.0
      %v574 = vmax.f32 %v558, 0.0
      %vm595 = vcmask 1040384
      %v596 = vrot.slane %v495, 7
      %v597 = vrot.slane %v496, 7
      %v598 = vsel %vm595, %v596, %v597
      %v599 = vrot.slane %v559, 7
      %v600 = vrot.slane %v560, 7
      %v601 = vsel %vm595, %v599, %v600
      %v602 = vrot.slane %v561, 7
      %v603 = vrot.slane %v562, 7
      %v604 = vsel %vm595, %v602, %v603
      %v605 = vrot.slane %v563, 7
      %v606 = vrot.slane %v564, 7
      %v607 = vsel %vm595, %v605, %v606
      %v608 = vrot.slane %v565, 7
      %v609 = vrot.slane %v566, 7
      %v610 = vsel %vm595, %v608, %v609
      %v611 = vrot.slane %v567, 7
      %v612 = vrot.slane %v568, 7
      %v613 = vsel %vm595, %v611, %v612
      %v614 = vrot.slane %v569, 7
      %v615 = vrot.slane %v570, 7
      %v616 = vsel %vm595, %v614, %v615
      %v617 = vrot.slane %v571, 7
      %v618 = vrot.slane %v572, 7
      %v619 = vsel %vm595, %v617, %v618
      %v620 = vrot.slane %v573, 7
      %v621 = vrot.slane %v574, 7
      %v622 = vsel %vm595, %v620, %v621
      %v623 = vrot.slane %v509, 7
      %v624 = vrot.slane %v510, 7
      %v625 = vsel %vm595, %v623, %v624
      %v656 = vsel %vm595, 0.0, %v596
      %v657 = vsel %vm595, 0.0, %v599
      %v658 = vsel %vm595, 0.0, %v602
      %v659 = vsel %vm595, 0.0, %v605
      %v660 = vsel %vm595, 0.0, %v608
      %v661 = vsel %vm595, 0.0, %v611
      %v662 = vsel %vm595, 0.0, %v614
      %v663 = vsel %vm595, 0.0, %v617
      %v664 = vsel %vm595, 0.0, %v620
      %v665 = vsel %vm595, 0.0, %v623
      %v666 = vsel %vm595, %v597, 0.0
      %v667 = vsel %vm595, %v600, 0.0
      %v668 = vsel %vm595, %v603, 0.0
      %v669 = vsel %vm595, %v606, 0.0
      %v670 = vsel %vm595, %v609, 0.0
      %v671 = vsel %vm595, %v612, 0.0
      %v672 = vsel %vm595, %v615, 0.0
      %v673 = vsel %vm595, %v618, 0.0
      %v674 = vsel %vm595, %v621, 0.0
      %v675 = vsel %vm595, %v624, 0.0
      %v676 = vpack.c.bf16 %v598, %v656
      %v677 = vpack.c.bf16 %v666, %v666
      %v678 = vpack.c.bf16 %v601, %v657
      %v679 = vpack.c.bf16 %v667, %v667
      %v680 = vpack.c.bf16 %v604, %v658
      %v681 = vpack.c.bf16 %v668, %v668
      %v682 = vpack.c.bf16 %v607, %v659
      %v683 = vpack.c.bf16 %v669, %v669
      %v684 = vpack.c.bf16 %v610, %v660
      %v685 = vpack.c.bf16 %v670, %v670
      %v686 = vpack.c.bf16 %v613, %v661
      %v687 = vpack.c.bf16 %v671, %v671
      %v688 = vpack.c.bf16 %v616, %v662
      %v689 = vpack.c.bf16 %v672, %v672
      %v690 = vpack.c.bf16 %v619, %v663
      %v691 = vpack.c.bf16 %v673, %v673
      %v692 = vpack.c.bf16 %v622, %v664
      %v693 = vpack.c.bf16 %v674, %v674
      %v694 = vpack.c.bf16 %v625, %v665
      %v695 = vpack.c.bf16 %v675, %v675
      %v696 = vld [vmem:[%s5] sm:$0xf]
      %v697 = vld [vmem:[%s5 + $0x4] sm:$0xf]
      %v698 = vld [vmem:[%s5 + $0x8] sm:$0xf]
      %v699 = vld [vmem:[%s5 + $0xc] sm:$0xf]
      %v700 = vld [vmem:[%s5 + $0x10] sm:$0xf]
      %v701 = vld [vmem:[%s5 + $0x14] sm:$0xf]
      %v702 = vld [vmem:[%s5 + $0x18] sm:$0xf]
      %v703 = vld [vmem:[%s5 + $0x1c] sm:$0xf]
      %v704 = vld [vmem:[%s5 + $0x20] sm:$0xf]
      %v705 = vld [vmem:[%s5 + $0x24] sm:$0xf]
      %v706 = vld [vmem:[%s5 + $0x28] sm:$0xf]
      %v707 = vld [vmem:[%s5 + $0x2c] sm:$0xf]
      %v708 = vld [vmem:[%s5 + $0x30] sm:$0xf]
      %v709 = vld [vmem:[%s5 + $0x34] sm:$0xf]
      %v710 = vld [vmem:[%s5 + $0x38] sm:$0xf]
      %v711 = vld [vmem:[%s5 + $0x3c] sm:$0xf]
      %vm712 = vsmask.f32 7424
      %v714 = vshrl.u32 %v676, 16
      %v716 = vshll.u32 %v676, 16
      %v718 = vrot.slane %v716, 1
      %v719 = vor.u32 %v714, %v718
      %v721 = vshll.u32 %v677, 16
      %v723 = vrot.slane %v721, 1
      %v724 = vsel %vm712, %v719, %v723
      %v726 = vshrl.u32 %v678, 16
      %v728 = vshll.u32 %v678, 16
      %v730 = vrot.slane %v728, 1
      %v731 = vor.u32 %v726, %v730
      %v733 = vshll.u32 %v679, 16
      %v735 = vrot.slane %v733, 1
      %v736 = vsel %vm712, %v731, %v735
      %v738 = vshrl.u32 %v680, 16
      %v740 = vshll.u32 %v680, 16
      %v742 = vrot.slane %v740, 1
      %v743 = vor.u32 %v738, %v742
      %v745 = vshll.u32 %v681, 16
      %v747 = vrot.slane %v745, 1
      %v748 = vsel %vm712, %v743, %v747
      %v750 = vshrl.u32 %v682, 16
      %v752 = vshll.u32 %v682, 16
      %v754 = vrot.slane %v752, 1
      %v755 = vor.u32 %v750, %v754
      %v757 = vshll.u32 %v683, 16
      %v759 = vrot.slane %v757, 1
      %v760 = vsel %vm712, %v755, %v759
      %v762 = vshrl.u32 %v684, 16
      %v764 = vshll.u32 %v684, 16
      %v766 = vrot.slane %v764, 1
      %v767 = vor.u32 %v762, %v766
      %v769 = vshll.u32 %v685, 16
      %v771 = vrot.slane %v769, 1
      %v772 = vsel %vm712, %v767, %v771
      %v774 = vshrl.u32 %v686, 16
      %v776 = vshll.u32 %v686, 16
      %v778 = vrot.slane %v776, 1
      %v779 = vor.u32 %v774, %v778
      %v781 = vshll.u32 %v687, 16
      %v783 = vrot.slane %v781, 1
      %v784 = vsel %vm712, %v779, %v783
      %v786 = vshrl.u32 %v688, 16
      %v788 = vshll.u32 %v688, 16
      %v790 = vrot.slane %v788, 1
      %v791 = vor.u32 %v786, %v790
      %v793 = vshll.u32 %v689, 16
      %v795 = vrot.slane %v793, 1
      %v796 = vsel %vm712, %v791, %v795
      %v798 = vshrl.u32 %v690, 16
      %v800 = vshll.u32 %v690, 16
      %v802 = vrot.slane %v800, 1
      %v803 = vor.u32 %v798, %v802
      %v805 = vshll.u32 %v691, 16
      %v807 = vrot.slane %v805, 1
      %v808 = vsel %vm712, %v803, %v807
      %s817 = scalar_lea.vmem %s5, 64
      %v818 = vld [vmem:[%s817] sm:$0xf]
      %v819 = vld [vmem:[%s817 + $0x4] sm:$0xf]
      %v820 = vld [vmem:[%s817 + $0x8] sm:$0xf]
      %v821 = vld [vmem:[%s817 + $0xc] sm:$0xf]
      %v822 = vld [vmem:[%s817 + $0x10] sm:$0xf]
      %v823 = vld [vmem:[%s817 + $0x14] sm:$0xf]
      %v824 = vld [vmem:[%s817 + $0x18] sm:$0xf]
      %v825 = vld [vmem:[%s817 + $0x1c] sm:$0xf]
      %v826 = vld [vmem:[%s817 + $0x20] sm:$0xf]
      %v827 = vld [vmem:[%s817 + $0x24] sm:$0xf]
      %v828 = vld [vmem:[%s817 + $0x28] sm:$0xf]
      %v829 = vld [vmem:[%s817 + $0x2c] sm:$0xf]
      %v830 = vld [vmem:[%s817 + $0x30] sm:$0xf]
      %v831 = vld [vmem:[%s817 + $0x34] sm:$0xf]
      %v832 = vld [vmem:[%s817 + $0x38] sm:$0xf]
      %v833 = vld [vmem:[%s817 + $0x3c] sm:$0xf]
      %v850 = vunpack.c.l.b16 %v818
      %v851 = vunpack.c.l.b16 %v819
      %v852 = vunpack.c.l.b16 %v820
      %v853 = vunpack.c.l.b16 %v821
      %v854 = vunpack.c.l.b16 %v822
      %v855 = vunpack.c.l.b16 %v823
      %v856 = vunpack.c.l.b16 %v824
      %v857 = vunpack.c.l.b16 %v825
      %v858 = vunpack.c.l.b16 %v826
      %v859 = vunpack.c.l.b16 %v827
      %v860 = vunpack.c.l.b16 %v828
      %v861 = vunpack.c.l.b16 %v829
      %v862 = vunpack.c.l.b16 %v830
      %v863 = vunpack.c.l.b16 %v831
      %v864 = vunpack.c.l.b16 %v832
      %v865 = vunpack.c.l.b16 %v833
      %v866 = vpack.c.b16 %v851, %v850
      %v867 = vpack.c.b16 %v853, %v852
      %v868 = vpack.c.b16 %v855, %v854
      %v869 = vpack.c.b16 %v857, %v856
      %v870 = vpack.c.b16 %v859, %v858
      %v871 = vpack.c.b16 %v861, %v860
      %v872 = vpack.c.b16 %v863, %v862
      %v873 = vpack.c.b16 %v865, %v864
      %882 = vmatprep.subr.bf16.mxu0 0
      %883 = vmatpush1.bf16.msra.mxu0 %v866
      %884 = vmatprep.subr.bf16.mxu0 0
      %885 = vmatpush1.bf16.msra.mxu0 %v867
      %886 = vmatprep.subr.bf16.mxu0 0
      %887 = vmatpush1.bf16.msra.mxu0 %v868
      %888 = vmatprep.subr.bf16.mxu0 0
      %889 = vmatpush1.bf16.msra.mxu0 %v869
      %890 = vmatprep.subr.bf16.mxu0 0
      %891 = vmatpush1.bf16.msra.mxu0 %v870
      %892 = vmatprep.subr.bf16.mxu0 0
      %893 = vmatpush1.bf16.msra.mxu0 %v871
      %894 = vmatprep.subr.bf16.mxu0 0
      %895 = vmatpush1.bf16.msra.mxu0 %v872
      %896 = vmatprep.subr.bf16.mxu0 0
      %897 = vmatpush1.bf16.msra.mxu0 %v873
      %898 = vmatprep.subr.bf16.mxu0 0
      %899 = vmatpush1.bf16.msra.mxu0 0
      %900 = vmatprep.subr.bf16.mxu0 0
      %901 = vmatpush1.bf16.msra.mxu0 0
      %902 = vmatprep.subr.bf16.mxu0 0
      %903 = vmatpush1.bf16.msra.mxu0 0
      %904 = vmatprep.subr.bf16.mxu0 0
      %905 = vmatpush1.bf16.msra.mxu0 0
      %906 = vmatprep.subr.bf16.mxu0 0
      %907 = vmatpush1.bf16.msra.mxu0 0
      %908 = vmatprep.subr.bf16.mxu0 0
      %909 = vmatpush1.bf16.msra.mxu0 0
      %910 = vmatprep.subr.bf16.mxu0 0
      %911 = vmatpush1.bf16.msra.mxu0 0
      %912 = vmatprep.subr.bf16.mxu0 0
      %913 = vmatpush1.bf16.msra.mxu0 0
      %914 = vmatprep.mubr.bf16.mxu0 0
      %915 = vmatmul.mubr.bf16.gmra.mrb[0].mxu0 %v724
      %v916 = vpop.f32.mrb[0].mxu0
      %v917 = vadd.f32 0.0, %v916
      %v918 = vpop.f32.mrb[0].mxu0
      %v919 = vpop.f32.mrb[0].mxu0
      %v920 = vadd.f32 0.0, %v919
      %v921 = vpop.f32.mrb[0].mxu0
      %922 = vmatprep.mubr.bf16.mxu0 0
      %923 = vmatmul.mubr.bf16.gmra.mrb[0].mxu0 %v736
      %v924 = vpop.f32.mrb[0].mxu0
      %v925 = vadd.f32 0.0, %v924
      %v926 = vpop.f32.mrb[0].mxu0
      %v927 = vpop.f32.mrb[0].mxu0
      %v928 = vadd.f32 0.0, %v927
      %v929 = vpop.f32.mrb[0].mxu0
      %930 = vmatprep.mubr.bf16.mxu0 0
      %931 = vmatmul.mubr.bf16.gmra.mrb[0].mxu0 %v748
      %v932 = vpop.f32.mrb[0].mxu0
      %v933 = vadd.f32 0.0, %v932
      %v934 = vpop.f32.mrb[0].mxu0
      %v935 = vpop.f32.mrb[0].mxu0
      %v936 = vadd.f32 0.0, %v935
      %v937 = vpop.f32.mrb[0].mxu0
      %938 = vmatprep.mubr.bf16.mxu0 0
      %939 = vmatmul.mubr.bf16.gmra.mrb[0].mxu0 %v760
      %v940 = vpop.f32.mrb[0].mxu0
      %v941 = vadd.f32 0.0, %v940
      %v942 = vpop.f32.mrb[0].mxu0
      %v943 = vpop.f32.mrb[0].mxu0
      %v944 = vadd.f32 0.0, %v943
      %v945 = vpop.f32.mrb[0].mxu0
      %946 = vmatprep.mubr.bf16.mxu0 0
      %947 = vmatmul.mubr.bf16.gmra.mrb[0].mxu0 %v772
      %v948 = vpop.f32.mrb[0].mxu0
      %v949 = vadd.f32 0.0, %v948
      %v950 = vpop.f32.mrb[0].mxu0
      %v951 = vpop.f32.mrb[0].mxu0
      %v952 = vadd.f32 0.0, %v951
      %v953 = vpop.f32.mrb[0].mxu0
      %954 = vmatprep.mubr.bf16.mxu0 0
      %955 = vmatmul.mubr.bf16.gmra.mrb[0].mxu0 %v784
      %v956 = vpop.f32.mrb[0].mxu0
      %v957 = vadd.f32 0.0, %v956
      %v958 = vpop.f32.mrb[0].mxu0
      %v959 = vpop.f32.mrb[0].mxu0
      %v960 = vadd.f32 0.0, %v959
      %v961 = vpop.f32.mrb[0].mxu0
      %962 = vmatprep.mubr.bf16.mxu0 0
      %963 = vmatmul.mubr.bf16.gmra.mrb[0].mxu0 %v796
      %v964 = vpop.f32.mrb[0].mxu0
      %v965 = vadd.f32 0.0, %v964
      %v966 = vpop.f32.mrb[0].mxu0
      %v967 = vpop.f32.mrb[0].mxu0
      %v968 = vadd.f32 0.0, %v967
      %v969 = vpop.f32.mrb[0].mxu0
      %970 = vmatprep.mubr.bf16.mxu0 0
      %971 = vmatmul.mubr.bf16.gmra.mrb[0].mxu0 %v808
      %v972 = vpop.f32.mrb[0].mxu0
      %v973 = vadd.f32 0.0, %v972
      %v974 = vpop.f32.mrb[0].mxu0
      %v975 = vpop.f32.mrb[0].mxu0
      %v976 = vadd.f32 0.0, %v975
      %v977 = vpop.f32.mrb[0].mxu0
      %978 = vdwg.mxu0
      %v995 = vunpack.c.l.b16 %v696
      %v996 = vunpack.c.l.b16 %v697
      %v997 = vunpack.c.l.b16 %v698
      %v998 = vunpack.c.l.b16 %v699
      %v999 = vunpack.c.l.b16 %v700
      %v1000 = vunpack.c.l.b16 %v701
      %v1001 = vunpack.c.l.b16 %v702
      %v1002 = vunpack.c.l.b16 %v703
      %v1003 = vunpack.c.l.b16 %v704
      %v1004 = vunpack.c.l.b16 %v705
      %v1005 = vunpack.c.l.b16 %v706
      %v1006 = vunpack.c.l.b16 %v707
      %v1007 = vunpack.c.l.b16 %v708
      %v1008 = vunpack.c.l.b16 %v709
      %v1009 = vunpack.c.l.b16 %v710
      %v1010 = vunpack.c.l.b16 %v711
      %v1011 = vpack.c.b16 %v996, %v995
      %v1012 = vpack.c.b16 %v998, %v997
      %v1013 = vpack.c.b16 %v1000, %v999
      %v1014 = vpack.c.b16 %v1002, %v1001
      %v1015 = vpack.c.b16 %v1004, %v1003
      %v1016 = vpack.c.b16 %v1006, %v1005
      %v1017 = vpack.c.b16 %v1008, %v1007
      %v1018 = vpack.c.b16 %v1010, %v1009
      %1027 = vmatprep.subr.bf16.mxu0 0
      %1028 = vmatpush1.bf16.msra.mxu0 %v1011
      %1029 = vmatprep.subr.bf16.mxu0 0
      %1030 = vmatpush1.bf16.msra.mxu0 %v1012
      %1031 = vmatprep.subr.bf16.mxu0 0
      %1032 = vmatpush1.bf16.msra.mxu0 %v1013
      %1033 = vmatprep.subr.bf16.mxu0 0
      %1034 = vmatpush1.bf16.msra.mxu0 %v1014
      %1035 = vmatprep.subr.bf16.mxu0 0
      %1036 = vmatpush1.bf16.msra.mxu0 %v1015
      %1037 = vmatprep.subr.bf16.mxu0 0
      %1038 = vmatpush1.bf16.msra.mxu0 %v1016
      %1039 = vmatprep.subr.bf16.mxu0 0
      %1040 = vmatpush1.bf16.msra.mxu0 %v1017
      %1041 = vmatprep.subr.bf16.mxu0 0
      %1042 = vmatpush1.bf16.msra.mxu0 %v1018
      %1043 = vmatprep.subr.bf16.mxu0 0
      %1044 = vmatpush1.bf16.msra.mxu0 0
      %1045 = vmatprep.subr.bf16.mxu0 0
      %1046 = vmatpush1.bf16.msra.mxu0 0
      %1047 = vmatprep.subr.bf16.mxu0 0
      %1048 = vmatpush1.bf16.msra.mxu0 0
      %1049 = vmatprep.subr.bf16.mxu0 0
      %1050 = vmatpush1.bf16.msra.mxu0 0
      %1051 = vmatprep.subr.bf16.mxu0 0
      %1052 = vmatpush1.bf16.msra.mxu0 0
      %1053 = vmatprep.subr.bf16.mxu0 0
      %1054 = vmatpush1.bf16.msra.mxu0 0
      %1055 = vmatprep.subr.bf16.mxu0 0
      %1056 = vmatpush1.bf16.msra.mxu0 0
      %1057 = vmatprep.subr.bf16.mxu0 0
      %1058 = vmatpush1.bf16.msra.mxu0 0
      %1059 = vmatprep.mubr.bf16.mxu0 0
      %1060 = vmatmul.mubr.bf16.gmra.mrb[0].mxu0 %v676
      %v1061 = vpop.f32.mrb[0].mxu0
      %v1062 = vadd.f32 %v917, %v1061
      %v1063 = vpop.f32.mrb[0].mxu0
      %v1064 = vpop.f32.mrb[0].mxu0
      %v1065 = vadd.f32 %v920, %v1064
      %v1066 = vpop.f32.mrb[0].mxu0
      %1067 = vmatprep.mubr.bf16.mxu0 0
      %1068 = vmatmul.mubr.bf16.gmra.mrb[0].mxu0 %v678
      %v1069 = vpop.f32.mrb[0].mxu0
      %v1070 = vadd.f32 %v925, %v1069
      %v1071 = vpop.f32.mrb[0].mxu0
      %v1072 = vpop.f32.mrb[0].mxu0
      %v1073 = vadd.f32 %v928, %v1072
      %v1074 = vpop.f32.mrb[0].mxu0
      %1075 = vmatprep.mubr.bf16.mxu0 0
      %1076 = vmatmul.mubr.bf16.gmra.mrb[0].mxu0 %v680
      %v1077 = vpop.f32.mrb[0].mxu0
      %v1078 = vadd.f32 %v933, %v1077
      %v1079 = vpop.f32.mrb[0].mxu0
      %v1080 = vpop.f32.mrb[0].mxu0
      %v1081 = vadd.f32 %v936, %v1080
      %v1082 = vpop.f32.mrb[0].mxu0
      %1083 = vmatprep.mubr.bf16.mxu0 0
      %1084 = vmatmul.mubr.bf16.gmra.mrb[0].mxu0 %v682
      %v1085 = vpop.f32.mrb[0].mxu0
      %v1086 = vadd.f32 %v941, %v1085
      %v1087 = vpop.f32.mrb[0].mxu0
      %v1088 = vpop.f32.mrb[0].mxu0
      %v1089 = vadd.f32 %v944, %v1088
      %v1090 = vpop.f32.mrb[0].mxu0
      %1091 = vmatprep.mubr.bf16.mxu0 0
      %1092 = vmatmul.mubr.bf16.gmra.mrb[0].mxu0 %v684
      %v1093 = vpop.f32.mrb[0].mxu0
      %v1094 = vadd.f32 %v949, %v1093
      %v1095 = vpop.f32.mrb[0].mxu0
      %v1096 = vpop.f32.mrb[0].mxu0
      %v1097 = vadd.f32 %v952, %v1096
      %v1098 = vpop.f32.mrb[0].mxu0
      %1099 = vmatprep.mubr.bf16.mxu0 0
      %1100 = vmatmul.mubr.bf16.gmra.mrb[0].mxu0 %v686
      %v1101 = vpop.f32.mrb[0].mxu0
      %v1102 = vadd.f32 %v957, %v1101
      %v1103 = vpop.f32.mrb[0].mxu0
      %v1104 = vpop.f32.mrb[0].mxu0
      %v1105 = vadd.f32 %v960, %v1104
      %v1106 = vpop.f32.mrb[0].mxu0
      %1107 = vmatprep.mubr.bf16.mxu0 0
      %1108 = vmatmul.mubr.bf16.gmra.mrb[0].mxu0 %v688
      %v1109 = vpop.f32.mrb[0].mxu0
      %v1110 = vadd.f32 %v965, %v1109
      %v1111 = vpop.f32.mrb[0].mxu0
      %v1112 = vpop.f32.mrb[0].mxu0
      %v1113 = vadd.f32 %v968, %v1112
      %v1114 = vpop.f32.mrb[0].mxu0
      %1115 = vmatprep.mubr.bf16.mxu0 0
      %1116 = vmatmul.mubr.bf16.gmra.mrb[0].mxu0 %v690
      %v1117 = vpop.f32.mrb[0].mxu0
      %v1118 = vadd.f32 %v973, %v1117
      %v1119 = vpop.f32.mrb[0].mxu0
      %v1120 = vpop.f32.mrb[0].mxu0
      %v1121 = vadd.f32 %v976, %v1120
      %v1122 = vpop.f32.mrb[0].mxu0
      %1123 = vdwg.mxu0
      %vm1140 = vcmask 1046528
      %v1141 = vrot.slane %v676, 1
      %v1142 = vrot.slane %v677, 1
      %v1143 = vsel %vm1140, %v1141, %v1142
      %v1144 = vrot.slane %v678, 1
      %v1145 = vrot.slane %v679, 1
      %v1146 = vsel %vm1140, %v1144, %v1145
      %v1147 = vrot.slane %v680, 1
      %v1148 = vrot.slane %v681, 1
      %v1149 = vsel %vm1140, %v1147, %v1148
      %v1150 = vrot.slane %v682, 1
      %v1151 = vrot.slane %v683, 1
      %v1152 = vsel %vm1140, %v1150, %v1151
      %v1153 = vrot.slane %v684, 1
      %v1154 = vrot.slane %v685, 1
      %v1155 = vsel %vm1140, %v1153, %v1154
      %v1156 = vrot.slane %v686, 1
      %v1157 = vrot.slane %v687, 1
      %v1158 = vsel %vm1140, %v1156, %v1157
      %v1159 = vrot.slane %v688, 1
      %v1160 = vrot.slane %v689, 1
      %v1161 = vsel %vm1140, %v1159, %v1160
      %v1162 = vrot.slane %v690, 1
      %v1163 = vrot.slane %v691, 1
      %v1164 = vsel %vm1140, %v1162, %v1163
      %s1173 = scalar_lea.vmem %s5, 128
      %v1174 = vld [vmem:[%s1173] sm:$0xf]
      %v1175 = vld [vmem:[%s1173 + $0x4] sm:$0xf]
      %v1176 = vld [vmem:[%s1173 + $0x8] sm:$0xf]
      %v1177 = vld [vmem:[%s1173 + $0xc] sm:$0xf]
      %v1178 = vld [vmem:[%s1173 + $0x10] sm:$0xf]
      %v1179 = vld [vmem:[%s1173 + $0x14] sm:$0xf]
      %v1180 = vld [vmem:[%s1173 + $0x18] sm:$0xf]
      %v1181 = vld [vmem:[%s1173 + $0x1c] sm:$0xf]
      %v1182 = vld [vmem:[%s1173 + $0x20] sm:$0xf]
      %v1183 = vld [vmem:[%s1173 + $0x24] sm:$0xf]
      %v1184 = vld [vmem:[%s1173 + $0x28] sm:$0xf]
      %v1185 = vld [vmem:[%s1173 + $0x2c] sm:$0xf]
      %v1186 = vld [vmem:[%s1173 + $0x30] sm:$0xf]
      %v1187 = vld [vmem:[%s1173 + $0x34] sm:$0xf]
      %v1188 = vld [vmem:[%s1173 + $0x38] sm:$0xf]
      %v1189 = vld [vmem:[%s1173 + $0x3c] sm:$0xf]
      %v1206 = vunpack.c.l.b16 %v1174
      %v1207 = vunpack.c.l.b16 %v1175
      %v1208 = vunpack.c.l.b16 %v1176
      %v1209 = vunpack.c.l.b16 %v1177
      %v1210 = vunpack.c.l.b16 %v1178
      %v1211 = vunpack.c.l.b16 %v1179
      %v1212 = vunpack.c.l.b16 %v1180
      %v1213 = vunpack.c.l.b16 %v1181
      %v1214 = vunpack.c.l.b16 %v1182
      %v1215 = vunpack.c.l.b16 %v1183
      %v1216 = vunpack.c.l.b16 %v1184
      %v1217 = vunpack.c.l.b16 %v1185
      %v1218 = vunpack.c.l.b16 %v1186
      %v1219 = vunpack.c.l.b16 %v1187
      %v1220 = vunpack.c.l.b16 %v1188
      %v1221 = vunpack.c.l.b16 %v1189
      %v1222 = vpack.c.b16 %v1207, %v1206
      %v1223 = vpack.c.b16 %v1209, %v1208
      %v1224 = vpack.c.b16 %v1211, %v1210
      %v1225 = vpack.c.b16 %v1213, %v1212
      %v1226 = vpack.c.b16 %v1215, %v1214
      %v1227 = vpack.c.b16 %v1217, %v1216
      %v1228 = vpack.c.b16 %v1219, %v1218
      %v1229 = vpack.c.b16 %v1221, %v1220
      %1238 = vmatprep.subr.bf16.mxu0 0
      %1239 = vmatpush1.bf16.msra.mxu0 %v1222
      %1240 = vmatprep.subr.bf16.mxu0 0
      %1241 = vmatpush1.bf16.msra.mxu0 %v1223
      %1242 = vmatprep.subr.bf16.mxu0 0
      %1243 = vmatpush1.bf16.msra.mxu0 %v1224
      %1244 = vmatprep.subr.bf16.mxu0 0
      %1245 = vmatpush1.bf16.msra.mxu0 %v1225
      %1246 = vmatprep.subr.bf16.mxu0 0
      %1247 = vmatpush1.bf16.msra.mxu0 %v1226
      %1248 = vmatprep.subr.bf16.mxu0 0
      %1249 = vmatpush1.bf16.msra.mxu0 %v1227
      %1250 = vmatprep.subr.bf16.mxu0 0
      %1251 = vmatpush1.bf16.msra.mxu0 %v1228
      %1252 = vmatprep.subr.bf16.mxu0 0
      %1253 = vmatpush1.bf16.msra.mxu0 %v1229
      %1254 = vmatprep.subr.bf16.mxu0 0
      %1255 = vmatpush1.bf16.msra.mxu0 0
      %1256 = vmatprep.subr.bf16.mxu0 0
      %1257 = vmatpush1.bf16.msra.mxu0 0
      %1258 = vmatprep.subr.bf16.mxu0 0
      %1259 = vmatpush1.bf16.msra.mxu0 0
      %1260 = vmatprep.subr.bf16.mxu0 0
      %1261 = vmatpush1.bf16.msra.mxu0 0
      %1262 = vmatprep.subr.bf16.mxu0 0
      %1263 = vmatpush1.bf16.msra.mxu0 0
      %1264 = vmatprep.subr.bf16.mxu0 0
      %1265 = vmatpush1.bf16.msra.mxu0 0
      %1266 = vmatprep.subr.bf16.mxu0 0
      %1267 = vmatpush1.bf16.msra.mxu0 0
      %1268 = vmatprep.subr.bf16.mxu0 0
      %1269 = vmatpush1.bf16.msra.mxu0 0
      %1270 = vmatprep.mubr.bf16.mxu0 0
      %1271 = vmatmul.mubr.bf16.gmra.mrb[0].mxu0 %v1143
      %v1272 = vpop.f32.mrb[0].mxu0
      %v1273 = vadd.f32 0.0, %v1272
      %v1274 = vpop.f32.mrb[0].mxu0
      %v1275 = vpop.f32.mrb[0].mxu0
      %v1276 = vadd.f32 0.0, %v1275
      %v1277 = vpop.f32.mrb[0].mxu0
      %1278 = vmatprep.mubr.bf16.mxu0 0
      %1279 = vmatmul.mubr.bf16.gmra.mrb[0].mxu0 %v1146
      %v1280 = vpop.f32.mrb[0].mxu0
      %v1281 = vadd.f32 0.0, %v1280
      %v1282 = vpop.f32.mrb[0].mxu0
      %v1283 = vpop.f32.mrb[0].mxu0
      %v1284 = vadd.f32 0.0, %v1283
      %v1285 = vpop.f32.mrb[0].mxu0
      %1286 = vmatprep.mubr.bf16.mxu0 0
      %1287 = vmatmul.mubr.bf16.gmra.mrb[0].mxu0 %v1149
      %v1288 = vpop.f32.mrb[0].mxu0
      %v1289 = vadd.f32 0.0, %v1288
      %v1290 = vpop.f32.mrb[0].mxu0
      %v1291 = vpop.f32.mrb[0].mxu0
      %v1292 = vadd.f32 0.0, %v1291
      %v1293 = vpop.f32.mrb[0].mxu0
      %1294 = vmatprep.mubr.bf16.mxu0 0
      %1295 = vmatmul.mubr.bf16.gmra.mrb[0].mxu0 %v1152
      %v1296 = vpop.f32.mrb[0].mxu0
      %v1297 = vadd.f32 0.0, %v1296
      %v1298 = vpop.f32.mrb[0].mxu0
      %v1299 = vpop.f32.mrb[0].mxu0
      %v1300 = vadd.f32 0.0, %v1299
      %v1301 = vpop.f32.mrb[0].mxu0
      %1302 = vmatprep.mubr.bf16.mxu0 0
      %1303 = vmatmul.mubr.bf16.gmra.mrb[0].mxu0 %v1155
      %v1304 = vpop.f32.mrb[0].mxu0
      %v1305 = vadd.f32 0.0, %v1304
      %v1306 = vpop.f32.mrb[0].mxu0
      %v1307 = vpop.f32.mrb[0].mxu0
      %v1308 = vadd.f32 0.0, %v1307
      %v1309 = vpop.f32.mrb[0].mxu0
      %1310 = vmatprep.mubr.bf16.mxu0 0
      %1311 = vmatmul.mubr.bf16.gmra.mrb[0].mxu0 %v1158
      %v1312 = vpop.f32.mrb[0].mxu0
      %v1313 = vadd.f32 0.0, %v1312
      %v1314 = vpop.f32.mrb[0].mxu0
      %v1315 = vpop.f32.mrb[0].mxu0
      %v1316 = vadd.f32 0.0, %v1315
      %v1317 = vpop.f32.mrb[0].mxu0
      %1318 = vmatprep.mubr.bf16.mxu0 0
      %1319 = vmatmul.mubr.bf16.gmra.mrb[0].mxu0 %v1161
      %v1320 = vpop.f32.mrb[0].mxu0
      %v1321 = vadd.f32 0.0, %v1320
      %v1322 = vpop.f32.mrb[0].mxu0
      %v1323 = vpop.f32.mrb[0].mxu0
      %v1324 = vadd.f32 0.0, %v1323
      %v1325 = vpop.f32.mrb[0].mxu0
      %1326 = vmatprep.mubr.bf16.mxu0 0
      %1327 = vmatmul.mubr.bf16.gmra.mrb[0].mxu0 %v1164
      %v1328 = vpop.f32.mrb[0].mxu0
      %v1329 = vadd.f32 0.0, %v1328
      %v1330 = vpop.f32.mrb[0].mxu0
      %v1331 = vpop.f32.mrb[0].mxu0
      %v1332 = vadd.f32 0.0, %v1331
      %v1333 = vpop.f32.mrb[0].mxu0
      %1334 = vdwg.mxu0
      %v1335 = vadd.f32 %v1062, %v1273
      %v1336 = vadd.f32 %v1065, %v1276
      %v1337 = vadd.f32 %v1070, %v1281
      %v1338 = vadd.f32 %v1073, %v1284
      %v1339 = vadd.f32 %v1078, %v1289
      %v1340 = vadd.f32 %v1081, %v1292
      %v1341 = vadd.f32 %v1086, %v1297
      %v1342 = vadd.f32 %v1089, %v1300
      %v1343 = vadd.f32 %v1094, %v1305
      %v1344 = vadd.f32 %v1097, %v1308
      %v1345 = vadd.f32 %v1102, %v1313
      %v1346 = vadd.f32 %v1105, %v1316
      %v1347 = vadd.f32 %v1110, %v1321
      %v1348 = vadd.f32 %v1113, %v1324
      %v1349 = vadd.f32 %v1118, %v1329
      %v1350 = vadd.f32 %v1121, %v1332
      %s1351 = scalar_lea.vmem %s5, 192
      %v1352 = vld [vmem:[%s1351] sm:$0xf]
      %v1353 = vld [vmem:[%s1351 + $0x4] sm:$0xf]
      %v1354 = vld [vmem:[%s1351 + $0x8] sm:$0xf]
      %v1355 = vld [vmem:[%s1351 + $0xc] sm:$0xf]
      %v1356 = vld [vmem:[%s1351 + $0x10] sm:$0xf]
      %v1357 = vld [vmem:[%s1351 + $0x14] sm:$0xf]
      %v1358 = vld [vmem:[%s1351 + $0x18] sm:$0xf]
      %v1359 = vld [vmem:[%s1351 + $0x1c] sm:$0xf]
      %v1360 = vld [vmem:[%s1351 + $0x20] sm:$0xf]
      %v1361 = vld [vmem:[%s1351 + $0x24] sm:$0xf]
      %v1362 = vld [vmem:[%s1351 + $0x28] sm:$0xf]
      %v1363 = vld [vmem:[%s1351 + $0x2c] sm:$0xf]
      %v1364 = vld [vmem:[%s1351 + $0x30] sm:$0xf]
      %v1365 = vld [vmem:[%s1351 + $0x34] sm:$0xf]
      %v1366 = vld [vmem:[%s1351 + $0x38] sm:$0xf]
      %v1367 = vld [vmem:[%s1351 + $0x3c] sm:$0xf]
      %v1384 = vunpack.c.l.b16 %v1352
      %v1385 = vunpack.c.l.b16 %v1353
      %v1386 = vunpack.c.l.b16 %v1354
      %v1387 = vunpack.c.l.b16 %v1355
      %v1388 = vunpack.c.l.b16 %v1356
      %v1389 = vunpack.c.l.b16 %v1357
      %v1390 = vunpack.c.l.b16 %v1358
      %v1391 = vunpack.c.l.b16 %v1359
      %v1392 = vunpack.c.l.b16 %v1360
      %v1393 = vunpack.c.l.b16 %v1361
      %v1394 = vunpack.c.l.b16 %v1362
      %v1395 = vunpack.c.l.b16 %v1363
      %v1396 = vunpack.c.l.b16 %v1364
      %v1397 = vunpack.c.l.b16 %v1365
      %v1398 = vunpack.c.l.b16 %v1366
      %v1399 = vunpack.c.l.b16 %v1367
      %v1400 = vpack.c.b16 %v1385, %v1384
      %v1401 = vpack.c.b16 %v1387, %v1386
      %v1402 = vpack.c.b16 %v1389, %v1388
      %v1403 = vpack.c.b16 %v1391, %v1390
      %v1404 = vpack.c.b16 %v1393, %v1392
      %v1405 = vpack.c.b16 %v1395, %v1394
      %v1406 = vpack.c.b16 %v1397, %v1396
      %v1407 = vpack.c.b16 %v1399, %v1398
      %1416 = vmatprep.subr.bf16.mxu0 0
      %1417 = vmatpush1.bf16.msra.mxu0 %v1400
      %1418 = vmatprep.subr.bf16.mxu0 0
      %1419 = vmatpush1.bf16.msra.mxu0 %v1401
      %1420 = vmatprep.subr.bf16.mxu0 0
      %1421 = vmatpush1.bf16.msra.mxu0 %v1402
      %1422 = vmatprep.subr.bf16.mxu0 0
      %1423 = vmatpush1.bf16.msra.mxu0 %v1403
      %1424 = vmatprep.subr.bf16.mxu0 0
      %1425 = vmatpush1.bf16.msra.mxu0 %v1404
      %1426 = vmatprep.subr.bf16.mxu0 0
      %1427 = vmatpush1.bf16.msra.mxu0 %v1405
      %1428 = vmatprep.subr.bf16.mxu0 0
      %1429 = vmatpush1.bf16.msra.mxu0 %v1406
      %1430 = vmatprep.subr.bf16.mxu0 0
      %1431 = vmatpush1.bf16.msra.mxu0 %v1407
      %1432 = vmatprep.subr.bf16.mxu0 0
      %1433 = vmatpush1.bf16.msra.mxu0 0
      %1434 = vmatprep.subr.bf16.mxu0 0
      %1435 = vmatpush1.bf16.msra.mxu0 0
      %1436 = vmatprep.subr.bf16.mxu0 0
      %1437 = vmatpush1.bf16.msra.mxu0 0
      %1438 = vmatprep.subr.bf16.mxu0 0
      %1439 = vmatpush1.bf16.msra.mxu0 0
      %1440 = vmatprep.subr.bf16.mxu0 0
      %1441 = vmatpush1.bf16.msra.mxu0 0
      %1442 = vmatprep.subr.bf16.mxu0 0
      %1443 = vmatpush1.bf16.msra.mxu0 0
      %1444 = vmatprep.subr.bf16.mxu0 0
      %1445 = vmatpush1.bf16.msra.mxu0 0
      %1446 = vmatprep.subr.bf16.mxu0 0
      %1447 = vmatpush1.bf16.msra.mxu0 0
      %1448 = vmatprep.mubr.bf16.mxu0 0
      %1449 = vmatmul.mubr.bf16.gmra.mrb[0].mxu0 %v678
      %v1450 = vpop.f32.mrb[0].mxu0
      %v1451 = vadd.f32 0.0, %v1450
      %v1452 = vpop.f32.mrb[0].mxu0
      %v1453 = vpop.f32.mrb[0].mxu0
      %v1454 = vadd.f32 0.0, %v1453
      %v1455 = vpop.f32.mrb[0].mxu0
      %1456 = vmatprep.mubr.bf16.mxu0 0
      %1457 = vmatmul.mubr.bf16.gmra.mrb[0].mxu0 %v680
      %v1458 = vpop.f32.mrb[0].mxu0
      %v1459 = vadd.f32 0.0, %v1458
      %v1460 = vpop.f32.mrb[0].mxu0
      %v1461 = vpop.f32.mrb[0].mxu0
      %v1462 = vadd.f32 0.0, %v1461
      %v1463 = vpop.f32.mrb[0].mxu0
      %1464 = vmatprep.mubr.bf16.mxu0 0
      %1465 = vmatmul.mubr.bf16.gmra.mrb[0].mxu0 %v682
      %v1466 = vpop.f32.mrb[0].mxu0
      %v1467 = vadd.f32 0.0, %v1466
      %v1468 = vpop.f32.mrb[0].mxu0
      %v1469 = vpop.f32.mrb[0].mxu0
      %v1470 = vadd.f32 0.0, %v1469
      %v1471 = vpop.f32.mrb[0].mxu0
      %1472 = vmatprep.mubr.bf16.mxu0 0
      %1473 = vmatmul.mubr.bf16.gmra.mrb[0].mxu0 %v684
      %v1474 = vpop.f32.mrb[0].mxu0
      %v1475 = vadd.f32 0.0, %v1474
      %v1476 = vpop.f32.mrb[0].mxu0
      %v1477 = vpop.f32.mrb[0].mxu0
      %v1478 = vadd.f32 0.0, %v1477
      %v1479 = vpop.f32.mrb[0].mxu0
      %1480 = vmatprep.mubr.bf16.mxu0 0
      %1481 = vmatmul.mubr.bf16.gmra.mrb[0].mxu0 %v686
      %v1482 = vpop.f32.mrb[0].mxu0
      %v1483 = vadd.f32 0.0, %v1482
      %v1484 = vpop.f32.mrb[0].mxu0
      %v1485 = vpop.f32.mrb[0].mxu0
      %v1486 = vadd.f32 0.0, %v1485
      %v1487 = vpop.f32.mrb[0].mxu0
      %1488 = vmatprep.mubr.bf16.mxu0 0
      %1489 = vmatmul.mubr.bf16.gmra.mrb[0].mxu0 %v688
      %v1490 = vpop.f32.mrb[0].mxu0
      %v1491 = vadd.f32 0.0, %v1490
      %v1492 = vpop.f32.mrb[0].mxu0
      %v1493 = vpop.f32.mrb[0].mxu0
      %v1494 = vadd.f32 0.0, %v1493
      %v1495 = vpop.f32.mrb[0].mxu0
      %1496 = vmatprep.mubr.bf16.mxu0 0
      %1497 = vmatmul.mubr.bf16.gmra.mrb[0].mxu0 %v690
      %v1498 = vpop.f32.mrb[0].mxu0
      %v1499 = vadd.f32 0.0, %v1498
      %v1500 = vpop.f32.mrb[0].mxu0
      %v1501 = vpop.f32.mrb[0].mxu0
      %v1502 = vadd.f32 0.0, %v1501
      %v1503 = vpop.f32.mrb[0].mxu0
      %1504 = vmatprep.mubr.bf16.mxu0 0
      %1505 = vmatmul.mubr.bf16.gmra.mrb[0].mxu0 %v692
      %v1506 = vpop.f32.mrb[0].mxu0
      %v1507 = vadd.f32 0.0, %v1506
      %v1508 = vpop.f32.mrb[0].mxu0
      %v1509 = vpop.f32.mrb[0].mxu0
      %v1510 = vadd.f32 0.0, %v1509
      %v1511 = vpop.f32.mrb[0].mxu0
      %1512 = vdwg.mxu0
      %v1513 = vadd.f32 %v1335, %v1451
      %v1514 = vadd.f32 %v1336, %v1454
      %v1515 = vadd.f32 %v1337, %v1459
      %v1516 = vadd.f32 %v1338, %v1462
      %v1517 = vadd.f32 %v1339, %v1467
      %v1518 = vadd.f32 %v1340, %v1470
      %v1519 = vadd.f32 %v1341, %v1475
      %v1520 = vadd.f32 %v1342, %v1478
      %v1521 = vadd.f32 %v1343, %v1483
      %v1522 = vadd.f32 %v1344, %v1486
      %v1523 = vadd.f32 %v1345, %v1491
      %v1524 = vadd.f32 %v1346, %v1494
      %v1525 = vadd.f32 %v1347, %v1499
      %v1526 = vadd.f32 %v1348, %v1502
      %v1527 = vadd.f32 %v1349, %v1507
      %v1528 = vadd.f32 %v1350, %v1510
      %v1530 = vshrl.u32 %v692, 16
      %v1532 = vshll.u32 %v692, 16
      %v1534 = vrot.slane %v1532, 1
      %v1535 = vor.u32 %v1530, %v1534
      %v1537 = vshll.u32 %v693, 16
      %v1539 = vrot.slane %v1537, 1
      %v1540 = vsel %vm712, %v1535, %v1539
      %s1542 = scalar_lea.vmem %s5, 256
      %v1543 = vld [vmem:[%s1542] sm:$0xf]
      %v1544 = vld [vmem:[%s1542 + $0x4] sm:$0xf]
      %v1545 = vld [vmem:[%s1542 + $0x8] sm:$0xf]
      %v1546 = vld [vmem:[%s1542 + $0xc] sm:$0xf]
      %v1547 = vld [vmem:[%s1542 + $0x10] sm:$0xf]
      %v1548 = vld [vmem:[%s1542 + $0x14] sm:$0xf]
      %v1549 = vld [vmem:[%s1542 + $0x18] sm:$0xf]
      %v1550 = vld [vmem:[%s1542 + $0x1c] sm:$0xf]
      %v1551 = vld [vmem:[%s1542 + $0x20] sm:$0xf]
      %v1552 = vld [vmem:[%s1542 + $0x24] sm:$0xf]
      %v1553 = vld [vmem:[%s1542 + $0x28] sm:$0xf]
      %v1554 = vld [vmem:[%s1542 + $0x2c] sm:$0xf]
      %v1555 = vld [vmem:[%s1542 + $0x30] sm:$0xf]
      %v1556 = vld [vmem:[%s1542 + $0x34] sm:$0xf]
      %v1557 = vld [vmem:[%s1542 + $0x38] sm:$0xf]
      %v1558 = vld [vmem:[%s1542 + $0x3c] sm:$0xf]
      %v1575 = vunpack.c.l.b16 %v1543
      %v1576 = vunpack.c.l.b16 %v1544
      %v1577 = vunpack.c.l.b16 %v1545
      %v1578 = vunpack.c.l.b16 %v1546
      %v1579 = vunpack.c.l.b16 %v1547
      %v1580 = vunpack.c.l.b16 %v1548
      %v1581 = vunpack.c.l.b16 %v1549
      %v1582 = vunpack.c.l.b16 %v1550
      %v1583 = vunpack.c.l.b16 %v1551
      %v1584 = vunpack.c.l.b16 %v1552
      %v1585 = vunpack.c.l.b16 %v1553
      %v1586 = vunpack.c.l.b16 %v1554
      %v1587 = vunpack.c.l.b16 %v1555
      %v1588 = vunpack.c.l.b16 %v1556
      %v1589 = vunpack.c.l.b16 %v1557
      %v1590 = vunpack.c.l.b16 %v1558
      %v1591 = vpack.c.b16 %v1576, %v1575
      %v1592 = vpack.c.b16 %v1578, %v1577
      %v1593 = vpack.c.b16 %v1580, %v1579
      %v1594 = vpack.c.b16 %v1582, %v1581
      %v1595 = vpack.c.b16 %v1584, %v1583
      %v1596 = vpack.c.b16 %v1586, %v1585
      %v1597 = vpack.c.b16 %v1588, %v1587
      %v1598 = vpack.c.b16 %v1590, %v1589
      %1607 = vmatprep.subr.bf16.mxu0 0
      %1608 = vmatpush1.bf16.msra.mxu0 %v1591
      %1609 = vmatprep.subr.bf16.mxu0 0
      %1610 = vmatpush1.bf16.msra.mxu0 %v1592
      %1611 = vmatprep.subr.bf16.mxu0 0
      %1612 = vmatpush1.bf16.msra.mxu0 %v1593
      %1613 = vmatprep.subr.bf16.mxu0 0
      %1614 = vmatpush1.bf16.msra.mxu0 %v1594
      %1615 = vmatprep.subr.bf16.mxu0 0
      %1616 = vmatpush1.bf16.msra.mxu0 %v1595
      %1617 = vmatprep.subr.bf16.mxu0 0
      %1618 = vmatpush1.bf16.msra.mxu0 %v1596
      %1619 = vmatprep.subr.bf16.mxu0 0
      %1620 = vmatpush1.bf16.msra.mxu0 %v1597
      %1621 = vmatprep.subr.bf16.mxu0 0
      %1622 = vmatpush1.bf16.msra.mxu0 %v1598
      %1623 = vmatprep.subr.bf16.mxu0 0
      %1624 = vmatpush1.bf16.msra.mxu0 0
      %1625 = vmatprep.subr.bf16.mxu0 0
      %1626 = vmatpush1.bf16.msra.mxu0 0
      %1627 = vmatprep.subr.bf16.mxu0 0
      %1628 = vmatpush1.bf16.msra.mxu0 0
      %1629 = vmatprep.subr.bf16.mxu0 0
      %1630 = vmatpush1.bf16.msra.mxu0 0
      %1631 = vmatprep.subr.bf16.mxu0 0
      %1632 = vmatpush1.bf16.msra.mxu0 0
      %1633 = vmatprep.subr.bf16.mxu0 0
      %1634 = vmatpush1.bf16.msra.mxu0 0
      %1635 = vmatprep.subr.bf16.mxu0 0
      %1636 = vmatpush1.bf16.msra.mxu0 0
      %1637 = vmatprep.subr.bf16.mxu0 0
      %1638 = vmatpush1.bf16.msra.mxu0 0
      %1639 = vmatprep.mubr.bf16.mxu0 0
      %1640 = vmatmul.mubr.bf16.gmra.mrb[0].mxu0 %v736
      %v1641 = vpop.f32.mrb[0].mxu0
      %v1642 = vadd.f32 0.0, %v1641
      %v1643 = vpop.f32.mrb[0].mxu0
      %v1644 = vpop.f32.mrb[0].mxu0
      %v1645 = vadd.f32 0.0, %v1644
      %v1646 = vpop.f32.mrb[0].mxu0
      %1647 = vmatprep.mubr.bf16.mxu0 0
      %1648 = vmatmul.mubr.bf16.gmra.mrb[0].mxu0 %v748
      %v1649 = vpop.f32.mrb[0].mxu0
      %v1650 = vadd.f32 0.0, %v1649
      %v1651 = vpop.f32.mrb[0].mxu0
      %v1652 = vpop.f32.mrb[0].mxu0
      %v1653 = vadd.f32 0.0, %v1652
      %v1654 = vpop.f32.mrb[0].mxu0
      %1655 = vmatprep.mubr.bf16.mxu0 0
      %1656 = vmatmul.mubr.bf16.gmra.mrb[0].mxu0 %v760
      %v1657 = vpop.f32.mrb[0].mxu0
      %v1658 = vadd.f32 0.0, %v1657
      %v1659 = vpop.f32.mrb[0].mxu0
      %v1660 = vpop.f32.mrb[0].mxu0
      %v1661 = vadd.f32 0.0, %v1660
      %v1662 = vpop.f32.mrb[0].mxu0
      %1663 = vmatprep.mubr.bf16.mxu0 0
      %1664 = vmatmul.mubr.bf16.gmra.mrb[0].mxu0 %v772
      %v1665 = vpop.f32.mrb[0].mxu0
      %v1666 = vadd.f32 0.0, %v1665
      %v1667 = vpop.f32.mrb[0].mxu0
      %v1668 = vpop.f32.mrb[0].mxu0
      %v1669 = vadd.f32 0.0, %v1668
      %v1670 = vpop.f32.mrb[0].mxu0
      %1671 = vmatprep.mubr.bf16.mxu0 0
      %1672 = vmatmul.mubr.bf16.gmra.mrb[0].mxu0 %v784
      %v1673 = vpop.f32.mrb[0].mxu0
      %v1674 = vadd.f32 0.0, %v1673
      %v1675 = vpop.f32.mrb[0].mxu0
      %v1676 = vpop.f32.mrb[0].mxu0
      %v1677 = vadd.f32 0.0, %v1676
      %v1678 = vpop.f32.mrb[0].mxu0
      %1679 = vmatprep.mubr.bf16.mxu0 0
      %1680 = vmatmul.mubr.bf16.gmra.mrb[0].mxu0 %v796
      %v1681 = vpop.f32.mrb[0].mxu0
      %v1682 = vadd.f32 0.0, %v1681
      %v1683 = vpop.f32.mrb[0].mxu0
      %v1684 = vpop.f32.mrb[0].mxu0
      %v1685 = vadd.f32 0.0, %v1684
      %v1686 = vpop.f32.mrb[0].mxu0
      %1687 = vmatprep.mubr.bf16.mxu0 0
      %1688 = vmatmul.mubr.bf16.gmra.mrb[0].mxu0 %v808
      %v1689 = vpop.f32.mrb[0].mxu0
      %v1690 = vadd.f32 0.0, %v1689
      %v1691 = vpop.f32.mrb[0].mxu0
      %v1692 = vpop.f32.mrb[0].mxu0
      %v1693 = vadd.f32 0.0, %v1692
      %v1694 = vpop.f32.mrb[0].mxu0
      %1695 = vmatprep.mubr.bf16.mxu0 0
      %1696 = vmatmul.mubr.bf16.gmra.mrb[0].mxu0 %v1540
      %v1697 = vpop.f32.mrb[0].mxu0
      %v1698 = vadd.f32 0.0, %v1697
      %v1699 = vpop.f32.mrb[0].mxu0
      %v1700 = vpop.f32.mrb[0].mxu0
      %v1701 = vadd.f32 0.0, %v1700
      %v1702 = vpop.f32.mrb[0].mxu0
      %1703 = vdwg.mxu0
      %v1704 = vadd.f32 %v1513, %v1642
      %v1705 = vadd.f32 %v1514, %v1645
      %v1706 = vadd.f32 %v1515, %v1650
      %v1707 = vadd.f32 %v1516, %v1653
      %v1708 = vadd.f32 %v1517, %v1658
      %v1709 = vadd.f32 %v1518, %v1661
      %v1710 = vadd.f32 %v1519, %v1666
      %v1711 = vadd.f32 %v1520, %v1669
      %v1712 = vadd.f32 %v1521, %v1674
      %v1713 = vadd.f32 %v1522, %v1677
      %v1714 = vadd.f32 %v1523, %v1682
      %v1715 = vadd.f32 %v1524, %v1685
      %v1716 = vadd.f32 %v1525, %v1690
      %v1717 = vadd.f32 %v1526, %v1693
      %v1718 = vadd.f32 %v1527, %v1698
      %v1719 = vadd.f32 %v1528, %v1701
      %v1722 = vrot.slane %v692, 1
      %v1723 = vrot.slane %v693, 1
      %v1724 = vsel %vm1140, %v1722, %v1723
      %s1726 = scalar_lea.vmem %s5, 320
      %v1727 = vld [vmem:[%s1726] sm:$0xf]
      %v1728 = vld [vmem:[%s1726 + $0x4] sm:$0xf]
      %v1729 = vld [vmem:[%s1726 + $0x8] sm:$0xf]
      %v1730 = vld [vmem:[%s1726 + $0xc] sm:$0xf]
      %v1731 = vld [vmem:[%s1726 + $0x10] sm:$0xf]
      %v1732 = vld [vmem:[%s1726 + $0x14] sm:$0xf]
      %v1733 = vld [vmem:[%s1726 + $0x18] sm:$0xf]
      %v1734 = vld [vmem:[%s1726 + $0x1c] sm:$0xf]
      %v1735 = vld [vmem:[%s1726 + $0x20] sm:$0xf]
      %v1736 = vld [vmem:[%s1726 + $0x24] sm:$0xf]
      %v1737 = vld [vmem:[%s1726 + $0x28] sm:$0xf]
      %v1738 = vld [vmem:[%s1726 + $0x2c] sm:$0xf]
      %v1739 = vld [vmem:[%s1726 + $0x30] sm:$0xf]
      %v1740 = vld [vmem:[%s1726 + $0x34] sm:$0xf]
      %v1741 = vld [vmem:[%s1726 + $0x38] sm:$0xf]
      %v1742 = vld [vmem:[%s1726 + $0x3c] sm:$0xf]
      %v1759 = vunpack.c.l.b16 %v1727
      %v1760 = vunpack.c.l.b16 %v1728
      %v1761 = vunpack.c.l.b16 %v1729
      %v1762 = vunpack.c.l.b16 %v1730
      %v1763 = vunpack.c.l.b16 %v1731
      %v1764 = vunpack.c.l.b16 %v1732
      %v1765 = vunpack.c.l.b16 %v1733
      %v1766 = vunpack.c.l.b16 %v1734
      %v1767 = vunpack.c.l.b16 %v1735
      %v1768 = vunpack.c.l.b16 %v1736
      %v1769 = vunpack.c.l.b16 %v1737
      %v1770 = vunpack.c.l.b16 %v1738
      %v1771 = vunpack.c.l.b16 %v1739
      %v1772 = vunpack.c.l.b16 %v1740
      %v1773 = vunpack.c.l.b16 %v1741
      %v1774 = vunpack.c.l.b16 %v1742
      %v1775 = vpack.c.b16 %v1760, %v1759
      %v1776 = vpack.c.b16 %v1762, %v1761
      %v1777 = vpack.c.b16 %v1764, %v1763
      %v1778 = vpack.c.b16 %v1766, %v1765
      %v1779 = vpack.c.b16 %v1768, %v1767
      %v1780 = vpack.c.b16 %v1770, %v1769
      %v1781 = vpack.c.b16 %v1772, %v1771
      %v1782 = vpack.c.b16 %v1774, %v1773
      %1791 = vmatprep.subr.bf16.mxu0 0
      %1792 = vmatpush1.bf16.msra.mxu0 %v1775
      %1793 = vmatprep.subr.bf16.mxu0 0
      %1794 = vmatpush1.bf16.msra.mxu0 %v1776
      %1795 = vmatprep.subr.bf16.mxu0 0
      %1796 = vmatpush1.bf16.msra.mxu0 %v1777
      %1797 = vmatprep.subr.bf16.mxu0 0
      %1798 = vmatpush1.bf16.msra.mxu0 %v1778
      %1799 = vmatprep.subr.bf16.mxu0 0
      %1800 = vmatpush1.bf16.msra.mxu0 %v1779
      %1801 = vmatprep.subr.bf16.mxu0 0
      %1802 = vmatpush1.bf16.msra.mxu0 %v1780
      %1803 = vmatprep.subr.bf16.mxu0 0
      %1804 = vmatpush1.bf16.msra.mxu0 %v1781
      %1805 = vmatprep.subr.bf16.mxu0 0
      %1806 = vmatpush1.bf16.msra.mxu0 %v1782
      %1807 = vmatprep.subr.bf16.mxu0 0
      %1808 = vmatpush1.bf16.msra.mxu0 0
      %1809 = vmatprep.subr.bf16.mxu0 0
      %1810 = vmatpush1.bf16.msra.mxu0 0
      %1811 = vmatprep.subr.bf16.mxu0 0
      %1812 = vmatpush1.bf16.msra.mxu0 0
      %1813 = vmatprep.subr.bf16.mxu0 0
      %1814 = vmatpush1.bf16.msra.mxu0 0
      %1815 = vmatprep.subr.bf16.mxu0 0
      %1816 = vmatpush1.bf16.msra.mxu0 0
      %1817 = vmatprep.subr.bf16.mxu0 0
      %1818 = vmatpush1.bf16.msra.mxu0 0
      %1819 = vmatprep.subr.bf16.mxu0 0
      %1820 = vmatpush1.bf16.msra.mxu0 0
      %1821 = vmatprep.subr.bf16.mxu0 0
      %1822 = vmatpush1.bf16.msra.mxu0 0
      %1823 = vmatprep.mubr.bf16.mxu0 0
      %1824 = vmatmul.mubr.bf16.gmra.mrb[0].mxu0 %v1146
      %v1825 = vpop.f32.mrb[0].mxu0
      %v1826 = vadd.f32 0.0, %v1825
      %v1827 = vpop.f32.mrb[0].mxu0
      %v1828 = vpop.f32.mrb[0].mxu0
      %v1829 = vadd.f32 0.0, %v1828
      %v1830 = vpop.f32.mrb[0].mxu0
      %1831 = vmatprep.mubr.bf16.mxu0 0
      %1832 = vmatmul.mubr.bf16.gmra.mrb[0].mxu0 %v1149
      %v1833 = vpop.f32.mrb[0].mxu0
      %v1834 = vadd.f32 0.0, %v1833
      %v1835 = vpop.f32.mrb[0].mxu0
      %v1836 = vpop.f32.mrb[0].mxu0
      %v1837 = vadd.f32 0.0, %v1836
      %v1838 = vpop.f32.mrb[0].mxu0
      %1839 = vmatprep.mubr.bf16.mxu0 0
      %1840 = vmatmul.mubr.bf16.gmra.mrb[0].mxu0 %v1152
      %v1841 = vpop.f32.mrb[0].mxu0
      %v1842 = vadd.f32 0.0, %v1841
      %v1843 = vpop.f32.mrb[0].mxu0
      %v1844 = vpop.f32.mrb[0].mxu0
      %v1845 = vadd.f32 0.0, %v1844
      %v1846 = vpop.f32.mrb[0].mxu0
      %1847 = vmatprep.mubr.bf16.mxu0 0
      %1848 = vmatmul.mubr.bf16.gmra.mrb[0].mxu0 %v1155
      %v1849 = vpop.f32.mrb[0].mxu0
      %v1850 = vadd.f32 0.0, %v1849
      %v1851 = vpop.f32.mrb[0].mxu0
      %v1852 = vpop.f32.mrb[0].mxu0
      %v1853 = vadd.f32 0.0, %v1852
      %v1854 = vpop.f32.mrb[0].mxu0
      %1855 = vmatprep.mubr.bf16.mxu0 0
      %1856 = vmatmul.mubr.bf16.gmra.mrb[0].mxu0 %v1158
      %v1857 = vpop.f32.mrb[0].mxu0
      %v1858 = vadd.f32 0.0, %v1857
      %v1859 = vpop.f32.mrb[0].mxu0
      %v1860 = vpop.f32.mrb[0].mxu0
      %v1861 = vadd.f32 0.0, %v1860
      %v1862 = vpop.f32.mrb[0].mxu0
      %1863 = vmatprep.mubr.bf16.mxu0 0
      %1864 = vmatmul.mubr.bf16.gmra.mrb[0].mxu0 %v1161
      %v1865 = vpop.f32.mrb[0].mxu0
      %v1866 = vadd.f32 0.0, %v1865
      %v1867 = vpop.f32.mrb[0].mxu0
      %v1868 = vpop.f32.mrb[0].mxu0
      %v1869 = vadd.f32 0.0, %v1868
      %v1870 = vpop.f32.mrb[0].mxu0
      %1871 = vmatprep.mubr.bf16.mxu0 0
      %1872 = vmatmul.mubr.bf16.gmra.mrb[0].mxu0 %v1164
      %v1873 = vpop.f32.mrb[0].mxu0
      %v1874 = vadd.f32 0.0, %v1873
      %v1875 = vpop.f32.mrb[0].mxu0
      %v1876 = vpop.f32.mrb[0].mxu0
      %v1877 = vadd.f32 0.0, %v1876
      %v1878 = vpop.f32.mrb[0].mxu0
      %1879 = vmatprep.mubr.bf16.mxu0 0
      %1880 = vmatmul.mubr.bf16.gmra.mrb[0].mxu0 %v1724
      %v1881 = vpop.f32.mrb[0].mxu0
      %v1882 = vadd.f32 0.0, %v1881
      %v1883 = vpop.f32.mrb[0].mxu0
      %v1884 = vpop.f32.mrb[0].mxu0
      %v1885 = vadd.f32 0.0, %v1884
      %v1886 = vpop.f32.mrb[0].mxu0
      %1887 = vdwg.mxu0
      %v1888 = vadd.f32 %v1704, %v1826
      %v1889 = vadd.f32 %v1705, %v1829
      %v1890 = vadd.f32 %v1706, %v1834
      %v1891 = vadd.f32 %v1707, %v1837
      %v1892 = vadd.f32 %v1708, %v1842
      %v1893 = vadd.f32 %v1709, %v1845
      %v1894 = vadd.f32 %v1710, %v1850
      %v1895 = vadd.f32 %v1711, %v1853
      %v1896 = vadd.f32 %v1712, %v1858
      %v1897 = vadd.f32 %v1713, %v1861
      %v1898 = vadd.f32 %v1714, %v1866
      %v1899 = vadd.f32 %v1715, %v1869
      %v1900 = vadd.f32 %v1716, %v1874
      %v1901 = vadd.f32 %v1717, %v1877
      %v1902 = vadd.f32 %v1718, %v1882
      %v1903 = vadd.f32 %v1719, %v1885
      %s1904 = scalar_lea.vmem %s5, 384
      %v1905 = vld [vmem:[%s1904] sm:$0xf]
      %v1906 = vld [vmem:[%s1904 + $0x4] sm:$0xf]
      %v1907 = vld [vmem:[%s1904 + $0x8] sm:$0xf]
      %v1908 = vld [vmem:[%s1904 + $0xc] sm:$0xf]
      %v1909 = vld [vmem:[%s1904 + $0x10] sm:$0xf]
      %v1910 = vld [vmem:[%s1904 + $0x14] sm:$0xf]
      %v1911 = vld [vmem:[%s1904 + $0x18] sm:$0xf]
      %v1912 = vld [vmem:[%s1904 + $0x1c] sm:$0xf]
      %v1913 = vld [vmem:[%s1904 + $0x20] sm:$0xf]
      %v1914 = vld [vmem:[%s1904 + $0x24] sm:$0xf]
      %v1915 = vld [vmem:[%s1904 + $0x28] sm:$0xf]
      %v1916 = vld [vmem:[%s1904 + $0x2c] sm:$0xf]
      %v1917 = vld [vmem:[%s1904 + $0x30] sm:$0xf]
      %v1918 = vld [vmem:[%s1904 + $0x34] sm:$0xf]
      %v1919 = vld [vmem:[%s1904 + $0x38] sm:$0xf]
      %v1920 = vld [vmem:[%s1904 + $0x3c] sm:$0xf]
      %v1937 = vunpack.c.l.b16 %v1905
      %v1938 = vunpack.c.l.b16 %v1906
      %v1939 = vunpack.c.l.b16 %v1907
      %v1940 = vunpack.c.l.b16 %v1908
      %v1941 = vunpack.c.l.b16 %v1909
      %v1942 = vunpack.c.l.b16 %v1910
      %v1943 = vunpack.c.l.b16 %v1911
      %v1944 = vunpack.c.l.b16 %v1912
      %v1945 = vunpack.c.l.b16 %v1913
      %v1946 = vunpack.c.l.b16 %v1914
      %v1947 = vunpack.c.l.b16 %v1915
      %v1948 = vunpack.c.l.b16 %v1916
      %v1949 = vunpack.c.l.b16 %v1917
      %v1950 = vunpack.c.l.b16 %v1918
      %v1951 = vunpack.c.l.b16 %v1919
      %v1952 = vunpack.c.l.b16 %v1920
      %v1953 = vpack.c.b16 %v1938, %v1937
      %v1954 = vpack.c.b16 %v1940, %v1939
      %v1955 = vpack.c.b16 %v1942, %v1941
      %v1956 = vpack.c.b16 %v1944, %v1943
      %v1957 = vpack.c.b16 %v1946, %v1945
      %v1958 = vpack.c.b16 %v1948, %v1947
      %v1959 = vpack.c.b16 %v1950, %v1949
      %v1960 = vpack.c.b16 %v1952, %v1951
      %1969 = vmatprep.subr.bf16.mxu0 0
      %1970 = vmatpush1.bf16.msra.mxu0 %v1953
      %1971 = vmatprep.subr.bf16.mxu0 0
      %1972 = vmatpush1.bf16.msra.mxu0 %v1954
      %1973 = vmatprep.subr.bf16.mxu0 0
      %1974 = vmatpush1.bf16.msra.mxu0 %v1955
      %1975 = vmatprep.subr.bf16.mxu0 0
      %1976 = vmatpush1.bf16.msra.mxu0 %v1956
      %1977 = vmatprep.subr.bf16.mxu0 0
      %1978 = vmatpush1.bf16.msra.mxu0 %v1957
      %1979 = vmatprep.subr.bf16.mxu0 0
      %1980 = vmatpush1.bf16.msra.mxu0 %v1958
      %1981 = vmatprep.subr.bf16.mxu0 0
      %1982 = vmatpush1.bf16.msra.mxu0 %v1959
      %1983 = vmatprep.subr.bf16.mxu0 0
      %1984 = vmatpush1.bf16.msra.mxu0 %v1960
      %1985 = vmatprep.subr.bf16.mxu0 0
      %1986 = vmatpush1.bf16.msra.mxu0 0
      %1987 = vmatprep.subr.bf16.mxu0 0
      %1988 = vmatpush1.bf16.msra.mxu0 0
      %1989 = vmatprep.subr.bf16.mxu0 0
      %1990 = vmatpush1.bf16.msra.mxu0 0
      %1991 = vmatprep.subr.bf16.mxu0 0
      %1992 = vmatpush1.bf16.msra.mxu0 0
      %1993 = vmatprep.subr.bf16.mxu0 0
      %1994 = vmatpush1.bf16.msra.mxu0 0
      %1995 = vmatprep.subr.bf16.mxu0 0
      %1996 = vmatpush1.bf16.msra.mxu0 0
      %1997 = vmatprep.subr.bf16.mxu0 0
      %1998 = vmatpush1.bf16.msra.mxu0 0
      %1999 = vmatprep.subr.bf16.mxu0 0
      %2000 = vmatpush1.bf16.msra.mxu0 0
      %2001 = vmatprep.mubr.bf16.mxu0 0
      %2002 = vmatmul.mubr.bf16.gmra.mrb[0].mxu0 %v680
      %v2003 = vpop.f32.mrb[0].mxu0
      %v2004 = vadd.f32 0.0, %v2003
      %v2005 = vpop.f32.mrb[0].mxu0
      %v2006 = vpop.f32.mrb[0].mxu0
      %v2007 = vadd.f32 0.0, %v2006
      %v2008 = vpop.f32.mrb[0].mxu0
      %2009 = vmatprep.mubr.bf16.mxu0 0
      %2010 = vmatmul.mubr.bf16.gmra.mrb[0].mxu0 %v682
      %v2011 = vpop.f32.mrb[0].mxu0
      %v2012 = vadd.f32 0.0, %v2011
      %v2013 = vpop.f32.mrb[0].mxu0
      %v2014 = vpop.f32.mrb[0].mxu0
      %v2015 = vadd.f32 0.0, %v2014
      %v2016 = vpop.f32.mrb[0].mxu0
      %2017 = vmatprep.mubr.bf16.mxu0 0
      %2018 = vmatmul.mubr.bf16.gmra.mrb[0].mxu0 %v684
      %v2019 = vpop.f32.mrb[0].mxu0
      %v2020 = vadd.f32 0.0, %v2019
      %v2021 = vpop.f32.mrb[0].mxu0
      %v2022 = vpop.f32.mrb[0].mxu0
      %v2023 = vadd.f32 0.0, %v2022
      %v2024 = vpop.f32.mrb[0].mxu0
      %2025 = vmatprep.mubr.bf16.mxu0 0
      %2026 = vmatmul.mubr.bf16.gmra.mrb[0].mxu0 %v686
      %v2027 = vpop.f32.mrb[0].mxu0
      %v2028 = vadd.f32 0.0, %v2027
      %v2029 = vpop.f32.mrb[0].mxu0
      %v2030 = vpop.f32.mrb[0].mxu0
      %v2031 = vadd.f32 0.0, %v2030
      %v2032 = vpop.f32.mrb[0].mxu0
      %2033 = vmatprep.mubr.bf16.mxu0 0
      %2034 = vmatmul.mubr.bf16.gmra.mrb[0].mxu0 %v688
      %v2035 = vpop.f32.mrb[0].mxu0
      %v2036 = vadd.f32 0.0, %v2035
      %v2037 = vpop.f32.mrb[0].mxu0
      %v2038 = vpop.f32.mrb[0].mxu0
      %v2039 = vadd.f32 0.0, %v2038
      %v2040 = vpop.f32.mrb[0].mxu0
      %2041 = vmatprep.mubr.bf16.mxu0 0
      %2042 = vmatmul.mubr.bf16.gmra.mrb[0].mxu0 %v690
      %v2043 = vpop.f32.mrb[0].mxu0
      %v2044 = vadd.f32 0.0, %v2043
      %v2045 = vpop.f32.mrb[0].mxu0
      %v2046 = vpop.f32.mrb[0].mxu0
      %v2047 = vadd.f32 0.0, %v2046
      %v2048 = vpop.f32.mrb[0].mxu0
      %2049 = vmatprep.mubr.bf16.mxu0 0
      %2050 = vmatmul.mubr.bf16.gmra.mrb[0].mxu0 %v692
      %v2051 = vpop.f32.mrb[0].mxu0
      %v2052 = vadd.f32 0.0, %v2051
      %v2053 = vpop.f32.mrb[0].mxu0
      %v2054 = vpop.f32.mrb[0].mxu0
      %v2055 = vadd.f32 0.0, %v2054
      %v2056 = vpop.f32.mrb[0].mxu0
      %2057 = vmatprep.mubr.bf16.mxu0 0
      %2058 = vmatmul.mubr.bf16.gmra.mrb[0].mxu0 %v694
      %v2059 = vpop.f32.mrb[0].mxu0
      %v2060 = vadd.f32 0.0, %v2059
      %v2061 = vpop.f32.mrb[0].mxu0
      %v2062 = vpop.f32.mrb[0].mxu0
      %v2063 = vadd.f32 0.0, %v2062
      %v2064 = vpop.f32.mrb[0].mxu0
      %2065 = vdwg.mxu0
      %v2066 = vadd.f32 %v1888, %v2004
      %v2067 = vadd.f32 %v1889, %v2007
      %v2068 = vadd.f32 %v1890, %v2012
      %v2069 = vadd.f32 %v1891, %v2015
      %v2070 = vadd.f32 %v1892, %v2020
      %v2071 = vadd.f32 %v1893, %v2023
      %v2072 = vadd.f32 %v1894, %v2028
      %v2073 = vadd.f32 %v1895, %v2031
      %v2074 = vadd.f32 %v1896, %v2036
      %v2075 = vadd.f32 %v1897, %v2039
      %v2076 = vadd.f32 %v1898, %v2044
      %v2077 = vadd.f32 %v1899, %v2047
      %v2078 = vadd.f32 %v1900, %v2052
      %v2079 = vadd.f32 %v1901, %v2055
      %v2080 = vadd.f32 %v1902, %v2060
      %v2081 = vadd.f32 %v1903, %v2063
      %v2083 = vshrl.u32 %v694, 16
      %v2085 = vshll.u32 %v694, 16
      %v2087 = vrot.slane %v2085, 1
      %v2088 = vor.u32 %v2083, %v2087
      %v2090 = vshll.u32 %v695, 16
      %v2092 = vrot.slane %v2090, 1
      %v2093 = vsel %vm712, %v2088, %v2092
      %s2095 = scalar_lea.vmem %s5, 448
      %v2096 = vld [vmem:[%s2095] sm:$0xf]
      %v2097 = vld [vmem:[%s2095 + $0x4] sm:$0xf]
      %v2098 = vld [vmem:[%s2095 + $0x8] sm:$0xf]
      %v2099 = vld [vmem:[%s2095 + $0xc] sm:$0xf]
      %v2100 = vld [vmem:[%s2095 + $0x10] sm:$0xf]
      %v2101 = vld [vmem:[%s2095 + $0x14] sm:$0xf]
      %v2102 = vld [vmem:[%s2095 + $0x18] sm:$0xf]
      %v2103 = vld [vmem:[%s2095 + $0x1c] sm:$0xf]
      %v2104 = vld [vmem:[%s2095 + $0x20] sm:$0xf]
      %v2105 = vld [vmem:[%s2095 + $0x24] sm:$0xf]
      %v2106 = vld [vmem:[%s2095 + $0x28] sm:$0xf]
      %v2107 = vld [vmem:[%s2095 + $0x2c] sm:$0xf]
      %v2108 = vld [vmem:[%s2095 + $0x30] sm:$0xf]
      %v2109 = vld [vmem:[%s2095 + $0x34] sm:$0xf]
      %v2110 = vld [vmem:[%s2095 + $0x38] sm:$0xf]
      %v2111 = vld [vmem:[%s2095 + $0x3c] sm:$0xf]
      %v2128 = vunpack.c.l.b16 %v2096
      %v2129 = vunpack.c.l.b16 %v2097
      %v2130 = vunpack.c.l.b16 %v2098
      %v2131 = vunpack.c.l.b16 %v2099
      %v2132 = vunpack.c.l.b16 %v2100
      %v2133 = vunpack.c.l.b16 %v2101
      %v2134 = vunpack.c.l.b16 %v2102
      %v2135 = vunpack.c.l.b16 %v2103
      %v2136 = vunpack.c.l.b16 %v2104
      %v2137 = vunpack.c.l.b16 %v2105
      %v2138 = vunpack.c.l.b16 %v2106
      %v2139 = vunpack.c.l.b16 %v2107
      %v2140 = vunpack.c.l.b16 %v2108
      %v2141 = vunpack.c.l.b16 %v2109
      %v2142 = vunpack.c.l.b16 %v2110
      %v2143 = vunpack.c.l.b16 %v2111
      %v2144 = vpack.c.b16 %v2129, %v2128
      %v2145 = vpack.c.b16 %v2131, %v2130
      %v2146 = vpack.c.b16 %v2133, %v2132
      %v2147 = vpack.c.b16 %v2135, %v2134
      %v2148 = vpack.c.b16 %v2137, %v2136
      %v2149 = vpack.c.b16 %v2139, %v2138
      %v2150 = vpack.c.b16 %v2141, %v2140
      %v2151 = vpack.c.b16 %v2143, %v2142
      %2160 = vmatprep.subr.bf16.mxu0 0
      %2161 = vmatpush1.bf16.msra.mxu0 %v2144
      %2162 = vmatprep.subr.bf16.mxu0 0
      %2163 = vmatpush1.bf16.msra.mxu0 %v2145
      %2164 = vmatprep.subr.bf16.mxu0 0
      %2165 = vmatpush1.bf16.msra.mxu0 %v2146
      %2166 = vmatprep.subr.bf16.mxu0 0
      %2167 = vmatpush1.bf16.msra.mxu0 %v2147
      %2168 = vmatprep.subr.bf16.mxu0 0
      %2169 = vmatpush1.bf16.msra.mxu0 %v2148
      %2170 = vmatprep.subr.bf16.mxu0 0
      %2171 = vmatpush1.bf16.msra.mxu0 %v2149
      %2172 = vmatprep.subr.bf16.mxu0 0
      %2173 = vmatpush1.bf16.msra.mxu0 %v2150
      %2174 = vmatprep.subr.bf16.mxu0 0
      %2175 = vmatpush1.bf16.msra.mxu0 %v2151
      %2176 = vmatprep.subr.bf16.mxu0 0
      %2177 = vmatpush1.bf16.msra.mxu0 0
      %2178 = vmatprep.subr.bf16.mxu0 0
      %2179 = vmatpush1.bf16.msra.mxu0 0
      %2180 = vmatprep.subr.bf16.mxu0 0
      %2181 = vmatpush1.bf16.msra.mxu0 0
      %2182 = vmatprep.subr.bf16.mxu0 0
      %2183 = vmatpush1.bf16.msra.mxu0 0
      %2184 = vmatprep.subr.bf16.mxu0 0
      %2185 = vmatpush1.bf16.msra.mxu0 0
      %2186 = vmatprep.subr.bf16.mxu0 0
      %2187 = vmatpush1.bf16.msra.mxu0 0
      %2188 = vmatprep.subr.bf16.mxu0 0
      %2189 = vmatpush1.bf16.msra.mxu0 0
      %2190 = vmatprep.subr.bf16.mxu0 0
      %2191 = vmatpush1.bf16.msra.mxu0 0
      %2192 = vmatprep.mubr.bf16.mxu0 0
      %2193 = vmatmul.mubr.bf16.gmra.mrb[0].mxu0 %v748
      %v2194 = vpop.f32.mrb[0].mxu0
      %v2195 = vadd.f32 0.0, %v2194
      %v2196 = vpop.f32.mrb[0].mxu0
      %v2197 = vpop.f32.mrb[0].mxu0
      %v2198 = vadd.f32 0.0, %v2197
      %v2199 = vpop.f32.mrb[0].mxu0
      %2200 = vmatprep.mubr.bf16.mxu0 0
      %2201 = vmatmul.mubr.bf16.gmra.mrb[0].mxu0 %v760
      %v2202 = vpop.f32.mrb[0].mxu0
      %v2203 = vadd.f32 0.0, %v2202
      %v2204 = vpop.f32.mrb[0].mxu0
      %v2205 = vpop.f32.mrb[0].mxu0
      %v2206 = vadd.f32 0.0, %v2205
      %v2207 = vpop.f32.mrb[0].mxu0
      %2208 = vmatprep.mubr.bf16.mxu0 0
      %2209 = vmatmul.mubr.bf16.gmra.mrb[0].mxu0 %v772
      %v2210 = vpop.f32.mrb[0].mxu0
      %v2211 = vadd.f32 0.0, %v2210
      %v2212 = vpop.f32.mrb[0].mxu0
      %v2213 = vpop.f32.mrb[0].mxu0
      %v2214 = vadd.f32 0.0, %v2213
      %v2215 = vpop.f32.mrb[0].mxu0
      %2216 = vmatprep.mubr.bf16.mxu0 0
      %2217 = vmatmul.mubr.bf16.gmra.mrb[0].mxu0 %v784
      %v2218 = vpop.f32.mrb[0].mxu0
      %v2219 = vadd.f32 0.0, %v2218
      %v2220 = vpop.f32.mrb[0].mxu0
      %v2221 = vpop.f32.mrb[0].mxu0
      %v2222 = vadd.f32 0.0, %v2221
      %v2223 = vpop.f32.mrb[0].mxu0
      %2224 = vmatprep.mubr.bf16.mxu0 0
      %2225 = vmatmul.mubr.bf16.gmra.mrb[0].mxu0 %v796
      %v2226 = vpop.f32.mrb[0].mxu0
      %v2227 = vadd.f32 0.0, %v2226
      %v2228 = vpop.f32.mrb[0].mxu0
      %v2229 = vpop.f32.mrb[0].mxu0
      %v2230 = vadd.f32 0.0, %v2229
      %v2231 = vpop.f32.mrb[0].mxu0
      %2232 = vmatprep.mubr.bf16.mxu0 0
      %2233 = vmatmul.mubr.bf16.gmra.mrb[0].mxu0 %v808
      %v2234 = vpop.f32.mrb[0].mxu0
      %v2235 = vadd.f32 0.0, %v2234
      %v2236 = vpop.f32.mrb[0].mxu0
      %v2237 = vpop.f32.mrb[0].mxu0
      %v2238 = vadd.f32 0.0, %v2237
      %v2239 = vpop.f32.mrb[0].mxu0
      %2240 = vmatprep.mubr.bf16.mxu0 0
      %2241 = vmatmul.mubr.bf16.gmra.mrb[0].mxu0 %v1540
      %v2242 = vpop.f32.mrb[0].mxu0
      %v2243 = vadd.f32 0.0, %v2242
      %v2244 = vpop.f32.mrb[0].mxu0
      %v2245 = vpop.f32.mrb[0].mxu0
      %v2246 = vadd.f32 0.0, %v2245
      %v2247 = vpop.f32.mrb[0].mxu0
      %2248 = vmatprep.mubr.bf16.mxu0 0
      %2249 = vmatmul.mubr.bf16.gmra.mrb[0].mxu0 %v2093
      %v2250 = vpop.f32.mrb[0].mxu0
      %v2251 = vadd.f32 0.0, %v2250
      %v2252 = vpop.f32.mrb[0].mxu0
      %v2253 = vpop.f32.mrb[0].mxu0
      %v2254 = vadd.f32 0.0, %v2253
      %v2255 = vpop.f32.mrb[0].mxu0
      %2256 = vdwg.mxu0
      %v2257 = vadd.f32 %v2066, %v2195
      %v2258 = vadd.f32 %v2067, %v2198
      %v2259 = vadd.f32 %v2068, %v2203
      %v2260 = vadd.f32 %v2069, %v2206
      %v2261 = vadd.f32 %v2070, %v2211
      %v2262 = vadd.f32 %v2071, %v2214
      %v2263 = vadd.f32 %v2072, %v2219
      %v2264 = vadd.f32 %v2073, %v2222
      %v2265 = vadd.f32 %v2074, %v2227
      %v2266 = vadd.f32 %v2075, %v2230
      %v2267 = vadd.f32 %v2076, %v2235
      %v2268 = vadd.f32 %v2077, %v2238
      %v2269 = vadd.f32 %v2078, %v2243
      %v2270 = vadd.f32 %v2079, %v2246
      %v2271 = vadd.f32 %v2080, %v2251
      %v2272 = vadd.f32 %v2081, %v2254
      %v2275 = vrot.slane %v694, 1
      %v2276 = vrot.slane %v695, 1
      %v2277 = vsel %vm1140, %v2275, %v2276
      %s2279 = scalar_lea.vmem %s5, 512
      %v2280 = vld [vmem:[%s2279] sm:$0xf]
      %v2281 = vld [vmem:[%s2279 + $0x4] sm:$0xf]
      %v2282 = vld [vmem:[%s2279 + $0x8] sm:$0xf]
      %v2283 = vld [vmem:[%s2279 + $0xc] sm:$0xf]
      %v2284 = vld [vmem:[%s2279 + $0x10] sm:$0xf]
      %v2285 = vld [vmem:[%s2279 + $0x14] sm:$0xf]
      %v2286 = vld [vmem:[%s2279 + $0x18] sm:$0xf]
      %v2287 = vld [vmem:[%s2279 + $0x1c] sm:$0xf]
      %v2288 = vld [vmem:[%s2279 + $0x20] sm:$0xf]
      %v2289 = vld [vmem:[%s2279 + $0x24] sm:$0xf]
      %v2290 = vld [vmem:[%s2279 + $0x28] sm:$0xf]
      %v2291 = vld [vmem:[%s2279 + $0x2c] sm:$0xf]
      %v2292 = vld [vmem:[%s2279 + $0x30] sm:$0xf]
      %v2293 = vld [vmem:[%s2279 + $0x34] sm:$0xf]
      %v2294 = vld [vmem:[%s2279 + $0x38] sm:$0xf]
      %v2295 = vld [vmem:[%s2279 + $0x3c] sm:$0xf]
      %v2312 = vunpack.c.l.b16 %v2280
      %v2313 = vunpack.c.l.b16 %v2281
      %v2314 = vunpack.c.l.b16 %v2282
      %v2315 = vunpack.c.l.b16 %v2283
      %v2316 = vunpack.c.l.b16 %v2284
      %v2317 = vunpack.c.l.b16 %v2285
      %v2318 = vunpack.c.l.b16 %v2286
      %v2319 = vunpack.c.l.b16 %v2287
      %v2320 = vunpack.c.l.b16 %v2288
      %v2321 = vunpack.c.l.b16 %v2289
      %v2322 = vunpack.c.l.b16 %v2290
      %v2323 = vunpack.c.l.b16 %v2291
      %v2324 = vunpack.c.l.b16 %v2292
      %v2325 = vunpack.c.l.b16 %v2293
      %v2326 = vunpack.c.l.b16 %v2294
      %v2327 = vunpack.c.l.b16 %v2295
      %v2328 = vpack.c.b16 %v2313, %v2312
      %v2329 = vpack.c.b16 %v2315, %v2314
      %v2330 = vpack.c.b16 %v2317, %v2316
      %v2331 = vpack.c.b16 %v2319, %v2318
      %v2332 = vpack.c.b16 %v2321, %v2320
      %v2333 = vpack.c.b16 %v2323, %v2322
      %v2334 = vpack.c.b16 %v2325, %v2324
      %v2335 = vpack.c.b16 %v2327, %v2326
      %2344 = vmatprep.subr.bf16.mxu0 0
      %2345 = vmatpush1.bf16.msra.mxu0 %v2328
      %2346 = vmatprep.subr.bf16.mxu0 0
      %2347 = vmatpush1.bf16.msra.mxu0 %v2329
      %2348 = vmatprep.subr.bf16.mxu0 0
      %2349 = vmatpush1.bf16.msra.mxu0 %v2330
      %2350 = vmatprep.subr.bf16.mxu0 0
      %2351 = vmatpush1.bf16.msra.mxu0 %v2331
      %2352 = vmatprep.subr.bf16.mxu0 0
      %2353 = vmatpush1.bf16.msra.mxu0 %v2332
      %2354 = vmatprep.subr.bf16.mxu0 0
      %2355 = vmatpush1.bf16.msra.mxu0 %v2333
      %2356 = vmatprep.subr.bf16.mxu0 0
      %2357 = vmatpush1.bf16.msra.mxu0 %v2334
      %2358 = vmatprep.subr.bf16.mxu0 0
      %2359 = vmatpush1.bf16.msra.mxu0 %v2335
      %2360 = vmatprep.subr.bf16.mxu0 0
      %2361 = vmatpush1.bf16.msra.mxu0 0
      %2362 = vmatprep.subr.bf16.mxu0 0
      %2363 = vmatpush1.bf16.msra.mxu0 0
      %2364 = vmatprep.subr.bf16.mxu0 0
      %2365 = vmatpush1.bf16.msra.mxu0 0
      %2366 = vmatprep.subr.bf16.mxu0 0
      %2367 = vmatpush1.bf16.msra.mxu0 0
      %2368 = vmatprep.subr.bf16.mxu0 0
      %2369 = vmatpush1.bf16.msra.mxu0 0
      %2370 = vmatprep.subr.bf16.mxu0 0
      %2371 = vmatpush1.bf16.msra.mxu0 0
      %2372 = vmatprep.subr.bf16.mxu0 0
      %2373 = vmatpush1.bf16.msra.mxu0 0
      %2374 = vmatprep.subr.bf16.mxu0 0
      %2375 = vmatpush1.bf16.msra.mxu0 0
      %2376 = vmatprep.mubr.bf16.mxu0 0
      %2377 = vmatmul.mubr.bf16.gmra.mrb[0].mxu0 %v1149
      %v2378 = vpop.f32.mrb[0].mxu0
      %v2379 = vadd.f32 0.0, %v2378
      %v2380 = vpop.f32.mrb[0].mxu0
      %v2381 = vpop.f32.mrb[0].mxu0
      %v2382 = vadd.f32 0.0, %v2381
      %v2383 = vpop.f32.mrb[0].mxu0
      %2384 = vmatprep.mubr.bf16.mxu0 0
      %2385 = vmatmul.mubr.bf16.gmra.mrb[0].mxu0 %v1152
      %v2386 = vpop.f32.mrb[0].mxu0
      %v2387 = vadd.f32 0.0, %v2386
      %v2388 = vpop.f32.mrb[0].mxu0
      %v2389 = vpop.f32.mrb[0].mxu0
      %v2390 = vadd.f32 0.0, %v2389
      %v2391 = vpop.f32.mrb[0].mxu0
      %2392 = vmatprep.mubr.bf16.mxu0 0
      %2393 = vmatmul.mubr.bf16.gmra.mrb[0].mxu0 %v1155
      %v2394 = vpop.f32.mrb[0].mxu0
      %v2395 = vadd.f32 0.0, %v2394
      %v2396 = vpop.f32.mrb[0].mxu0
      %v2397 = vpop.f32.mrb[0].mxu0
      %v2398 = vadd.f32 0.0, %v2397
      %v2399 = vpop.f32.mrb[0].mxu0
      %2400 = vmatprep.mubr.bf16.mxu0 0
      %2401 = vmatmul.mubr.bf16.gmra.mrb[0].mxu0 %v1158
      %v2402 = vpop.f32.mrb[0].mxu0
      %v2403 = vadd.f32 0.0, %v2402
      %v2404 = vpop.f32.mrb[0].mxu0
      %v2405 = vpop.f32.mrb[0].mxu0
      %v2406 = vadd.f32 0.0, %v2405
      %v2407 = vpop.f32.mrb[0].mxu0
      %2408 = vmatprep.mubr.bf16.mxu0 0
      %2409 = vmatmul.mubr.bf16.gmra.mrb[0].mxu0 %v1161
      %v2410 = vpop.f32.mrb[0].mxu0
      %v2411 = vadd.f32 0.0, %v2410
      %v2412 = vpop.f32.mrb[0].mxu0
      %v2413 = vpop.f32.mrb[0].mxu0
      %v2414 = vadd.f32 0.0, %v2413
      %v2415 = vpop.f32.mrb[0].mxu0
      %2416 = vmatprep.mubr.bf16.mxu0 0
      %2417 = vmatmul.mubr.bf16.gmra.mrb[0].mxu0 %v1164
      %v2418 = vpop.f32.mrb[0].mxu0
      %v2419 = vadd.f32 0.0, %v2418
      %v2420 = vpop.f32.mrb[0].mxu0
      %v2421 = vpop.f32.mrb[0].mxu0
      %v2422 = vadd.f32 0.0, %v2421
      %v2423 = vpop.f32.mrb[0].mxu0
      %2424 = vmatprep.mubr.bf16.mxu0 0
      %2425 = vmatmul.mubr.bf16.gmra.mrb[0].mxu0 %v1724
      %v2426 = vpop.f32.mrb[0].mxu0
      %v2427 = vadd.f32 0.0, %v2426
      %v2428 = vpop.f32.mrb[0].mxu0
      %v2429 = vpop.f32.mrb[0].mxu0
      %v2430 = vadd.f32 0.0, %v2429
      %v2431 = vpop.f32.mrb[0].mxu0
      %2432 = vmatprep.mubr.bf16.mxu0 0
      %2433 = vmatmul.mubr.bf16.gmra.mrb[0].mxu0 %v2277
      %v2434 = vpop.f32.mrb[0].mxu0
      %v2435 = vadd.f32 0.0, %v2434
      %v2436 = vpop.f32.mrb[0].mxu0
      %v2437 = vpop.f32.mrb[0].mxu0
      %v2438 = vadd.f32 0.0, %v2437
      %v2439 = vpop.f32.mrb[0].mxu0
      %2440 = vdwg.mxu0
      %v2441 = vadd.f32 %v2257, %v2379
      %v2442 = vadd.f32 %v2258, %v2382
      %v2443 = vadd.f32 %v2259, %v2387
      %v2444 = vadd.f32 %v2260, %v2390
      %v2445 = vadd.f32 %v2261, %v2395
      %v2446 = vadd.f32 %v2262, %v2398
      %v2447 = vadd.f32 %v2263, %v2403
      %v2448 = vadd.f32 %v2264, %v2406
      %v2449 = vadd.f32 %v2265, %v2411
      %v2450 = vadd.f32 %v2266, %v2414
      %v2451 = vadd.f32 %v2267, %v2419
      %v2452 = vadd.f32 %v2268, %v2422
      %v2453 = vadd.f32 %v2269, %v2427
      %v2454 = vadd.f32 %v2270, %v2430
      %v2455 = vadd.f32 %v2271, %v2435
      %v2456 = vadd.f32 %v2272, %v2438
      %2457 = vst [vmem:[%s458] sm:$0xff] %v2441
      %2458 = vst [vmem:[%s458 + $0x8] sm:$0xff] %v2442
      %2459 = vst [vmem:[%s458 + $0x10] sm:$0xff] %v2443
      %2460 = vst [vmem:[%s458 + $0x18] sm:$0xff] %v2444
      %2461 = vst [vmem:[%s458 + $0x20] sm:$0xff] %v2445
      %2462 = vst [vmem:[%s458 + $0x28] sm:$0xff] %v2446
      %2463 = vst [vmem:[%s458 + $0x30] sm:$0xff] %v2447
      %2464 = vst [vmem:[%s458 + $0x38] sm:$0xff] %v2448
      %2465 = vst [vmem:[%s458 + $0x40] sm:$0xff] %v2449
      %2466 = vst [vmem:[%s458 + $0x48] sm:$0xff] %v2450
      %2467 = vst [vmem:[%s458 + $0x50] sm:$0xff] %v2451
      %2468 = vst [vmem:[%s458 + $0x58] sm:$0xff] %v2452
      %2469 = vst [vmem:[%s458 + $0x60] sm:$0xff] %v2453
      %2470 = vst [vmem:[%s458 + $0x68] sm:$0xff] %v2454
      %2471 = vst [vmem:[%s458 + $0x70] sm:$0xff] %v2455
      %2472 = vst [vmem:[%s458 + $0x78] sm:$0xff] %v2456
      %v2473 = vadd.f32 %v2441, %v2442
      %v2474 = vadd.f32 %v2473, %v2443
      %v2475 = vadd.f32 %v2474, %v2444
      %v2476 = vadd.f32 %v2475, %v2445
      %v2477 = vadd.f32 %v2476, %v2446
      %v2478 = vadd.f32 %v2477, %v2447
      %v2479 = vadd.f32 %v2478, %v2448
      %v2480 = vadd.f32 %v2479, %v2449
      %v2481 = vadd.f32 %v2480, %v2450
      %v2482 = vadd.f32 %v2481, %v2451
      %v2483 = vadd.f32 %v2482, %v2452
      %v2484 = vadd.f32 %v2483, %v2453
      %v2485 = vadd.f32 %v2484, %v2454
      %v2486 = vadd.f32 %v2485, %v2455
      %v2487 = vadd.f32 %v2486, %v2456
      %v2488 = vrot.slane %v2487, 4
      %v2489 = vadd.f32 %v2487, %v2488
      %v2490 = vrot.slane %v2489, 2
      %v2491 = vadd.f32 %v2489, %v2490
      %v2492 = vrot.slane %v2491, 1
      %v2493 = vadd.f32 %v2491, %v2492
      %v2494 = vmul.f32 %v2441, %v2441
      %v2495 = vmul.f32 %v2442, %v2442
      %v2496 = vmul.f32 %v2443, %v2443
      %v2497 = vmul.f32 %v2444, %v2444
      %v2498 = vmul.f32 %v2445, %v2445
      %v2499 = vmul.f32 %v2446, %v2446
      %v2500 = vmul.f32 %v2447, %v2447
      %v2501 = vmul.f32 %v2448, %v2448
      %v2502 = vmul.f32 %v2449, %v2449
      %v2503 = vmul.f32 %v2450, %v2450
      %v2504 = vmul.f32 %v2451, %v2451
      %v2505 = vmul.f32 %v2452, %v2452
      %v2506 = vmul.f32 %v2453, %v2453
      %v2507 = vmul.f32 %v2454, %v2454
      %v2508 = vmul.f32 %v2455, %v2455
      %v2509 = vmul.f32 %v2456, %v2456
      %v2510 = vadd.f32 %v2494, %v2495
      %v2511 = vadd.f32 %v2510, %v2496
      %v2512 = vadd.f32 %v2511, %v2497
      %v2513 = vadd.f32 %v2512, %v2498
      %v2514 = vadd.f32 %v2513, %v2499
      %v2515 = vadd.f32 %v2514, %v2500
      %v2516 = vadd.f32 %v2515, %v2501
      %v2517 = vadd.f32 %v2516, %v2502
      %v2518 = vadd.f32 %v2517, %v2503
      %v2519 = vadd.f32 %v2518, %v2504
      %v2520 = vadd.f32 %v2519, %v2505
      %v2521 = vadd.f32 %v2520, %v2506
      %v2522 = vadd.f32 %v2521, %v2507
      %v2523 = vadd.f32 %v2522, %v2508
      %v2524 = vadd.f32 %v2523, %v2509
      %v2525 = vrot.slane %v2524, 4
      %v2526 = vadd.f32 %v2524, %v2525
      %v2527 = vrot.slane %v2526, 2
      %v2528 = vadd.f32 %v2526, %v2527
      %v2529 = vrot.slane %v2528, 1
      %v2530 = vadd.f32 %v2528, %v2529
      %v2531 = vsel %vm595, %v2493, %v2530
      %vm2532 = vcmask 1041408
      %v2533 = vsel %vm2532, %v2531, 0.0
      %2534 = vst [vmem:[%s467] sm:$0xff] %v2533
      %s2535 = smul.u32 8, %s24
      %p2536 = scmp.lt.s32.totalorder %s23, 1
      %s2537 = scalar_select %p2536, %s23, 1
      %p2538 = scmp.lt.s32.totalorder %s2535, 15
      %s2539 = scalar_select %p2538, %s2535, 15
      %s2540 = smul.addr %s2539, 2
      %s2541 = smul.addr %s2537, 32
      %s2542 = sadd.s32 %s2540, %s2541
      %s2543 = smul.addr %s2542, 8
      %s2544 = scalar_lea.vmem %s6, %s2543
      %p2545 = scmp.lt.s32.totalorder %s23, 1
      %s2546 = scalar_select %p2545, %s23, 1
      %p2547 = scmp.lt.s32.totalorder %s24, 1
      %s2548 = scalar_select %p2547, %s24, 1
      %s2549 = smul.addr %s2546, 2
      %s2550 = sadd.s32 %s2548, %s2549
      %s2551 = smul.addr %s2550, 8
      %s2552 = scalar_lea.vmem %s7, %s2551
      // Predicated region
      $region45: #{conv_block_forward.3} parent=43 // pred_check
        %p2553 = pneg %p214
      $region46: #{conv_block_forward.3} parent=43 // pred_check_branch
        %2555 = sbr.rel (%p2553) target = $region48
      $region47: #{conv_block_forward.3} parent=43 // pred_region
        %s2556 = smul.u32 8, %s24
      $region48: #{conv_block_forward.3} parent=43 // pred_fallthru
        _
      // Predicated region
      $region49: #{conv_block_forward.3} parent=43 // pred_check
        %p2557 = pneg %p242
      $region50: #{conv_block_forward.3} parent=43 // pred_check_branch
        %2559 = sbr.rel (%p2557) target = $region52
      $region51: #{conv_block_forward.3} parent=43 // pred_region
        _
      $region52: #{conv_block_forward.3} parent=43 // pred_fallthru
        _
    $region44: #{conv_block_forward.3} parent=5 // pred_fallthru
      _
    %p2560 = scmp.le.s32.totalorder 2, %s14
    // Predicated region
    $region53: #{conv_block_forward.3} parent=5 // pred_check
      %p2561 = pneg %p2560
    $region54: #{conv_block_forward.3} parent=5 // pred_check_branch
      %2563 = sbr.rel (%p2561) target = $region56
    $region55: #{conv_block_forward.3} parent=5 // pred_region
      %s2564 = ssub.s32 %s14, 2
      // Predicated region
      $region57: #{conv_block_forward.3} parent=55 // pred_check
        %p2565 = pneg %p220
      $region58: #{conv_block_forward.3} parent=55 // pred_check_branch
        %2567 = sbr.rel (%p2565) target = $region60
      $region59: #{conv_block_forward.3} parent=55 // pred_region
        %s2568 = smul.u32 8, %s26
        %p2569 = scmp.lt.s32.totalorder %s25, 1
        %s2570 = scalar_select %p2569, %s25, 1
        %p2571 = scmp.lt.s32.totalorder %s2568, 15
        %s2572 = scalar_select %p2571, %s2568, 15
        %s2573 = smul.addr %s2572, 2
        %s2574 = smul.addr %s2570, 32
        %s2575 = sadd.s32 %s2573, %s2574
        %s2576 = smul.addr %s2575, 8
        %s2577 = scalar_lea.vmem %s6, %s2576
      $region60: #{conv_block_forward.3} parent=55 // pred_fallthru
        _
      // Predicated region
      $region61: #{conv_block_forward.3} parent=55 // pred_check
        %p2578 = pneg %p248
      $region62: #{conv_block_forward.3} parent=55 // pred_check_branch
        %2580 = sbr.rel (%p2578) target = $region64
      $region63: #{conv_block_forward.3} parent=55 // pred_region
        %p2581 = scmp.lt.s32.totalorder %s25, 1
        %s2582 = scalar_select %p2581, %s25, 1
        %p2583 = scmp.lt.s32.totalorder %s26, 1
        %s2584 = scalar_select %p2583, %s26, 1
        %s2585 = smul.addr %s2582, 2
        %s2586 = sadd.s32 %s2584, %s2585
        %s2587 = smul.addr %s2586, 8
        %s2588 = scalar_lea.vmem %s7, %s2587
      $region64: #{conv_block_forward.3} parent=55 // pred_fallthru
        _
    $region56: #{conv_block_forward.3} parent=5 // pred_fallthru
      _
  $region6: #{conv_block_forward.3} parent=0 // loop_footer
    %s18 = sadd.s32 1, %s14
  $region7: #{conv_block_forward.3} parent=0 // loop_footer_branch
    %13 = sbr.rel target = $region3
  $region8: #{conv_block_forward.3} parent=0 // loop_exit
    _

</llo_original>
